<compile_context>
chip_gen: v7x
topology: tpu7x:2x2x1
jax: 0.10.0
libtpu: 0.0.40
codegen_flags: <defaults>
</compile_context>

<pallas_src>
import math

import jax
import jax.numpy as jnp
from jax.experimental import pallas as pl
from jax.experimental.pallas import tpu as pltpu  # noqa: F401 (tuning hooks)

# ----------------------------- model hyperparams -----------------------------
B, S = 2, 8            # batch, sequence length
D = 32                 # emb_size == d_model
H = 4                  # nhead
HD = D // H            # head dim
FF = 2048              # PyTorch TransformerEncoderLayer default dim_feedforward
NUM_ITEMS = 127
V = NUM_ITEMS + 1      # vocab / head output size (128 -> lane-dense)
NUM_LAYERS = 2
EPS = 1e-5             # PyTorch LayerNorm default eps
QKV_PAD = 128          # 3*D = 96 output cols zero-padded to a full 128-lane tile

# row indices inside the packed per-layer "small" tensor (L, 8, 128)
R_BQKV, R_BO, R_LN1W, R_LN1B, R_B2, R_LN2W, R_LN2B = range(7)


# --------------------------------- kernel ------------------------------------
def _layernorm(x2d, w, b):
    # x2d: (N, D); w, b: (1, D).  Biased variance, like torch.nn.LayerNorm.
    mu = jnp.mean(x2d, axis=-1, keepdims=True)
    var = jnp.mean((x2d - mu) ** 2, axis=-1, keepdims=True)
    return (x2d - mu) * jax.lax.rsqrt(var + EPS) * w + b


def fused_forward_kernel(ids_ref,            # (B*S, 1) int32
                         emb_ref,            # (V, D)   f32
                         wqkv_ref,           # (L, D, 128) bf16  cols = [q | k | v | pad]
                         wo_ref,             # (L, D, D)   bf16
                         w1_ref,             # (L, D, FF)  bf16
                         b1_ref,             # (L, 1, FF)  f32
                         w2t_ref,            # (L, D, FF)  bf16  (== linear2.weight)
                         small_ref,          # (L, 8, 128) f32   packed small params
                         hw_ref, hb_ref,     # (D, V) bf16 / (1, V) f32
                         o_ref):             # (B, S, V) f32
    f32, bf16 = jnp.float32, jnp.bfloat16

    # ---- embedding gather as a one-hot MXU matmul (V == 128 lanes) -----------
    iota = jax.lax.broadcasted_iota(jnp.int32, (B * S, V), 1)
    onehot = (ids_ref[...] == iota).astype(f32)                     # (16, 128)
    x = jnp.dot(onehot, emb_ref[...], preferred_element_type=f32)   # (16, D)

    scale = 1.0 / math.sqrt(HD)
    for l in range(NUM_LAYERS):                    # static unroll, no grid
        sm = small_ref[l]                          # (8, 128) packed params
        xb = x.astype(bf16)

        # ---- fused QKV: one (B*S, D) @ (D, 128) matmul, lane-dense result ----
        qkv = (jnp.dot(xb, wqkv_ref[l], preferred_element_type=f32)
               + sm[R_BQKV:R_BQKV + 1, :])                           # (16, 128)

        # ---- per-head scores / softmax / context (static 8-lane slices) ------
        heads = []
        for h in range(H):
            qh = qkv[:, 0 * D + h * HD:0 * D + (h + 1) * HD].reshape(B, S, HD)
            kh = qkv[:, 1 * D + h * HD:1 * D + (h + 1) * HD].reshape(B, S, HD)
            vh = qkv[:, 2 * D + h * HD:2 * D + (h + 1) * HD].reshape(B, S, HD)
            s = jnp.einsum('bqd,bkd->bqk', qh, kh,
                           preferred_element_type=f32) * scale
            s = s - jnp.max(s, axis=-1, keepdims=True)
            p = jnp.exp(s)
            p = p * pl.reciprocal(jnp.sum(p, axis=-1, keepdims=True), approx=True)
            ctx_h = jnp.einsum('bqk,bkd->bqd', p, vh, preferred_element_type=f32)
            heads.append(ctx_h.reshape(B * S, HD))
        ctx = jnp.concatenate(heads, axis=-1)                        # (16, D)

        # ---- fused output projection: single (B*S, D) @ (D, D) matmul --------
        attn = (jnp.dot(ctx.astype(bf16), wo_ref[l], preferred_element_type=f32)
                + sm[R_BO:R_BO + 1, :D])

        # residual + LayerNorm 1 (dropout == identity in eval mode)
        y = _layernorm(x + attn,
                       sm[R_LN1W:R_LN1W + 1, :D], sm[R_LN1B:R_LN1B + 1, :D])

        # ---- feed-forward: Linear -> ReLU -> Linear (w2 lane-dense, A @ B^T) --
        hdn = jnp.maximum(
            jnp.dot(y.astype(bf16), w1_ref[l], preferred_element_type=f32)
            + b1_ref[l], 0.0)                                        # (16, FF)
        ffo = jax.lax.dot_general(
            hdn.astype(bf16), w2t_ref[l],
            dimension_numbers=(((1,), (1,)), ((), ())),              # A @ B^T
            preferred_element_type=f32) + sm[R_B2:R_B2 + 1, :D]

        # residual + LayerNorm 2
        x = _layernorm(y + ffo,
                       sm[R_LN2W:R_LN2W + 1, :D], sm[R_LN2B:R_LN2B + 1, :D])

    # ---- classification head: lane-dense V = 128 store -----------------------
    logits = (jnp.dot(x.astype(bf16), hw_ref[...], preferred_element_type=f32)
              + hb_ref[...])
    o_ref[...] = logits.reshape(B, S, V)


# -------------------------------- pallas glue ---------------------------------
@jax.jit
def mf_bert_hybrid_forward(ids, params):
    p = params
    ids_col = ids.reshape(B * S, 1).astype(jnp.int32)
    # Single invocation, no grid: every array is mapped whole into VMEM
    # (~0.6 MiB total) by the default BlockSpecs.
    return pl.pallas_call(
        fused_forward_kernel,
        out_shape=jax.ShapeDtypeStruct((B, S, V), jnp.float32),
    )(ids_col, p["emb"], p["wqkv"], p["wo"], p["w1"], p["b1"], p["w2t"],
      p["small"], p["head_w"], p["head_b"])


# ------------------------------ parameter init --------------------------------
def init_params(key):
    ks = jax.random.split(key, 6)
    f32, bf16 = jnp.float32, jnp.bfloat16
    L = NUM_LAYERS

    def nrm(k, shape, dtype=f32):
        return (0.02 * jax.random.normal(k, shape, dtype=jnp.float32)).astype(dtype)

    # "pretrained" frozen embedding table; row 0 (padding_idx=0) is zeros.
    emb = nrm(ks[0], (V, D)).at[0].set(0.0)

    # Fused QKV weight: PyTorch in_proj_weight (3D, D) transposed to (D, 3D),
    # head-major / dim-minor output lanes, zero-padded to 128 lanes.
    wqkv = (jnp.zeros((L, D, QKV_PAD), f32)
            .at[:, :, :3 * D].set(nrm(ks[1], (L, D, 3 * D)))
            .astype(bf16))

    wo = nrm(ks[2], (L, D, D), bf16)        # out_proj.weight^T  (in=H*HD, out=D)
    w1 = nrm(ks[3], (L, D, FF), bf16)       # linear1.weight^T
    b1 = jnp.zeros((L, 1, FF), f32)
    w2t = nrm(ks[4], (L, D, FF), bf16)      # == linear2.weight (out=D, in=FF), lane-dense
    head_w = nrm(ks[5], (D, V), bf16)       # head.weight^T
    head_b = jnp.zeros((1, V), f32)

    # Packed per-layer small params: one (8, 128) f32 tile per layer.
    # rows: [qkv bias, out-proj bias, ln1 w, ln1 b, ff b2, ln2 w, ln2 b, pad]
    small = jnp.zeros((L, 8, 128), f32)
    small = small.at[:, R_LN1W, :D].set(1.0)   # LayerNorm1 weight = 1
    small = small.at[:, R_LN2W, :D].set(1.0)   # LayerNorm2 weight = 1
    # bias rows (R_BQKV, R_BO, R_B2, R_LN1B, R_LN2B) stay zero.

    return dict(emb=emb, wqkv=wqkv, wo=wo, w1=w1, b1=b1, w2t=w2t,
                small=small, head_w=head_w, head_b=head_b)


# ----------------------------------- main --------------------------------------
if __name__ == "__main__":
    key = jax.random.PRNGKey(0)
    pkey, dkey = jax.random.split(key)
    params = init_params(pkey)
    ids = jax.random.randint(dkey, (B, S), 0, V, dtype=jnp.int32)   # token ids

    out = mf_bert_hybrid_forward(ids, params)
    out = jax.block_until_ready(out)
    assert out.shape == (B, S, V) and out.dtype == jnp.float32
    assert bool(jnp.isfinite(out).all())
    print("KERNEL_OK")
</pallas_src>

<mosaic_0001>
module attributes {stable_mosaic.version = 11 : i64} {
  func.func @fused_forward_kernel(%arg0: memref<16x1xi32, #tpu.memory_space<vmem>>, %arg1: memref<128x32xf32, #tpu.memory_space<vmem>>, %arg2: memref<2x32x128xbf16, #tpu.memory_space<vmem>>, %arg3: memref<2x32x32xbf16, #tpu.memory_space<vmem>>, %arg4: memref<2x32x2048xbf16, #tpu.memory_space<vmem>>, %arg5: memref<2x1x2048xf32, #tpu.memory_space<vmem>>, %arg6: memref<2x32x2048xbf16, #tpu.memory_space<vmem>>, %arg7: memref<2x8x128xf32, #tpu.memory_space<vmem>>, %arg8: memref<32x128xbf16, #tpu.memory_space<vmem>>, %arg9: memref<1x128xf32, #tpu.memory_space<vmem>>, %arg10: memref<2x8x128xf32, #tpu.memory_space<vmem>>) attributes {dimension_semantics = [], scalar_prefetch = 0 : i64, scratch_operands = 0 : i64, tpu.core_type = #tpu.core_type<tc>} {
    %0 = tpu.iota {dimensions = array<i32: 1>} : vector<16x128xi32>
    %c0 = arith.constant 0 : index
    %c0_0 = arith.constant 0 : index
    %1 = vector.load %arg0[%c0, %c0_0] : memref<16x1xi32, #tpu.memory_space<vmem>>, vector<16x1xi32>
    %2 = vector.broadcast %1 : vector<16x1xi32> to vector<16x128xi32>
    %3 = arith.cmpi eq, %2, %0 : vector<16x128xi32>
    %4 = arith.extui %3 : vector<16x128xi1> to vector<16x128xi32>
    %5 = arith.sitofp %4 : vector<16x128xi32> to vector<16x128xf32>
    %c0_1 = arith.constant 0 : index
    %c0_2 = arith.constant 0 : index
    %6 = vector.load %arg1[%c0_1, %c0_2] : memref<128x32xf32, #tpu.memory_space<vmem>>, vector<128x32xf32>
    %cst = arith.constant dense<0.000000e+00> : vector<16x32xf32>
    %7 = tpu.matmul %5, %6, %cst {dimension_numbers = #tpu.dot_dimension_numbers<[1], [0], [0], [1], [0, 0, 1, 1], [], []>} : vector<16x128xf32>, vector<128x32xf32>, vector<16x32xf32> -> vector<16x32xf32>
    %c0_3 = arith.constant 0 : index
    %c0_4 = arith.constant 0 : index
    %c0_5 = arith.constant 0 : index
    %8 = vector.load %arg7[%c0_3, %c0_4, %c0_5] : memref<2x8x128xf32, #tpu.memory_space<vmem>>, vector<1x8x128xf32>
    %9 = vector.shape_cast %8 : vector<1x8x128xf32> to vector<8x128xf32>
    %10 = arith.truncf %7 : vector<16x32xf32> to vector<16x32xbf16>
    %c0_6 = arith.constant 0 : index
    %c0_7 = arith.constant 0 : index
    %c0_8 = arith.constant 0 : index
    %11 = vector.load %arg2[%c0_6, %c0_7, %c0_8] : memref<2x32x128xbf16, #tpu.memory_space<vmem>>, vector<1x32x128xbf16>
    %12 = vector.shape_cast %11 : vector<1x32x128xbf16> to vector<32x128xbf16>
    %cst_9 = arith.constant dense<0.000000e+00> : vector<16x128xf32>
    %13 = tpu.matmul %10, %12, %cst_9 {dimension_numbers = #tpu.dot_dimension_numbers<[1], [0], [0], [1], [0, 0, 1, 1], [], []>} : vector<16x32xbf16>, vector<32x128xbf16>, vector<16x128xf32> -> vector<16x128xf32>
    %14 = vector.extract_strided_slice %9 {offsets = [0, 0], sizes = [1, 128], strides = [1, 1]} : vector<8x128xf32> to vector<1x128xf32>
    %15 = vector.broadcast %14 : vector<1x128xf32> to vector<16x128xf32>
    %16 = arith.addf %13, %15 : vector<16x128xf32>
    %17 = vector.extract_strided_slice %16 {offsets = [0, 0], sizes = [16, 8], strides = [1, 1]} : vector<16x128xf32> to vector<16x8xf32>
    %18 = vector.shape_cast %17 : vector<16x8xf32> to vector<2x8x8xf32>
    %19 = vector.extract_strided_slice %16 {offsets = [0, 32], sizes = [16, 8], strides = [1, 1]} : vector<16x128xf32> to vector<16x8xf32>
    %20 = vector.shape_cast %19 : vector<16x8xf32> to vector<2x8x8xf32>
    %21 = vector.extract_strided_slice %16 {offsets = [0, 64], sizes = [16, 8], strides = [1, 1]} : vector<16x128xf32> to vector<16x8xf32>
    %22 = vector.shape_cast %21 : vector<16x8xf32> to vector<2x8x8xf32>
    "tpu.trace_start"() <{level = 10 : i32, message = "bqd,bkd->bqk"}> : () -> ()
    %cst_10 = arith.constant dense<0.000000e+00> : vector<2x8x8xf32>
    %23 = tpu.matmul %18, %20, %cst_10 {dimension_numbers = #tpu.dot_dimension_numbers<[2], [2], [1], [1], [0, 0, 0, 1, 1, 1], [0], [0]>} : vector<2x8x8xf32>, vector<2x8x8xf32>, vector<2x8x8xf32> -> vector<2x8x8xf32>
    "tpu.trace_stop"() : () -> ()
    %cst_11 = arith.constant 0.353553385 : f32
    %24 = vector.broadcast %cst_11 : f32 to vector<2x8x8xf32>
    %25 = arith.mulf %23, %24 : vector<2x8x8xf32>
    %cst_12 = arith.constant dense<0xFF800000> : vector<2x8xf32>
    %26 = vector.multi_reduction <maximumf>, %25, %cst_12 [2] : vector<2x8x8xf32> to vector<2x8xf32>
    %27 = vector.shape_cast %26 : vector<2x8xf32> to vector<2x8x1xf32>
    %28 = vector.broadcast %27 : vector<2x8x1xf32> to vector<2x8x8xf32>
    %29 = arith.subf %25, %28 : vector<2x8x8xf32>
    %30 = math.exp %29 : vector<2x8x8xf32>
    %cst_13 = arith.constant dense<0.000000e+00> : vector<2x8xf32>
    %31 = vector.multi_reduction <add>, %30, %cst_13 [2] : vector<2x8x8xf32> to vector<2x8xf32>
    %32 = vector.shape_cast %31 : vector<2x8xf32> to vector<2x8x1xf32>
    %33 = tpu.reciprocal %32 {approx = true} : vector<2x8x1xf32> -> vector<2x8x1xf32>
    %34 = vector.broadcast %33 : vector<2x8x1xf32> to vector<2x8x8xf32>
    %35 = arith.mulf %30, %34 : vector<2x8x8xf32>
    "tpu.trace_start"() <{level = 10 : i32, message = "bqk,bkd->bqd"}> : () -> ()
    %cst_14 = arith.constant dense<0.000000e+00> : vector<2x8x8xf32>
    %36 = tpu.matmul %35, %22, %cst_14 {dimension_numbers = #tpu.dot_dimension_numbers<[2], [1], [1], [2], [0, 0, 0, 1, 1, 2], [0], [0]>} : vector<2x8x8xf32>, vector<2x8x8xf32>, vector<2x8x8xf32> -> vector<2x8x8xf32>
    "tpu.trace_stop"() : () -> ()
    %37 = vector.shape_cast %36 : vector<2x8x8xf32> to vector<16x8xf32>
    %38 = vector.extract_strided_slice %16 {offsets = [0, 8], sizes = [16, 8], strides = [1, 1]} : vector<16x128xf32> to vector<16x8xf32>
    %39 = vector.shape_cast %38 : vector<16x8xf32> to vector<2x8x8xf32>
    %40 = vector.extract_strided_slice %16 {offsets = [0, 40], sizes = [16, 8], strides = [1, 1]} : vector<16x128xf32> to vector<16x8xf32>
    %41 = vector.shape_cast %40 : vector<16x8xf32> to vector<2x8x8xf32>
    %42 = vector.extract_strided_slice %16 {offsets = [0, 72], sizes = [16, 8], strides = [1, 1]} : vector<16x128xf32> to vector<16x8xf32>
    %43 = vector.shape_cast %42 : vector<16x8xf32> to vector<2x8x8xf32>
    "tpu.trace_start"() <{level = 10 : i32, message = "bqd,bkd->bqk"}> : () -> ()
    %cst_15 = arith.constant dense<0.000000e+00> : vector<2x8x8xf32>
    %44 = tpu.matmul %39, %41, %cst_15 {dimension_numbers = #tpu.dot_dimension_numbers<[2], [2], [1], [1], [0, 0, 0, 1, 1, 1], [0], [0]>} : vector<2x8x8xf32>, vector<2x8x8xf32>, vector<2x8x8xf32> -> vector<2x8x8xf32>
    "tpu.trace_stop"() : () -> ()
    %cst_16 = arith.constant 0.353553385 : f32
    %45 = vector.broadcast %cst_16 : f32 to vector<2x8x8xf32>
    %46 = arith.mulf %44, %45 : vector<2x8x8xf32>
    %cst_17 = arith.constant dense<0xFF800000> : vector<2x8xf32>
    %47 = vector.multi_reduction <maximumf>, %46, %cst_17 [2] : vector<2x8x8xf32> to vector<2x8xf32>
    %48 = vector.shape_cast %47 : vector<2x8xf32> to vector<2x8x1xf32>
    %49 = vector.broadcast %48 : vector<2x8x1xf32> to vector<2x8x8xf32>
    %50 = arith.subf %46, %49 : vector<2x8x8xf32>
    %51 = math.exp %50 : vector<2x8x8xf32>
    %cst_18 = arith.constant dense<0.000000e+00> : vector<2x8xf32>
    %52 = vector.multi_reduction <add>, %51, %cst_18 [2] : vector<2x8x8xf32> to vector<2x8xf32>
    %53 = vector.shape_cast %52 : vector<2x8xf32> to vector<2x8x1xf32>
    %54 = tpu.reciprocal %53 {approx = true} : vector<2x8x1xf32> -> vector<2x8x1xf32>
    %55 = vector.broadcast %54 : vector<2x8x1xf32> to vector<2x8x8xf32>
    %56 = arith.mulf %51, %55 : vector<2x8x8xf32>
    "tpu.trace_start"() <{level = 10 : i32, message = "bqk,bkd->bqd"}> : () -> ()
    %cst_19 = arith.constant dense<0.000000e+00> : vector<2x8x8xf32>
    %57 = tpu.matmul %56, %43, %cst_19 {dimension_numbers = #tpu.dot_dimension_numbers<[2], [1], [1], [2], [0, 0, 0, 1, 1, 2], [0], [0]>} : vector<2x8x8xf32>, vector<2x8x8xf32>, vector<2x8x8xf32> -> vector<2x8x8xf32>
    "tpu.trace_stop"() : () -> ()
    %58 = vector.shape_cast %57 : vector<2x8x8xf32> to vector<16x8xf32>
    %59 = vector.extract_strided_slice %16 {offsets = [0, 16], sizes = [16, 8], strides = [1, 1]} : vector<16x128xf32> to vector<16x8xf32>
    %60 = vector.shape_cast %59 : vector<16x8xf32> to vector<2x8x8xf32>
    %61 = vector.extract_strided_slice %16 {offsets = [0, 48], sizes = [16, 8], strides = [1, 1]} : vector<16x128xf32> to vector<16x8xf32>
    %62 = vector.shape_cast %61 : vector<16x8xf32> to vector<2x8x8xf32>
    %63 = vector.extract_strided_slice %16 {offsets = [0, 80], sizes = [16, 8], strides = [1, 1]} : vector<16x128xf32> to vector<16x8xf32>
    %64 = vector.shape_cast %63 : vector<16x8xf32> to vector<2x8x8xf32>
    "tpu.trace_start"() <{level = 10 : i32, message = "bqd,bkd->bqk"}> : () -> ()
    %cst_20 = arith.constant dense<0.000000e+00> : vector<2x8x8xf32>
    %65 = tpu.matmul %60, %62, %cst_20 {dimension_numbers = #tpu.dot_dimension_numbers<[2], [2], [1], [1], [0, 0, 0, 1, 1, 1], [0], [0]>} : vector<2x8x8xf32>, vector<2x8x8xf32>, vector<2x8x8xf32> -> vector<2x8x8xf32>
    "tpu.trace_stop"() : () -> ()
    %cst_21 = arith.constant 0.353553385 : f32
    %66 = vector.broadcast %cst_21 : f32 to vector<2x8x8xf32>
    %67 = arith.mulf %65, %66 : vector<2x8x8xf32>
    %cst_22 = arith.constant dense<0xFF800000> : vector<2x8xf32>
    %68 = vector.multi_reduction <maximumf>, %67, %cst_22 [2] : vector<2x8x8xf32> to vector<2x8xf32>
    %69 = vector.shape_cast %68 : vector<2x8xf32> to vector<2x8x1xf32>
    %70 = vector.broadcast %69 : vector<2x8x1xf32> to vector<2x8x8xf32>
    %71 = arith.subf %67, %70 : vector<2x8x8xf32>
    %72 = math.exp %71 : vector<2x8x8xf32>
    %cst_23 = arith.constant dense<0.000000e+00> : vector<2x8xf32>
    %73 = vector.multi_reduction <add>, %72, %cst_23 [2] : vector<2x8x8xf32> to vector<2x8xf32>
    %74 = vector.shape_cast %73 : vector<2x8xf32> to vector<2x8x1xf32>
    %75 = tpu.reciprocal %74 {approx = true} : vector<2x8x1xf32> -> vector<2x8x1xf32>
    %76 = vector.broadcast %75 : vector<2x8x1xf32> to vector<2x8x8xf32>
    %77 = arith.mulf %72, %76 : vector<2x8x8xf32>
    "tpu.trace_start"() <{level = 10 : i32, message = "bqk,bkd->bqd"}> : () -> ()
    %cst_24 = arith.constant dense<0.000000e+00> : vector<2x8x8xf32>
    %78 = tpu.matmul %77, %64, %cst_24 {dimension_numbers = #tpu.dot_dimension_numbers<[2], [1], [1], [2], [0, 0, 0, 1, 1, 2], [0], [0]>} : vector<2x8x8xf32>, vector<2x8x8xf32>, vector<2x8x8xf32> -> vector<2x8x8xf32>
    "tpu.trace_stop"() : () -> ()
    %79 = vector.shape_cast %78 : vector<2x8x8xf32> to vector<16x8xf32>
    %80 = vector.extract_strided_slice %16 {offsets = [0, 24], sizes = [16, 8], strides = [1, 1]} : vector<16x128xf32> to vector<16x8xf32>
    %81 = vector.shape_cast %80 : vector<16x8xf32> to vector<2x8x8xf32>
    %82 = vector.extract_strided_slice %16 {offsets = [0, 56], sizes = [16, 8], strides = [1, 1]} : vector<16x128xf32> to vector<16x8xf32>
    %83 = vector.shape_cast %82 : vector<16x8xf32> to vector<2x8x8xf32>
    %84 = vector.extract_strided_slice %16 {offsets = [0, 88], sizes = [16, 8], strides = [1, 1]} : vector<16x128xf32> to vector<16x8xf32>
    %85 = vector.shape_cast %84 : vector<16x8xf32> to vector<2x8x8xf32>
    "tpu.trace_start"() <{level = 10 : i32, message = "bqd,bkd->bqk"}> : () -> ()
    %cst_25 = arith.constant dense<0.000000e+00> : vector<2x8x8xf32>
    %86 = tpu.matmul %81, %83, %cst_25 {dimension_numbers = #tpu.dot_dimension_numbers<[2], [2], [1], [1], [0, 0, 0, 1, 1, 1], [0], [0]>} : vector<2x8x8xf32>, vector<2x8x8xf32>, vector<2x8x8xf32> -> vector<2x8x8xf32>
    "tpu.trace_stop"() : () -> ()
    %cst_26 = arith.constant 0.353553385 : f32
    %87 = vector.broadcast %cst_26 : f32 to vector<2x8x8xf32>
    %88 = arith.mulf %86, %87 : vector<2x8x8xf32>
    %cst_27 = arith.constant dense<0xFF800000> : vector<2x8xf32>
    %89 = vector.multi_reduction <maximumf>, %88, %cst_27 [2] : vector<2x8x8xf32> to vector<2x8xf32>
    %90 = vector.shape_cast %89 : vector<2x8xf32> to vector<2x8x1xf32>
    %91 = vector.broadcast %90 : vector<2x8x1xf32> to vector<2x8x8xf32>
    %92 = arith.subf %88, %91 : vector<2x8x8xf32>
    %93 = math.exp %92 : vector<2x8x8xf32>
    %cst_28 = arith.constant dense<0.000000e+00> : vector<2x8xf32>
    %94 = vector.multi_reduction <add>, %93, %cst_28 [2] : vector<2x8x8xf32> to vector<2x8xf32>
    %95 = vector.shape_cast %94 : vector<2x8xf32> to vector<2x8x1xf32>
    %96 = tpu.reciprocal %95 {approx = true} : vector<2x8x1xf32> -> vector<2x8x1xf32>
    %97 = vector.broadcast %96 : vector<2x8x1xf32> to vector<2x8x8xf32>
    %98 = arith.mulf %93, %97 : vector<2x8x8xf32>
    "tpu.trace_start"() <{level = 10 : i32, message = "bqk,bkd->bqd"}> : () -> ()
    %cst_29 = arith.constant dense<0.000000e+00> : vector<2x8x8xf32>
    %99 = tpu.matmul %98, %85, %cst_29 {dimension_numbers = #tpu.dot_dimension_numbers<[2], [1], [1], [2], [0, 0, 0, 1, 1, 2], [0], [0]>} : vector<2x8x8xf32>, vector<2x8x8xf32>, vector<2x8x8xf32> -> vector<2x8x8xf32>
    "tpu.trace_stop"() : () -> ()
    %100 = vector.shape_cast %99 : vector<2x8x8xf32> to vector<16x8xf32>
    %101 = tpu.concatenate %37, %58, %79, %100 in 1 : vector<16x8xf32>, vector<16x8xf32>, vector<16x8xf32>, vector<16x8xf32> -> vector<16x32xf32>
    %102 = arith.truncf %101 : vector<16x32xf32> to vector<16x32xbf16>
    %c0_30 = arith.constant 0 : index
    %c0_31 = arith.constant 0 : index
    %c0_32 = arith.constant 0 : index
    %103 = vector.load %arg3[%c0_30, %c0_31, %c0_32] : memref<2x32x32xbf16, #tpu.memory_space<vmem>>, vector<1x32x32xbf16>
    %104 = vector.shape_cast %103 : vector<1x32x32xbf16> to vector<32x32xbf16>
    %cst_33 = arith.constant dense<0.000000e+00> : vector<16x32xf32>
    %105 = tpu.matmul %102, %104, %cst_33 {dimension_numbers = #tpu.dot_dimension_numbers<[1], [0], [0], [1], [0, 0, 1, 1], [], []>} : vector<16x32xbf16>, vector<32x32xbf16>, vector<16x32xf32> -> vector<16x32xf32>
    %106 = vector.extract_strided_slice %9 {offsets = [1, 0], sizes = [1, 32], strides = [1, 1]} : vector<8x128xf32> to vector<1x32xf32>
    %107 = vector.broadcast %106 : vector<1x32xf32> to vector<16x32xf32>
    %108 = arith.addf %105, %107 : vector<16x32xf32>
    %109 = arith.addf %7, %108 : vector<16x32xf32>
    %110 = vector.extract_strided_slice %9 {offsets = [2, 0], sizes = [1, 32], strides = [1, 1]} : vector<8x128xf32> to vector<1x32xf32>
    %111 = vector.extract_strided_slice %9 {offsets = [3, 0], sizes = [1, 32], strides = [1, 1]} : vector<8x128xf32> to vector<1x32xf32>
    %cst_34 = arith.constant dense<0.000000e+00> : vector<16xf32>
    %112 = vector.multi_reduction <add>, %109, %cst_34 [1] : vector<16x32xf32> to vector<16xf32>
    %113 = vector.shape_cast %112 : vector<16xf32> to vector<16x1xf32>
    %cst_35 = arith.constant 3.200000e+01 : f32
    %114 = vector.broadcast %cst_35 : f32 to vector<16x1xf32>
    %115 = arith.divf %113, %114 : vector<16x1xf32>
    %116 = vector.broadcast %115 : vector<16x1xf32> to vector<16x32xf32>
    %117 = arith.subf %109, %116 : vector<16x32xf32>
    %118 = arith.mulf %117, %117 : vector<16x32xf32>
    %cst_36 = arith.constant dense<0.000000e+00> : vector<16xf32>
    %119 = vector.multi_reduction <add>, %118, %cst_36 [1] : vector<16x32xf32> to vector<16xf32>
    %120 = vector.shape_cast %119 : vector<16xf32> to vector<16x1xf32>
    %cst_37 = arith.constant 3.200000e+01 : f32
    %121 = vector.broadcast %cst_37 : f32 to vector<16x1xf32>
    %122 = arith.divf %120, %121 : vector<16x1xf32>
    %123 = vector.broadcast %115 : vector<16x1xf32> to vector<16x32xf32>
    %124 = arith.subf %109, %123 : vector<16x32xf32>
    %cst_38 = arith.constant 9.99999974E-6 : f32
    %125 = vector.broadcast %cst_38 : f32 to vector<16x1xf32>
    %126 = arith.addf %122, %125 : vector<16x1xf32>
    %127 = math.rsqrt %126 : vector<16x1xf32>
    %128 = vector.broadcast %127 : vector<16x1xf32> to vector<16x32xf32>
    %129 = arith.mulf %124, %128 : vector<16x32xf32>
    %130 = vector.broadcast %110 : vector<1x32xf32> to vector<16x32xf32>
    %131 = arith.mulf %129, %130 : vector<16x32xf32>
    %132 = vector.broadcast %111 : vector<1x32xf32> to vector<16x32xf32>
    %133 = arith.addf %131, %132 : vector<16x32xf32>
    %134 = arith.truncf %133 : vector<16x32xf32> to vector<16x32xbf16>
    %c0_39 = arith.constant 0 : index
    %c0_40 = arith.constant 0 : index
    %c0_41 = arith.constant 0 : index
    %135 = vector.load %arg4[%c0_39, %c0_40, %c0_41] : memref<2x32x2048xbf16, #tpu.memory_space<vmem>>, vector<1x32x2048xbf16>
    %136 = vector.shape_cast %135 : vector<1x32x2048xbf16> to vector<32x2048xbf16>
    %cst_42 = arith.constant dense<0.000000e+00> : vector<16x2048xf32>
    %137 = tpu.matmul %134, %136, %cst_42 {dimension_numbers = #tpu.dot_dimension_numbers<[1], [0], [0], [1], [0, 0, 1, 1], [], []>} : vector<16x32xbf16>, vector<32x2048xbf16>, vector<16x2048xf32> -> vector<16x2048xf32>
    %c0_43 = arith.constant 0 : index
    %c0_44 = arith.constant 0 : index
    %c0_45 = arith.constant 0 : index
    %138 = vector.load %arg5[%c0_43, %c0_44, %c0_45] : memref<2x1x2048xf32, #tpu.memory_space<vmem>>, vector<1x1x2048xf32>
    %139 = vector.shape_cast %138 : vector<1x1x2048xf32> to vector<1x2048xf32>
    %140 = vector.broadcast %139 : vector<1x2048xf32> to vector<16x2048xf32>
    %141 = arith.addf %137, %140 : vector<16x2048xf32>
    %cst_46 = arith.constant 0.000000e+00 : f32
    %142 = vector.broadcast %cst_46 : f32 to vector<16x2048xf32>
    %143 = arith.maximumf %141, %142 : vector<16x2048xf32>
    %144 = arith.truncf %143 : vector<16x2048xf32> to vector<16x2048xbf16>
    %c0_47 = arith.constant 0 : index
    %c0_48 = arith.constant 0 : index
    %c0_49 = arith.constant 0 : index
    %145 = vector.load %arg6[%c0_47, %c0_48, %c0_49] : memref<2x32x2048xbf16, #tpu.memory_space<vmem>>, vector<1x32x2048xbf16>
    %146 = vector.shape_cast %145 : vector<1x32x2048xbf16> to vector<32x2048xbf16>
    %cst_50 = arith.constant dense<0.000000e+00> : vector<16x32xf32>
    %147 = tpu.matmul %144, %146, %cst_50 {dimension_numbers = #tpu.dot_dimension_numbers<[1], [1], [0], [0], [0, 0, 1, 0], [], []>} : vector<16x2048xbf16>, vector<32x2048xbf16>, vector<16x32xf32> -> vector<16x32xf32>
    %148 = vector.extract_strided_slice %9 {offsets = [4, 0], sizes = [1, 32], strides = [1, 1]} : vector<8x128xf32> to vector<1x32xf32>
    %149 = vector.broadcast %148 : vector<1x32xf32> to vector<16x32xf32>
    %150 = arith.addf %147, %149 : vector<16x32xf32>
    %151 = arith.addf %133, %150 : vector<16x32xf32>
    %152 = vector.extract_strided_slice %9 {offsets = [5, 0], sizes = [1, 32], strides = [1, 1]} : vector<8x128xf32> to vector<1x32xf32>
    %153 = vector.extract_strided_slice %9 {offsets = [6, 0], sizes = [1, 32], strides = [1, 1]} : vector<8x128xf32> to vector<1x32xf32>
    %cst_51 = arith.constant dense<0.000000e+00> : vector<16xf32>
    %154 = vector.multi_reduction <add>, %151, %cst_51 [1] : vector<16x32xf32> to vector<16xf32>
    %155 = vector.shape_cast %154 : vector<16xf32> to vector<16x1xf32>
    %cst_52 = arith.constant 3.200000e+01 : f32
    %156 = vector.broadcast %cst_52 : f32 to vector<16x1xf32>
    %157 = arith.divf %155, %156 : vector<16x1xf32>
    %158 = vector.broadcast %157 : vector<16x1xf32> to vector<16x32xf32>
    %159 = arith.subf %151, %158 : vector<16x32xf32>
    %160 = arith.mulf %159, %159 : vector<16x32xf32>
    %cst_53 = arith.constant dense<0.000000e+00> : vector<16xf32>
    %161 = vector.multi_reduction <add>, %160, %cst_53 [1] : vector<16x32xf32> to vector<16xf32>
    %162 = vector.shape_cast %161 : vector<16xf32> to vector<16x1xf32>
    %cst_54 = arith.constant 3.200000e+01 : f32
    %163 = vector.broadcast %cst_54 : f32 to vector<16x1xf32>
    %164 = arith.divf %162, %163 : vector<16x1xf32>
    %165 = vector.broadcast %157 : vector<16x1xf32> to vector<16x32xf32>
    %166 = arith.subf %151, %165 : vector<16x32xf32>
    %cst_55 = arith.constant 9.99999974E-6 : f32
    %167 = vector.broadcast %cst_55 : f32 to vector<16x1xf32>
    %168 = arith.addf %164, %167 : vector<16x1xf32>
    %169 = math.rsqrt %168 : vector<16x1xf32>
    %170 = vector.broadcast %169 : vector<16x1xf32> to vector<16x32xf32>
    %171 = arith.mulf %166, %170 : vector<16x32xf32>
    %172 = vector.broadcast %152 : vector<1x32xf32> to vector<16x32xf32>
    %173 = arith.mulf %171, %172 : vector<16x32xf32>
    %174 = vector.broadcast %153 : vector<1x32xf32> to vector<16x32xf32>
    %175 = arith.addf %173, %174 : vector<16x32xf32>
    %c1 = arith.constant 1 : index
    %c0_56 = arith.constant 0 : index
    %c0_57 = arith.constant 0 : index
    %176 = vector.load %arg7[%c1, %c0_56, %c0_57] : memref<2x8x128xf32, #tpu.memory_space<vmem>>, vector<1x8x128xf32>
    %177 = vector.shape_cast %176 : vector<1x8x128xf32> to vector<8x128xf32>
    %178 = arith.truncf %175 : vector<16x32xf32> to vector<16x32xbf16>
    %c1_58 = arith.constant 1 : index
    %c0_59 = arith.constant 0 : index
    %c0_60 = arith.constant 0 : index
    %179 = vector.load %arg2[%c1_58, %c0_59, %c0_60] : memref<2x32x128xbf16, #tpu.memory_space<vmem>>, vector<1x32x128xbf16>
    %180 = vector.shape_cast %179 : vector<1x32x128xbf16> to vector<32x128xbf16>
    %cst_61 = arith.constant dense<0.000000e+00> : vector<16x128xf32>
    %181 = tpu.matmul %178, %180, %cst_61 {dimension_numbers = #tpu.dot_dimension_numbers<[1], [0], [0], [1], [0, 0, 1, 1], [], []>} : vector<16x32xbf16>, vector<32x128xbf16>, vector<16x128xf32> -> vector<16x128xf32>
    %182 = vector.extract_strided_slice %177 {offsets = [0, 0], sizes = [1, 128], strides = [1, 1]} : vector<8x128xf32> to vector<1x128xf32>
    %183 = vector.broadcast %182 : vector<1x128xf32> to vector<16x128xf32>
    %184 = arith.addf %181, %183 : vector<16x128xf32>
    %185 = vector.extract_strided_slice %184 {offsets = [0, 0], sizes = [16, 8], strides = [1, 1]} : vector<16x128xf32> to vector<16x8xf32>
    %186 = vector.shape_cast %185 : vector<16x8xf32> to vector<2x8x8xf32>
    %187 = vector.extract_strided_slice %184 {offsets = [0, 32], sizes = [16, 8], strides = [1, 1]} : vector<16x128xf32> to vector<16x8xf32>
    %188 = vector.shape_cast %187 : vector<16x8xf32> to vector<2x8x8xf32>
    %189 = vector.extract_strided_slice %184 {offsets = [0, 64], sizes = [16, 8], strides = [1, 1]} : vector<16x128xf32> to vector<16x8xf32>
    %190 = vector.shape_cast %189 : vector<16x8xf32> to vector<2x8x8xf32>
    "tpu.trace_start"() <{level = 10 : i32, message = "bqd,bkd->bqk"}> : () -> ()
    %cst_62 = arith.constant dense<0.000000e+00> : vector<2x8x8xf32>
    %191 = tpu.matmul %186, %188, %cst_62 {dimension_numbers = #tpu.dot_dimension_numbers<[2], [2], [1], [1], [0, 0, 0, 1, 1, 1], [0], [0]>} : vector<2x8x8xf32>, vector<2x8x8xf32>, vector<2x8x8xf32> -> vector<2x8x8xf32>
    "tpu.trace_stop"() : () -> ()
    %cst_63 = arith.constant 0.353553385 : f32
    %192 = vector.broadcast %cst_63 : f32 to vector<2x8x8xf32>
    %193 = arith.mulf %191, %192 : vector<2x8x8xf32>
    %cst_64 = arith.constant dense<0xFF800000> : vector<2x8xf32>
    %194 = vector.multi_reduction <maximumf>, %193, %cst_64 [2] : vector<2x8x8xf32> to vector<2x8xf32>
    %195 = vector.shape_cast %194 : vector<2x8xf32> to vector<2x8x1xf32>
    %196 = vector.broadcast %195 : vector<2x8x1xf32> to vector<2x8x8xf32>
    %197 = arith.subf %193, %196 : vector<2x8x8xf32>
    %198 = math.exp %197 : vector<2x8x8xf32>
    %cst_65 = arith.constant dense<0.000000e+00> : vector<2x8xf32>
    %199 = vector.multi_reduction <add>, %198, %cst_65 [2] : vector<2x8x8xf32> to vector<2x8xf32>
    %200 = vector.shape_cast %199 : vector<2x8xf32> to vector<2x8x1xf32>
    %201 = tpu.reciprocal %200 {approx = true} : vector<2x8x1xf32> -> vector<2x8x1xf32>
    %202 = vector.broadcast %201 : vector<2x8x1xf32> to vector<2x8x8xf32>
    %203 = arith.mulf %198, %202 : vector<2x8x8xf32>
    "tpu.trace_start"() <{level = 10 : i32, message = "bqk,bkd->bqd"}> : () -> ()
    %cst_66 = arith.constant dense<0.000000e+00> : vector<2x8x8xf32>
    %204 = tpu.matmul %203, %190, %cst_66 {dimension_numbers = #tpu.dot_dimension_numbers<[2], [1], [1], [2], [0, 0, 0, 1, 1, 2], [0], [0]>} : vector<2x8x8xf32>, vector<2x8x8xf32>, vector<2x8x8xf32> -> vector<2x8x8xf32>
    "tpu.trace_stop"() : () -> ()
    %205 = vector.shape_cast %204 : vector<2x8x8xf32> to vector<16x8xf32>
    %206 = vector.extract_strided_slice %184 {offsets = [0, 8], sizes = [16, 8], strides = [1, 1]} : vector<16x128xf32> to vector<16x8xf32>
    %207 = vector.shape_cast %206 : vector<16x8xf32> to vector<2x8x8xf32>
    %208 = vector.extract_strided_slice %184 {offsets = [0, 40], sizes = [16, 8], strides = [1, 1]} : vector<16x128xf32> to vector<16x8xf32>
    %209 = vector.shape_cast %208 : vector<16x8xf32> to vector<2x8x8xf32>
    %210 = vector.extract_strided_slice %184 {offsets = [0, 72], sizes = [16, 8], strides = [1, 1]} : vector<16x128xf32> to vector<16x8xf32>
    %211 = vector.shape_cast %210 : vector<16x8xf32> to vector<2x8x8xf32>
    "tpu.trace_start"() <{level = 10 : i32, message = "bqd,bkd->bqk"}> : () -> ()
    %cst_67 = arith.constant dense<0.000000e+00> : vector<2x8x8xf32>
    %212 = tpu.matmul %207, %209, %cst_67 {dimension_numbers = #tpu.dot_dimension_numbers<[2], [2], [1], [1], [0, 0, 0, 1, 1, 1], [0], [0]>} : vector<2x8x8xf32>, vector<2x8x8xf32>, vector<2x8x8xf32> -> vector<2x8x8xf32>
    "tpu.trace_stop"() : () -> ()
    %cst_68 = arith.constant 0.353553385 : f32
    %213 = vector.broadcast %cst_68 : f32 to vector<2x8x8xf32>
    %214 = arith.mulf %212, %213 : vector<2x8x8xf32>
    %cst_69 = arith.constant dense<0xFF800000> : vector<2x8xf32>
    %215 = vector.multi_reduction <maximumf>, %214, %cst_69 [2] : vector<2x8x8xf32> to vector<2x8xf32>
    %216 = vector.shape_cast %215 : vector<2x8xf32> to vector<2x8x1xf32>
    %217 = vector.broadcast %216 : vector<2x8x1xf32> to vector<2x8x8xf32>
    %218 = arith.subf %214, %217 : vector<2x8x8xf32>
    %219 = math.exp %218 : vector<2x8x8xf32>
    %cst_70 = arith.constant dense<0.000000e+00> : vector<2x8xf32>
    %220 = vector.multi_reduction <add>, %219, %cst_70 [2] : vector<2x8x8xf32> to vector<2x8xf32>
    %221 = vector.shape_cast %220 : vector<2x8xf32> to vector<2x8x1xf32>
    %222 = tpu.reciprocal %221 {approx = true} : vector<2x8x1xf32> -> vector<2x8x1xf32>
    %223 = vector.broadcast %222 : vector<2x8x1xf32> to vector<2x8x8xf32>
    %224 = arith.mulf %219, %223 : vector<2x8x8xf32>
    "tpu.trace_start"() <{level = 10 : i32, message = "bqk,bkd->bqd"}> : () -> ()
    %cst_71 = arith.constant dense<0.000000e+00> : vector<2x8x8xf32>
    %225 = tpu.matmul %224, %211, %cst_71 {dimension_numbers = #tpu.dot_dimension_numbers<[2], [1], [1], [2], [0, 0, 0, 1, 1, 2], [0], [0]>} : vector<2x8x8xf32>, vector<2x8x8xf32>, vector<2x8x8xf32> -> vector<2x8x8xf32>
    "tpu.trace_stop"() : () -> ()
    %226 = vector.shape_cast %225 : vector<2x8x8xf32> to vector<16x8xf32>
    %227 = vector.extract_strided_slice %184 {offsets = [0, 16], sizes = [16, 8], strides = [1, 1]} : vector<16x128xf32> to vector<16x8xf32>
    %228 = vector.shape_cast %227 : vector<16x8xf32> to vector<2x8x8xf32>
    %229 = vector.extract_strided_slice %184 {offsets = [0, 48], sizes = [16, 8], strides = [1, 1]} : vector<16x128xf32> to vector<16x8xf32>
    %230 = vector.shape_cast %229 : vector<16x8xf32> to vector<2x8x8xf32>
    %231 = vector.extract_strided_slice %184 {offsets = [0, 80], sizes = [16, 8], strides = [1, 1]} : vector<16x128xf32> to vector<16x8xf32>
    %232 = vector.shape_cast %231 : vector<16x8xf32> to vector<2x8x8xf32>
    "tpu.trace_start"() <{level = 10 : i32, message = "bqd,bkd->bqk"}> : () -> ()
    %cst_72 = arith.constant dense<0.000000e+00> : vector<2x8x8xf32>
    %233 = tpu.matmul %228, %230, %cst_72 {dimension_numbers = #tpu.dot_dimension_numbers<[2], [2], [1], [1], [0, 0, 0, 1, 1, 1], [0], [0]>} : vector<2x8x8xf32>, vector<2x8x8xf32>, vector<2x8x8xf32> -> vector<2x8x8xf32>
    "tpu.trace_stop"() : () -> ()
    %cst_73 = arith.constant 0.353553385 : f32
    %234 = vector.broadcast %cst_73 : f32 to vector<2x8x8xf32>
    %235 = arith.mulf %233, %234 : vector<2x8x8xf32>
    %cst_74 = arith.constant dense<0xFF800000> : vector<2x8xf32>
    %236 = vector.multi_reduction <maximumf>, %235, %cst_74 [2] : vector<2x8x8xf32> to vector<2x8xf32>
    %237 = vector.shape_cast %236 : vector<2x8xf32> to vector<2x8x1xf32>
    %238 = vector.broadcast %237 : vector<2x8x1xf32> to vector<2x8x8xf32>
    %239 = arith.subf %235, %238 : vector<2x8x8xf32>
    %240 = math.exp %239 : vector<2x8x8xf32>
    %cst_75 = arith.constant dense<0.000000e+00> : vector<2x8xf32>
    %241 = vector.multi_reduction <add>, %240, %cst_75 [2] : vector<2x8x8xf32> to vector<2x8xf32>
    %242 = vector.shape_cast %241 : vector<2x8xf32> to vector<2x8x1xf32>
    %243 = tpu.reciprocal %242 {approx = true} : vector<2x8x1xf32> -> vector<2x8x1xf32>
    %244 = vector.broadcast %243 : vector<2x8x1xf32> to vector<2x8x8xf32>
    %245 = arith.mulf %240, %244 : vector<2x8x8xf32>
    "tpu.trace_start"() <{level = 10 : i32, message = "bqk,bkd->bqd"}> : () -> ()
    %cst_76 = arith.constant dense<0.000000e+00> : vector<2x8x8xf32>
    %246 = tpu.matmul %245, %232, %cst_76 {dimension_numbers = #tpu.dot_dimension_numbers<[2], [1], [1], [2], [0, 0, 0, 1, 1, 2], [0], [0]>} : vector<2x8x8xf32>, vector<2x8x8xf32>, vector<2x8x8xf32> -> vector<2x8x8xf32>
    "tpu.trace_stop"() : () -> ()
    %247 = vector.shape_cast %246 : vector<2x8x8xf32> to vector<16x8xf32>
    %248 = vector.extract_strided_slice %184 {offsets = [0, 24], sizes = [16, 8], strides = [1, 1]} : vector<16x128xf32> to vector<16x8xf32>
    %249 = vector.shape_cast %248 : vector<16x8xf32> to vector<2x8x8xf32>
    %250 = vector.extract_strided_slice %184 {offsets = [0, 56], sizes = [16, 8], strides = [1, 1]} : vector<16x128xf32> to vector<16x8xf32>
    %251 = vector.shape_cast %250 : vector<16x8xf32> to vector<2x8x8xf32>
    %252 = vector.extract_strided_slice %184 {offsets = [0, 88], sizes = [16, 8], strides = [1, 1]} : vector<16x128xf32> to vector<16x8xf32>
    %253 = vector.shape_cast %252 : vector<16x8xf32> to vector<2x8x8xf32>
    "tpu.trace_start"() <{level = 10 : i32, message = "bqd,bkd->bqk"}> : () -> ()
    %cst_77 = arith.constant dense<0.000000e+00> : vector<2x8x8xf32>
    %254 = tpu.matmul %249, %251, %cst_77 {dimension_numbers = #tpu.dot_dimension_numbers<[2], [2], [1], [1], [0, 0, 0, 1, 1, 1], [0], [0]>} : vector<2x8x8xf32>, vector<2x8x8xf32>, vector<2x8x8xf32> -> vector<2x8x8xf32>
    "tpu.trace_stop"() : () -> ()
    %cst_78 = arith.constant 0.353553385 : f32
    %255 = vector.broadcast %cst_78 : f32 to vector<2x8x8xf32>
    %256 = arith.mulf %254, %255 : vector<2x8x8xf32>
    %cst_79 = arith.constant dense<0xFF800000> : vector<2x8xf32>
    %257 = vector.multi_reduction <maximumf>, %256, %cst_79 [2] : vector<2x8x8xf32> to vector<2x8xf32>
    %258 = vector.shape_cast %257 : vector<2x8xf32> to vector<2x8x1xf32>
    %259 = vector.broadcast %258 : vector<2x8x1xf32> to vector<2x8x8xf32>
    %260 = arith.subf %256, %259 : vector<2x8x8xf32>
    %261 = math.exp %260 : vector<2x8x8xf32>
    %cst_80 = arith.constant dense<0.000000e+00> : vector<2x8xf32>
    %262 = vector.multi_reduction <add>, %261, %cst_80 [2] : vector<2x8x8xf32> to vector<2x8xf32>
    %263 = vector.shape_cast %262 : vector<2x8xf32> to vector<2x8x1xf32>
    %264 = tpu.reciprocal %263 {approx = true} : vector<2x8x1xf32> -> vector<2x8x1xf32>
    %265 = vector.broadcast %264 : vector<2x8x1xf32> to vector<2x8x8xf32>
    %266 = arith.mulf %261, %265 : vector<2x8x8xf32>
    "tpu.trace_start"() <{level = 10 : i32, message = "bqk,bkd->bqd"}> : () -> ()
    %cst_81 = arith.constant dense<0.000000e+00> : vector<2x8x8xf32>
    %267 = tpu.matmul %266, %253, %cst_81 {dimension_numbers = #tpu.dot_dimension_numbers<[2], [1], [1], [2], [0, 0, 0, 1, 1, 2], [0], [0]>} : vector<2x8x8xf32>, vector<2x8x8xf32>, vector<2x8x8xf32> -> vector<2x8x8xf32>
    "tpu.trace_stop"() : () -> ()
    %268 = vector.shape_cast %267 : vector<2x8x8xf32> to vector<16x8xf32>
    %269 = tpu.concatenate %205, %226, %247, %268 in 1 : vector<16x8xf32>, vector<16x8xf32>, vector<16x8xf32>, vector<16x8xf32> -> vector<16x32xf32>
    %270 = arith.truncf %269 : vector<16x32xf32> to vector<16x32xbf16>
    %c1_82 = arith.constant 1 : index
    %c0_83 = arith.constant 0 : index
    %c0_84 = arith.constant 0 : index
    %271 = vector.load %arg3[%c1_82, %c0_83, %c0_84] : memref<2x32x32xbf16, #tpu.memory_space<vmem>>, vector<1x32x32xbf16>
    %272 = vector.shape_cast %271 : vector<1x32x32xbf16> to vector<32x32xbf16>
    %cst_85 = arith.constant dense<0.000000e+00> : vector<16x32xf32>
    %273 = tpu.matmul %270, %272, %cst_85 {dimension_numbers = #tpu.dot_dimension_numbers<[1], [0], [0], [1], [0, 0, 1, 1], [], []>} : vector<16x32xbf16>, vector<32x32xbf16>, vector<16x32xf32> -> vector<16x32xf32>
    %274 = vector.extract_strided_slice %177 {offsets = [1, 0], sizes = [1, 32], strides = [1, 1]} : vector<8x128xf32> to vector<1x32xf32>
    %275 = vector.broadcast %274 : vector<1x32xf32> to vector<16x32xf32>
    %276 = arith.addf %273, %275 : vector<16x32xf32>
    %277 = arith.addf %175, %276 : vector<16x32xf32>
    %278 = vector.extract_strided_slice %177 {offsets = [2, 0], sizes = [1, 32], strides = [1, 1]} : vector<8x128xf32> to vector<1x32xf32>
    %279 = vector.extract_strided_slice %177 {offsets = [3, 0], sizes = [1, 32], strides = [1, 1]} : vector<8x128xf32> to vector<1x32xf32>
    %cst_86 = arith.constant dense<0.000000e+00> : vector<16xf32>
    %280 = vector.multi_reduction <add>, %277, %cst_86 [1] : vector<16x32xf32> to vector<16xf32>
    %281 = vector.shape_cast %280 : vector<16xf32> to vector<16x1xf32>
    %cst_87 = arith.constant 3.200000e+01 : f32
    %282 = vector.broadcast %cst_87 : f32 to vector<16x1xf32>
    %283 = arith.divf %281, %282 : vector<16x1xf32>
    %284 = vector.broadcast %283 : vector<16x1xf32> to vector<16x32xf32>
    %285 = arith.subf %277, %284 : vector<16x32xf32>
    %286 = arith.mulf %285, %285 : vector<16x32xf32>
    %cst_88 = arith.constant dense<0.000000e+00> : vector<16xf32>
    %287 = vector.multi_reduction <add>, %286, %cst_88 [1] : vector<16x32xf32> to vector<16xf32>
    %288 = vector.shape_cast %287 : vector<16xf32> to vector<16x1xf32>
    %cst_89 = arith.constant 3.200000e+01 : f32
    %289 = vector.broadcast %cst_89 : f32 to vector<16x1xf32>
    %290 = arith.divf %288, %289 : vector<16x1xf32>
    %291 = vector.broadcast %283 : vector<16x1xf32> to vector<16x32xf32>
    %292 = arith.subf %277, %291 : vector<16x32xf32>
    %cst_90 = arith.constant 9.99999974E-6 : f32
    %293 = vector.broadcast %cst_90 : f32 to vector<16x1xf32>
    %294 = arith.addf %290, %293 : vector<16x1xf32>
    %295 = math.rsqrt %294 : vector<16x1xf32>
    %296 = vector.broadcast %295 : vector<16x1xf32> to vector<16x32xf32>
    %297 = arith.mulf %292, %296 : vector<16x32xf32>
    %298 = vector.broadcast %278 : vector<1x32xf32> to vector<16x32xf32>
    %299 = arith.mulf %297, %298 : vector<16x32xf32>
    %300 = vector.broadcast %279 : vector<1x32xf32> to vector<16x32xf32>
    %301 = arith.addf %299, %300 : vector<16x32xf32>
    %302 = arith.truncf %301 : vector<16x32xf32> to vector<16x32xbf16>
    %c1_91 = arith.constant 1 : index
    %c0_92 = arith.constant 0 : index
    %c0_93 = arith.constant 0 : index
    %303 = vector.load %arg4[%c1_91, %c0_92, %c0_93] : memref<2x32x2048xbf16, #tpu.memory_space<vmem>>, vector<1x32x2048xbf16>
    %304 = vector.shape_cast %303 : vector<1x32x2048xbf16> to vector<32x2048xbf16>
    %cst_94 = arith.constant dense<0.000000e+00> : vector<16x2048xf32>
    %305 = tpu.matmul %302, %304, %cst_94 {dimension_numbers = #tpu.dot_dimension_numbers<[1], [0], [0], [1], [0, 0, 1, 1], [], []>} : vector<16x32xbf16>, vector<32x2048xbf16>, vector<16x2048xf32> -> vector<16x2048xf32>
    %c1_95 = arith.constant 1 : index
    %c0_96 = arith.constant 0 : index
    %c0_97 = arith.constant 0 : index
    %306 = vector.load %arg5[%c1_95, %c0_96, %c0_97] : memref<2x1x2048xf32, #tpu.memory_space<vmem>>, vector<1x1x2048xf32>
    %307 = vector.shape_cast %306 : vector<1x1x2048xf32> to vector<1x2048xf32>
    %308 = vector.broadcast %307 : vector<1x2048xf32> to vector<16x2048xf32>
    %309 = arith.addf %305, %308 : vector<16x2048xf32>
    %cst_98 = arith.constant 0.000000e+00 : f32
    %310 = vector.broadcast %cst_98 : f32 to vector<16x2048xf32>
    %311 = arith.maximumf %309, %310 : vector<16x2048xf32>
    %312 = arith.truncf %311 : vector<16x2048xf32> to vector<16x2048xbf16>
    %c1_99 = arith.constant 1 : index
    %c0_100 = arith.constant 0 : index
    %c0_101 = arith.constant 0 : index
    %313 = vector.load %arg6[%c1_99, %c0_100, %c0_101] : memref<2x32x2048xbf16, #tpu.memory_space<vmem>>, vector<1x32x2048xbf16>
    %314 = vector.shape_cast %313 : vector<1x32x2048xbf16> to vector<32x2048xbf16>
    %cst_102 = arith.constant dense<0.000000e+00> : vector<16x32xf32>
    %315 = tpu.matmul %312, %314, %cst_102 {dimension_numbers = #tpu.dot_dimension_numbers<[1], [1], [0], [0], [0, 0, 1, 0], [], []>} : vector<16x2048xbf16>, vector<32x2048xbf16>, vector<16x32xf32> -> vector<16x32xf32>
    %316 = vector.extract_strided_slice %177 {offsets = [4, 0], sizes = [1, 32], strides = [1, 1]} : vector<8x128xf32> to vector<1x32xf32>
    %317 = vector.broadcast %316 : vector<1x32xf32> to vector<16x32xf32>
    %318 = arith.addf %315, %317 : vector<16x32xf32>
    %319 = arith.addf %301, %318 : vector<16x32xf32>
    %320 = vector.extract_strided_slice %177 {offsets = [5, 0], sizes = [1, 32], strides = [1, 1]} : vector<8x128xf32> to vector<1x32xf32>
    %321 = vector.extract_strided_slice %177 {offsets = [6, 0], sizes = [1, 32], strides = [1, 1]} : vector<8x128xf32> to vector<1x32xf32>
    %cst_103 = arith.constant dense<0.000000e+00> : vector<16xf32>
    %322 = vector.multi_reduction <add>, %319, %cst_103 [1] : vector<16x32xf32> to vector<16xf32>
    %323 = vector.shape_cast %322 : vector<16xf32> to vector<16x1xf32>
    %cst_104 = arith.constant 3.200000e+01 : f32
    %324 = vector.broadcast %cst_104 : f32 to vector<16x1xf32>
    %325 = arith.divf %323, %324 : vector<16x1xf32>
    %326 = vector.broadcast %325 : vector<16x1xf32> to vector<16x32xf32>
    %327 = arith.subf %319, %326 : vector<16x32xf32>
    %328 = arith.mulf %327, %327 : vector<16x32xf32>
    %cst_105 = arith.constant dense<0.000000e+00> : vector<16xf32>
    %329 = vector.multi_reduction <add>, %328, %cst_105 [1] : vector<16x32xf32> to vector<16xf32>
    %330 = vector.shape_cast %329 : vector<16xf32> to vector<16x1xf32>
    %cst_106 = arith.constant 3.200000e+01 : f32
    %331 = vector.broadcast %cst_106 : f32 to vector<16x1xf32>
    %332 = arith.divf %330, %331 : vector<16x1xf32>
    %333 = vector.broadcast %325 : vector<16x1xf32> to vector<16x32xf32>
    %334 = arith.subf %319, %333 : vector<16x32xf32>
    %cst_107 = arith.constant 9.99999974E-6 : f32
    %335 = vector.broadcast %cst_107 : f32 to vector<16x1xf32>
    %336 = arith.addf %332, %335 : vector<16x1xf32>
    %337 = math.rsqrt %336 : vector<16x1xf32>
    %338 = vector.broadcast %337 : vector<16x1xf32> to vector<16x32xf32>
    %339 = arith.mulf %334, %338 : vector<16x32xf32>
    %340 = vector.broadcast %320 : vector<1x32xf32> to vector<16x32xf32>
    %341 = arith.mulf %339, %340 : vector<16x32xf32>
    %342 = vector.broadcast %321 : vector<1x32xf32> to vector<16x32xf32>
    %343 = arith.addf %341, %342 : vector<16x32xf32>
    %344 = arith.truncf %343 : vector<16x32xf32> to vector<16x32xbf16>
    %c0_108 = arith.constant 0 : index
    %c0_109 = arith.constant 0 : index
    %345 = vector.load %arg8[%c0_108, %c0_109] : memref<32x128xbf16, #tpu.memory_space<vmem>>, vector<32x128xbf16>
    %cst_110 = arith.constant dense<0.000000e+00> : vector<16x128xf32>
    %346 = tpu.matmul %344, %345, %cst_110 {dimension_numbers = #tpu.dot_dimension_numbers<[1], [0], [0], [1], [0, 0, 1, 1], [], []>} : vector<16x32xbf16>, vector<32x128xbf16>, vector<16x128xf32> -> vector<16x128xf32>
    %c0_111 = arith.constant 0 : index
    %c0_112 = arith.constant 0 : index
    %347 = vector.load %arg9[%c0_111, %c0_112] : memref<1x128xf32, #tpu.memory_space<vmem>>, vector<1x128xf32>
    %348 = vector.broadcast %347 : vector<1x128xf32> to vector<16x128xf32>
    %349 = arith.addf %346, %348 : vector<16x128xf32>
    %350 = vector.shape_cast %349 : vector<16x128xf32> to vector<2x8x128xf32>
    %c0_113 = arith.constant 0 : index
    %c0_114 = arith.constant 0 : index
    %c0_115 = arith.constant 0 : index
    %351 = vector.load %arg10[%c0_113, %c0_114, %c0_115] : memref<2x8x128xf32, #tpu.memory_space<vmem>>, vector<2x8x128xf32>
    tpu.vector_store %arg10[%c0_113, %c0_114, %c0_115], %350 {strides = array<i32>} : memref<2x8x128xf32, #tpu.memory_space<vmem>>, vector<2x8x128xf32>,
    return
  }
}

</mosaic_0001>

<llo_original>
// kernel: mf_bert_hybrid_forward.1
$region0: #{mf_bert_hybrid_forward.1}
  #allocation0 [shape = 'u32[]', space=smem, size = 0x4, offset = 0x4, fixed_abs, tag = 'smem constant byte address 0x4 - core index']
  #allocation1 [shape = 'u32[144,128]{1,0:T(1,128)}', space=vmem, size = 0x12000, scoped, tag = 'internal scratch']
  %s0 = inlined_call_operand.vmem [shape: s32[16,1], index: 0, kind: input, shape index: {}]
  %s1 = inlined_call_operand.vmem [shape: f32[128,32], index: 1, kind: input, shape index: {}]
  %s2 = inlined_call_operand.vmem [shape: bf16[2,32,128], index: 2, kind: input, shape index: {}]
  %s3 = inlined_call_operand.vmem [shape: bf16[2,32,32], index: 3, kind: input, shape index: {}]
  %s4 = inlined_call_operand.hbm [shape: bf16[2,32,2048], index: 4, kind: input, shape index: {}]
  %s5 = inlined_call_operand.vmem [shape: f32[2,1,2048], index: 5, kind: input, shape index: {}]
  %s6 = inlined_call_operand.hbm [shape: bf16[2,32,2048], index: 6, kind: input, shape index: {}]
  %s7 = inlined_call_operand.vmem [shape: f32[2,8,128], index: 7, kind: input, shape index: {}]
  %s8 = inlined_call_operand.vmem [shape: bf16[32,128], index: 8, kind: input, shape index: {}]
  %s9 = inlined_call_operand.vmem [shape: f32[1,128], index: 9, kind: input, shape index: {}]
  %s10 = inlined_call_operand.hbm [shape: f32[2,8,128], index: 10, kind: output, shape index: {}]
  %s11 = sld [smem:[#allocation0]]
  $region58: #{mf_bert_hybrid_forward.1} parent=0
    _
  %s13 = ssub.s32 1, %s11
  %s14 = scalar_select 0, %s13, %s11
  $region1: #{mf_bert_hybrid_forward.1} parent=0
    #allocation2 [shape = 'u8[262144]{0}', space=vmem, size = 0x40000, scoped, tag = 'input window, operand 4, single buffered']
    #allocation3 [shape = 's32[1]{0}', space=sflag, size = 0x4, scoped, tag = 'scoped memory for mf_bert_hybrid_forward.1']
    #allocation4 [shape = 's32[1]{0}', space=sflag, size = 0x4, scoped, tag = 'scoped memory for mf_bert_hybrid_forward.1']
    #allocation5 [shape = 'u8[262144]{0}', space=vmem, size = 0x40000, scoped, tag = 'input window, operand 6, single buffered']
    #allocation6 [shape = 's32[1]{0}', space=sflag, size = 0x4, scoped, tag = 'scoped memory for mf_bert_hybrid_forward.1']
    #allocation7 [shape = 'u8[8192]{0}', space=vmem, size = 0x2000, scoped, tag = 'output window, operand 0, single buffered']
    %15 = vsyncpa [#allocation3], 0
    %16 = vsyncpa [#allocation6], 0
    %17 = vsyncpa [#allocation4], 0
    // Predicated region
    $region2: #{mf_bert_hybrid_forward.1} parent=1 // pred_check
      _
    $region3: #{mf_bert_hybrid_forward.1} parent=1 // pred_check_branch
      %19 = sbr.rel (0) target = $region5
    $region4: #{mf_bert_hybrid_forward.1} parent=1 // pred_region
      _
    $region5: #{mf_bert_hybrid_forward.1} parent=1 // pred_fallthru
      _
    // Predicated region
    $region6: #{mf_bert_hybrid_forward.1} parent=1 // pred_check
      _
    $region7: #{mf_bert_hybrid_forward.1} parent=1 // pred_check_branch
      %21 = sbr.rel (0) target = $region9
    $region8: #{mf_bert_hybrid_forward.1} parent=1 // pred_region
      _
    $region9: #{mf_bert_hybrid_forward.1} parent=1 // pred_fallthru
      _
    // Predicated region
    $region10: #{mf_bert_hybrid_forward.1} parent=1 // pred_check
      _
    $region11: #{mf_bert_hybrid_forward.1} parent=1 // pred_check_branch
      %23 = sbr.rel (0) target = $region13
    $region12: #{mf_bert_hybrid_forward.1} parent=1 // pred_region
      _
    $region13: #{mf_bert_hybrid_forward.1} parent=1 // pred_fallthru
      _
    // Predicated region
    $region14: #{mf_bert_hybrid_forward.1} parent=1 // pred_check
      _
    $region15: #{mf_bert_hybrid_forward.1} parent=1 // pred_check_branch
      %25 = sbr.rel (0) target = $region17
    $region16: #{mf_bert_hybrid_forward.1} parent=1 // pred_region
      _
    $region17: #{mf_bert_hybrid_forward.1} parent=1 // pred_fallthru
      _
    // Predicated region
    $region18: #{mf_bert_hybrid_forward.1} parent=1 // pred_check
      _
    $region19: #{mf_bert_hybrid_forward.1} parent=1 // pred_check_branch
      %27 = sbr.rel (0) target = $region21
    $region20: #{mf_bert_hybrid_forward.1} parent=1 // pred_region
      %s29 = ssub.s32 8192, 8192
      %30 = vsyncadd [#allocation3], %s29
      %s31 = sshll.u32 [#allocation2], 4
      %s32 = int_to_ptr.vmem [resolvable:$true] %s31
      %37 = dma.hbm_to_vmem [thread:$0]  %s4, 8192, %s32, [#allocation3], 1024, 1024, 64
    $region21: #{mf_bert_hybrid_forward.1} parent=1 // pred_fallthru
      _
    // Predicated region
    $region22: #{mf_bert_hybrid_forward.1} parent=1 // pred_check
      _
    $region23: #{mf_bert_hybrid_forward.1} parent=1 // pred_check_branch
      %39 = sbr.rel (0) target = $region25
    $region24: #{mf_bert_hybrid_forward.1} parent=1 // pred_region
      _
    $region25: #{mf_bert_hybrid_forward.1} parent=1 // pred_fallthru
      _
    // Predicated region
    $region26: #{mf_bert_hybrid_forward.1} parent=1 // pred_check
      _
    $region27: #{mf_bert_hybrid_forward.1} parent=1 // pred_check_branch
      %41 = sbr.rel (0) target = $region29
    $region28: #{mf_bert_hybrid_forward.1} parent=1 // pred_region
      %s43 = ssub.s32 8192, 8192
      %44 = vsyncadd [#allocation6], %s43
      %s45 = sshll.u32 [#allocation5], 4
      %s46 = int_to_ptr.vmem [resolvable:$true] %s45
      %51 = dma.hbm_to_vmem [thread:$0]  %s6, 8192, %s46, [#allocation6], 1024, 1024, 64
    $region29: #{mf_bert_hybrid_forward.1} parent=1 // pred_fallthru
      _
    // Predicated region
    $region30: #{mf_bert_hybrid_forward.1} parent=1 // pred_check
      _
    $region31: #{mf_bert_hybrid_forward.1} parent=1 // pred_check_branch
      %53 = sbr.rel (0) target = $region33
    $region32: #{mf_bert_hybrid_forward.1} parent=1 // pred_region
      _
    $region33: #{mf_bert_hybrid_forward.1} parent=1 // pred_fallthru
      _
    // Predicated region
    $region34: #{mf_bert_hybrid_forward.1} parent=1 // pred_check
      _
    $region35: #{mf_bert_hybrid_forward.1} parent=1 // pred_check_branch
      %55 = sbr.rel (0) target = $region37
    $region36: #{mf_bert_hybrid_forward.1} parent=1 // pred_region
      _
    $region37: #{mf_bert_hybrid_forward.1} parent=1 // pred_fallthru
      _
    // Predicated region
    $region38: #{mf_bert_hybrid_forward.1} parent=1 // pred_check
      _
    $region39: #{mf_bert_hybrid_forward.1} parent=1 // pred_check_branch
      %57 = sbr.rel (0) target = $region41
    $region40: #{mf_bert_hybrid_forward.1} parent=1 // pred_region
      _
    $region41: #{mf_bert_hybrid_forward.1} parent=1 // pred_fallthru
      _
    // Predicated region
    $region42: #{mf_bert_hybrid_forward.1} parent=1 // pred_check
      _
    $region43: #{mf_bert_hybrid_forward.1} parent=1 // pred_check_branch
      %59 = sbr.rel (0) target = $region45
    $region44: #{mf_bert_hybrid_forward.1} parent=1 // pred_region
      %60 = dma.done [#allocation3], 8192
    $region45: #{mf_bert_hybrid_forward.1} parent=1 // pred_fallthru
      _
    // Predicated region
    $region46: #{mf_bert_hybrid_forward.1} parent=1 // pred_check
      _
    $region47: #{mf_bert_hybrid_forward.1} parent=1 // pred_check_branch
      %62 = sbr.rel (0) target = $region49
    $region48: #{mf_bert_hybrid_forward.1} parent=1 // pred_region
      %63 = dma.done [#allocation6], 8192
    $region49: #{mf_bert_hybrid_forward.1} parent=1 // pred_fallthru
      _
    %v65 = vlaneseq
    %v66 = vand.u32 %v65, 127
    %v67 = vld [vmem:[%s0] sm:$0xff]
    %v68 = vld [vmem:[%s0 + $0x8] sm:$0xff]
    %69 = vset.pattern.permute.xlu0 0
    %70 = vperm.xlu0 %69, %v67
    %v71 = vpop.permute.xlu0 %70
    %72 = vset.pattern.permute.xlu0 0
    %73 = vperm.xlu0 %72, %v68
    %v74 = vpop.permute.xlu0 %73
    %vm75 = vcmp.eq.s32.totalorder %v71, %v66
    %vm76 = vcmp.eq.s32.totalorder %v74, %v66
    %v77 = vsel %vm75, 1, 0
    %v78 = vsel %vm76, 1, 0
    %v79 = vcvt.s32.f32 %v77
    %v80 = vcvt.s32.f32 %v78
    %v81 = vld [vmem:[%s1] sm:$0xff]
    %v82 = vld [vmem:[%s1 + $0x8] sm:$0xff]
    %v83 = vld [vmem:[%s1 + $0x10] sm:$0xff]
    %v84 = vld [vmem:[%s1 + $0x18] sm:$0xff]
    %v85 = vld [vmem:[%s1 + $0x20] sm:$0xff]
    %v86 = vld [vmem:[%s1 + $0x28] sm:$0xff]
    %v87 = vld [vmem:[%s1 + $0x30] sm:$0xff]
    %v88 = vld [vmem:[%s1 + $0x38] sm:$0xff]
    %v89 = vld [vmem:[%s1 + $0x40] sm:$0xff]
    %v90 = vld [vmem:[%s1 + $0x48] sm:$0xff]
    %v91 = vld [vmem:[%s1 + $0x50] sm:$0xff]
    %v92 = vld [vmem:[%s1 + $0x58] sm:$0xff]
    %v93 = vld [vmem:[%s1 + $0x60] sm:$0xff]
    %v94 = vld [vmem:[%s1 + $0x68] sm:$0xff]
    %v95 = vld [vmem:[%s1 + $0x70] sm:$0xff]
    %v96 = vld [vmem:[%s1 + $0x78] sm:$0xff]
    %97 = vmatprep.subr.mxu0 0.0
    %98 = vmatpush1.msra.mxu0 %v81
    %99 = vmatprep.subr.mxu0 0.0
    %100 = vmatpush1.msra.mxu0 %v82
    %101 = vmatprep.subr.mxu0 0.0
    %102 = vmatpush1.msra.mxu0 %v83
    %103 = vmatprep.subr.mxu0 0.0
    %104 = vmatpush1.msra.mxu0 %v84
    %105 = vmatprep.subr.mxu0 0.0
    %106 = vmatpush1.msra.mxu0 %v85
    %107 = vmatprep.subr.mxu0 0.0
    %108 = vmatpush1.msra.mxu0 %v86
    %109 = vmatprep.subr.mxu0 0.0
    %110 = vmatpush1.msra.mxu0 %v87
    %111 = vmatprep.subr.mxu0 0.0
    %112 = vmatpush1.msra.mxu0 %v88
    %113 = vmatprep.subr.mxu0 0.0
    %114 = vmatpush1.msra.mxu0 %v89
    %115 = vmatprep.subr.mxu0 0.0
    %116 = vmatpush1.msra.mxu0 %v90
    %117 = vmatprep.subr.mxu0 0.0
    %118 = vmatpush1.msra.mxu0 %v91
    %119 = vmatprep.subr.mxu0 0.0
    %120 = vmatpush1.msra.mxu0 %v92
    %121 = vmatprep.subr.mxu0 0.0
    %122 = vmatpush1.msra.mxu0 %v93
    %123 = vmatprep.subr.mxu0 0.0
    %124 = vmatpush1.msra.mxu0 %v94
    %125 = vmatprep.subr.mxu0 0.0
    %126 = vmatpush1.msra.mxu0 %v95
    %127 = vmatprep.subr.mxu0 0.0
    %128 = vmatpush1.msra.mxu0 %v96
    %129 = vmatprep.subr.mxu0 0.0
    %130 = vmatpush1.msra.mxu0 0.0
    %131 = vmatprep.subr.mxu0 0.0
    %132 = vmatpush1.msra.mxu0 0.0
    %133 = vmatprep.subr.mxu0 0.0
    %134 = vmatpush1.msra.mxu0 0.0
    %135 = vmatprep.subr.mxu0 0.0
    %136 = vmatpush1.msra.mxu0 0.0
    %137 = vmatprep.subr.mxu0 0.0
    %138 = vmatpush1.msra.mxu0 0.0
    %139 = vmatprep.subr.mxu0 0.0
    %140 = vmatpush1.msra.mxu0 0.0
    %141 = vmatprep.subr.mxu0 0.0
    %142 = vmatpush1.msra.mxu0 0.0
    %143 = vmatprep.subr.mxu0 0.0
    %144 = vmatpush1.msra.mxu0 0.0
    %145 = vmatprep.subr.mxu0 0.0
    %146 = vmatpush1.msra.mxu0 0.0
    %147 = vmatprep.subr.mxu0 0.0
    %148 = vmatpush1.msra.mxu0 0.0
    %149 = vmatprep.subr.mxu0 0.0
    %150 = vmatpush1.msra.mxu0 0.0
    %151 = vmatprep.subr.mxu0 0.0
    %152 = vmatpush1.msra.mxu0 0.0
    %153 = vmatprep.subr.mxu0 0.0
    %154 = vmatpush1.msra.mxu0 0.0
    %155 = vmatprep.subr.mxu0 0.0
    %156 = vmatpush1.msra.mxu0 0.0
    %157 = vmatprep.subr.mxu0 0.0
    %158 = vmatpush1.msra.mxu0 0.0
    %159 = vmatprep.subr.mxu0 0.0
    %160 = vmatpush1.msra.mxu0 0.0
    %161 = vmatprep.mubr.f32.mxu0 0.0
    %162 = vmatmul.mubr.f32.gmra.mrb[0].mxu0 %v79
    %v163 = vpop.f32.mrb[0].mxu0
    %v164 = vadd.f32 0.0, %v163
    %v165 = vpop.f32.mrb[0].mxu0
    %166 = vmatprep.mubr.f32.mxu0 0.0
    %167 = vmatmul.mubr.f32.gmra.mrb[0].mxu0 %v80
    %v168 = vpop.f32.mrb[0].mxu0
    %v169 = vadd.f32 0.0, %v168
    %v170 = vpop.f32.mrb[0].mxu0
    %171 = vdwg.mxu0
    %v172 = vld [vmem:[%s7] sm:$0xff]
    %v173 = vpack.c.bf16 %v169, %v164
    %v174 = vld [vmem:[%s2] sm:$0xf]
    %v175 = vld [vmem:[%s2 + $0x4] sm:$0xf]
    %v176 = vld [vmem:[%s2 + $0x8] sm:$0xf]
    %v177 = vld [vmem:[%s2 + $0xc] sm:$0xf]
    %v178 = vlaneseq
    %v179 = vshrl.u32 %v178, 7
    %v180 = vsub.s32 0, %v179
    %v181 = vrot.slane %v172, %v180
    %v186 = vunpack.c.l.b16 %v174
    %v187 = vunpack.c.l.b16 %v175
    %v188 = vunpack.c.l.b16 %v176
    %v189 = vunpack.c.l.b16 %v177
    %v190 = vpack.c.b16 %v187, %v186
    %v191 = vpack.c.b16 %v189, %v188
    %vm194 = vcmask 261120
    %v196 = vsel %vm194, %v173, 0
    %198 = vmatprep.subr.bf16.mxu0 0
    %199 = vmatpush1.bf16.msra.mxu0 %v190
    %200 = vmatprep.subr.bf16.mxu0 0
    %201 = vmatpush1.bf16.msra.mxu0 %v191
    %202 = vmatprep.subr.bf16.mxu0 0
    %203 = vmatpush1.bf16.msra.mxu0 0
    %204 = vmatprep.subr.bf16.mxu0 0
    %205 = vmatpush1.bf16.msra.mxu0 0
    %206 = vmatprep.subr.bf16.mxu0 0
    %207 = vmatpush1.bf16.msra.mxu0 0
    %208 = vmatprep.subr.bf16.mxu0 0
    %209 = vmatpush1.bf16.msra.mxu0 0
    %210 = vmatprep.subr.bf16.mxu0 0
    %211 = vmatpush1.bf16.msra.mxu0 0
    %212 = vmatprep.subr.bf16.mxu0 0
    %213 = vmatpush1.bf16.msra.mxu0 0
    %214 = vmatprep.subr.bf16.mxu0 0
    %215 = vmatpush1.bf16.msra.mxu0 0
    %216 = vmatprep.subr.bf16.mxu0 0
    %217 = vmatpush1.bf16.msra.mxu0 0
    %218 = vmatprep.subr.bf16.mxu0 0
    %219 = vmatpush1.bf16.msra.mxu0 0
    %220 = vmatprep.subr.bf16.mxu0 0
    %221 = vmatpush1.bf16.msra.mxu0 0
    %222 = vmatprep.subr.bf16.mxu0 0
    %223 = vmatpush1.bf16.msra.mxu0 0
    %224 = vmatprep.subr.bf16.mxu0 0
    %225 = vmatpush1.bf16.msra.mxu0 0
    %226 = vmatprep.subr.bf16.mxu0 0
    %227 = vmatpush1.bf16.msra.mxu0 0
    %228 = vmatprep.subr.bf16.mxu0 0
    %229 = vmatpush1.bf16.msra.mxu0 0
    %230 = vmatprep.mubr.bf16.mxu0 0
    %231 = vmatmul.mubr.bf16.gmra.mrb[0].mxu0 %v196
    %v232 = vpop.f32.mrb[0].mxu0
    %v233 = vadd.f32 %v181, %v232
    %v234 = vpop.f32.mrb[0].mxu0
    %v235 = vpop.f32.mrb[0].mxu0
    %v236 = vadd.f32 %v181, %v235
    %v237 = vpop.f32.mrb[0].mxu0
    %238 = vdwg.mxu0
    %240 = vrot.lane.b32.xlu0 %v233, 96
    %v241 = vpop.permute.xlu0 %240
    %vm242 = vcmask 64512
    %v243 = vsel %vm242, %v233, 0
    %v245 = vsel %vm242, %v241, 0
    %247 = vmatprep.subr.mxu0 0.0
    %248 = vmatpush1.xpose.msra.mxu0 %v245
    %249 = vmatprep.subr.mxu0 0.0
    %250 = vmatpush1.xpose.msra.mxu0 0.0
    %251 = vmatprep.subr.mxu0 0.0
    %252 = vmatpush1.xpose.msra.mxu0 0.0
    %253 = vmatprep.subr.mxu0 0.0
    %254 = vmatpush1.xpose.msra.mxu0 0.0
    %255 = vmatprep.subr.mxu0 0.0
    %256 = vmatpush1.xpose.msra.mxu0 0.0
    %257 = vmatprep.subr.mxu0 0.0
    %258 = vmatpush1.xpose.msra.mxu0 0.0
    %259 = vmatprep.subr.mxu0 0.0
    %260 = vmatpush1.xpose.msra.mxu0 0.0
    %261 = vmatprep.subr.mxu0 0.0
    %262 = vmatpush1.xpose.msra.mxu0 0.0
    %263 = vmatprep.subr.mxu0 0.0
    %264 = vmatpush1.xpose.msra.mxu0 0.0
    %265 = vmatprep.subr.mxu0 0.0
    %266 = vmatpush1.xpose.msra.mxu0 0.0
    %267 = vmatprep.subr.mxu0 0.0
    %268 = vmatpush1.xpose.msra.mxu0 0.0
    %269 = vmatprep.subr.mxu0 0.0
    %270 = vmatpush1.xpose.msra.mxu0 0.0
    %271 = vmatprep.subr.mxu0 0.0
    %272 = vmatpush1.xpose.msra.mxu0 0.0
    %273 = vmatprep.subr.mxu0 0.0
    %274 = vmatpush1.xpose.msra.mxu0 0.0
    %275 = vmatprep.subr.mxu0 0.0
    %276 = vmatpush1.xpose.msra.mxu0 0.0
    %277 = vmatprep.subr.mxu0 0.0
    %278 = vmatpush1.xpose.msra.mxu0 0.0
    %279 = vmatprep.subr.mxu0 0.0
    %280 = vmatpush1.xpose.msra.mxu0 0.0
    %281 = vmatprep.subr.mxu0 0.0
    %282 = vmatpush1.xpose.msra.mxu0 0.0
    %283 = vmatprep.subr.mxu0 0.0
    %284 = vmatpush1.xpose.msra.mxu0 0.0
    %285 = vmatprep.subr.mxu0 0.0
    %286 = vmatpush1.xpose.msra.mxu0 0.0
    %287 = vmatprep.subr.mxu0 0.0
    %288 = vmatpush1.xpose.msra.mxu0 0.0
    %289 = vmatprep.subr.mxu0 0.0
    %290 = vmatpush1.xpose.msra.mxu0 0.0
    %291 = vmatprep.subr.mxu0 0.0
    %292 = vmatpush1.xpose.msra.mxu0 0.0
    %293 = vmatprep.subr.mxu0 0.0
    %294 = vmatpush1.xpose.msra.mxu0 0.0
    %295 = vmatprep.subr.mxu0 0.0
    %296 = vmatpush1.xpose.msra.mxu0 0.0
    %297 = vmatprep.subr.mxu0 0.0
    %298 = vmatpush1.xpose.msra.mxu0 0.0
    %299 = vmatprep.subr.mxu0 0.0
    %300 = vmatpush1.xpose.msra.mxu0 0.0
    %301 = vmatprep.subr.mxu0 0.0
    %302 = vmatpush1.xpose.msra.mxu0 0.0
    %303 = vmatprep.subr.mxu0 0.0
    %304 = vmatpush1.xpose.msra.mxu0 0.0
    %305 = vmatprep.subr.mxu0 0.0
    %306 = vmatpush1.xpose.msra.mxu0 0.0
    %307 = vmatprep.subr.mxu0 0.0
    %308 = vmatpush1.xpose.msra.mxu0 0.0
    %309 = vmatprep.subr.mxu0 0.0
    %310 = vmatpush1.xpose.msra.mxu0 0.0
    %311 = vmatprep.mubr.f32.mxu0 0.0
    %312 = vmatmul.mubr.f32.gmra.mrb[0].mxu0 %v243
    %v313 = vpop.f32.mrb[0].mxu0
    %v314 = vadd.f32 0.0, %v313
    %v315 = vpop.f32.mrb[0].mxu0
    %316 = vdwg.mxu0
    %318 = vrot.lane.b32.xlu0 %v236, 96
    %v319 = vpop.permute.xlu0 %318
    %v320 = vsel %vm242, %v236, 0
    %v322 = vsel %vm242, %v319, 0
    %324 = vmatprep.subr.mxu0 0.0
    %325 = vmatpush1.xpose.msra.mxu0 %v322
    %326 = vmatprep.subr.mxu0 0.0
    %327 = vmatpush1.xpose.msra.mxu0 0.0
    %328 = vmatprep.subr.mxu0 0.0
    %329 = vmatpush1.xpose.msra.mxu0 0.0
    %330 = vmatprep.subr.mxu0 0.0
    %331 = vmatpush1.xpose.msra.mxu0 0.0
    %332 = vmatprep.subr.mxu0 0.0
    %333 = vmatpush1.xpose.msra.mxu0 0.0
    %334 = vmatprep.subr.mxu0 0.0
    %335 = vmatpush1.xpose.msra.mxu0 0.0
    %336 = vmatprep.subr.mxu0 0.0
    %337 = vmatpush1.xpose.msra.mxu0 0.0
    %338 = vmatprep.subr.mxu0 0.0
    %339 = vmatpush1.xpose.msra.mxu0 0.0
    %340 = vmatprep.subr.mxu0 0.0
    %341 = vmatpush1.xpose.msra.mxu0 0.0
    %342 = vmatprep.subr.mxu0 0.0
    %343 = vmatpush1.xpose.msra.mxu0 0.0
    %344 = vmatprep.subr.mxu0 0.0
    %345 = vmatpush1.xpose.msra.mxu0 0.0
    %346 = vmatprep.subr.mxu0 0.0
    %347 = vmatpush1.xpose.msra.mxu0 0.0
    %348 = vmatprep.subr.mxu0 0.0
    %349 = vmatpush1.xpose.msra.mxu0 0.0
    %350 = vmatprep.subr.mxu0 0.0
    %351 = vmatpush1.xpose.msra.mxu0 0.0
    %352 = vmatprep.subr.mxu0 0.0
    %353 = vmatpush1.xpose.msra.mxu0 0.0
    %354 = vmatprep.subr.mxu0 0.0
    %355 = vmatpush1.xpose.msra.mxu0 0.0
    %356 = vmatprep.subr.mxu0 0.0
    %357 = vmatpush1.xpose.msra.mxu0 0.0
    %358 = vmatprep.subr.mxu0 0.0
    %359 = vmatpush1.xpose.msra.mxu0 0.0
    %360 = vmatprep.subr.mxu0 0.0
    %361 = vmatpush1.xpose.msra.mxu0 0.0
    %362 = vmatprep.subr.mxu0 0.0
    %363 = vmatpush1.xpose.msra.mxu0 0.0
    %364 = vmatprep.subr.mxu0 0.0
    %365 = vmatpush1.xpose.msra.mxu0 0.0
    %366 = vmatprep.subr.mxu0 0.0
    %367 = vmatpush1.xpose.msra.mxu0 0.0
    %368 = vmatprep.subr.mxu0 0.0
    %369 = vmatpush1.xpose.msra.mxu0 0.0
    %370 = vmatprep.subr.mxu0 0.0
    %371 = vmatpush1.xpose.msra.mxu0 0.0
    %372 = vmatprep.subr.mxu0 0.0
    %373 = vmatpush1.xpose.msra.mxu0 0.0
    %374 = vmatprep.subr.mxu0 0.0
    %375 = vmatpush1.xpose.msra.mxu0 0.0
    %376 = vmatprep.subr.mxu0 0.0
    %377 = vmatpush1.xpose.msra.mxu0 0.0
    %378 = vmatprep.subr.mxu0 0.0
    %379 = vmatpush1.xpose.msra.mxu0 0.0
    %380 = vmatprep.subr.mxu0 0.0
    %381 = vmatpush1.xpose.msra.mxu0 0.0
    %382 = vmatprep.subr.mxu0 0.0
    %383 = vmatpush1.xpose.msra.mxu0 0.0
    %384 = vmatprep.subr.mxu0 0.0
    %385 = vmatpush1.xpose.msra.mxu0 0.0
    %386 = vmatprep.subr.mxu0 0.0
    %387 = vmatpush1.xpose.msra.mxu0 0.0
    %388 = vmatprep.mubr.f32.mxu0 0.0
    %389 = vmatmul.mubr.f32.gmra.mrb[0].mxu0 %v320
    %v390 = vpop.f32.mrb[0].mxu0
    %v391 = vadd.f32 0.0, %v390
    %v392 = vpop.f32.mrb[0].mxu0
    %393 = vdwg.mxu0
    %v394 = vmul.f32 %v314, 0.35355338
    %v395 = vmul.f32 %v391, 0.35355338
    %v396 = vsel %vm242, %v394, -inf
    %397 = vmax.xlane.f32.xlu0 %v396
    %v398 = vpop.xlane.xlu0 %397
    %v399 = vsel %vm242, %v395, -inf
    %400 = vmax.xlane.f32.xlu0 %v399
    %v401 = vpop.xlane.xlu0 %400
    %v402 = vsub.f32 %v394, %v398
    %v403 = vsub.f32 %v395, %v401
    %v404 = vmul.f32 %v402, 1.442695
    %v405 = vpow.pop %v404
    %v406 = vmul.f32 %v403, 1.442695
    %v407 = vpow.pop %v406
    %v408 = vsel %vm242, %v405, 0.0
    %409 = vadd.xlane.f32.xlu0 %v408
    %v410 = vpop.xlane.xlu0 %409
    %v411 = vsel %vm242, %v407, 0.0
    %412 = vadd.xlane.f32.xlu0 %v411
    %v413 = vpop.xlane.xlu0 %412
    %v414 = vrcp.pop %v410
    %v415 = vrcp.pop %v413
    %v416 = vmul.f32 %v405, %v414
    %v417 = vmul.f32 %v407, %v415
    %418 = vrot.lane.b32.xlu0 %v233, 64
    %v419 = vpop.permute.xlu0 %418
    %v422 = vsel %vm242, %v416, 0
    %424 = vmatprep.subr.mxu0 0.0
    %425 = vmatpush1.msra.mxu0 %v419
    %426 = vmatprep.subr.mxu0 0.0
    %427 = vmatpush1.msra.mxu0 0.0
    %428 = vmatprep.subr.mxu0 0.0
    %429 = vmatpush1.msra.mxu0 0.0
    %430 = vmatprep.subr.mxu0 0.0
    %431 = vmatpush1.msra.mxu0 0.0
    %432 = vmatprep.subr.mxu0 0.0
    %433 = vmatpush1.msra.mxu0 0.0
    %434 = vmatprep.subr.mxu0 0.0
    %435 = vmatpush1.msra.mxu0 0.0
    %436 = vmatprep.subr.mxu0 0.0
    %437 = vmatpush1.msra.mxu0 0.0
    %438 = vmatprep.subr.mxu0 0.0
    %439 = vmatpush1.msra.mxu0 0.0
    %440 = vmatprep.subr.mxu0 0.0
    %441 = vmatpush1.msra.mxu0 0.0
    %442 = vmatprep.subr.mxu0 0.0
    %443 = vmatpush1.msra.mxu0 0.0
    %444 = vmatprep.subr.mxu0 0.0
    %445 = vmatpush1.msra.mxu0 0.0
    %446 = vmatprep.subr.mxu0 0.0
    %447 = vmatpush1.msra.mxu0 0.0
    %448 = vmatprep.subr.mxu0 0.0
    %449 = vmatpush1.msra.mxu0 0.0
    %450 = vmatprep.subr.mxu0 0.0
    %451 = vmatpush1.msra.mxu0 0.0
    %452 = vmatprep.subr.mxu0 0.0
    %453 = vmatpush1.msra.mxu0 0.0
    %454 = vmatprep.subr.mxu0 0.0
    %455 = vmatpush1.msra.mxu0 0.0
    %456 = vmatprep.subr.mxu0 0.0
    %457 = vmatpush1.msra.mxu0 0.0
    %458 = vmatprep.subr.mxu0 0.0
    %459 = vmatpush1.msra.mxu0 0.0
    %460 = vmatprep.subr.mxu0 0.0
    %461 = vmatpush1.msra.mxu0 0.0
    %462 = vmatprep.subr.mxu0 0.0
    %463 = vmatpush1.msra.mxu0 0.0
    %464 = vmatprep.subr.mxu0 0.0
    %465 = vmatpush1.msra.mxu0 0.0
    %466 = vmatprep.subr.mxu0 0.0
    %467 = vmatpush1.msra.mxu0 0.0
    %468 = vmatprep.subr.mxu0 0.0
    %469 = vmatpush1.msra.mxu0 0.0
    %470 = vmatprep.subr.mxu0 0.0
    %471 = vmatpush1.msra.mxu0 0.0
    %472 = vmatprep.subr.mxu0 0.0
    %473 = vmatpush1.msra.mxu0 0.0
    %474 = vmatprep.subr.mxu0 0.0
    %475 = vmatpush1.msra.mxu0 0.0
    %476 = vmatprep.subr.mxu0 0.0
    %477 = vmatpush1.msra.mxu0 0.0
    %478 = vmatprep.subr.mxu0 0.0
    %479 = vmatpush1.msra.mxu0 0.0
    %480 = vmatprep.subr.mxu0 0.0
    %481 = vmatpush1.msra.mxu0 0.0
    %482 = vmatprep.subr.mxu0 0.0
    %483 = vmatpush1.msra.mxu0 0.0
    %484 = vmatprep.subr.mxu0 0.0
    %485 = vmatpush1.msra.mxu0 0.0
    %486 = vmatprep.subr.mxu0 0.0
    %487 = vmatpush1.msra.mxu0 0.0
    %488 = vmatprep.mubr.f32.mxu0 0.0
    %489 = vmatmul.mubr.f32.gmra.mrb[0].mxu0 %v422
    %v490 = vpop.f32.mrb[0].mxu0
    %v491 = vadd.f32 0.0, %v490
    %v492 = vpop.f32.mrb[0].mxu0
    %493 = vdwg.mxu0
    %494 = vrot.lane.b32.xlu0 %v236, 64
    %v495 = vpop.permute.xlu0 %494
    %v498 = vsel %vm242, %v417, 0
    %500 = vmatprep.subr.mxu0 0.0
    %501 = vmatpush1.msra.mxu0 %v495
    %502 = vmatprep.subr.mxu0 0.0
    %503 = vmatpush1.msra.mxu0 0.0
    %504 = vmatprep.subr.mxu0 0.0
    %505 = vmatpush1.msra.mxu0 0.0
    %506 = vmatprep.subr.mxu0 0.0
    %507 = vmatpush1.msra.mxu0 0.0
    %508 = vmatprep.subr.mxu0 0.0
    %509 = vmatpush1.msra.mxu0 0.0
    %510 = vmatprep.subr.mxu0 0.0
    %511 = vmatpush1.msra.mxu0 0.0
    %512 = vmatprep.subr.mxu0 0.0
    %513 = vmatpush1.msra.mxu0 0.0
    %514 = vmatprep.subr.mxu0 0.0
    %515 = vmatpush1.msra.mxu0 0.0
    %516 = vmatprep.subr.mxu0 0.0
    %517 = vmatpush1.msra.mxu0 0.0
    %518 = vmatprep.subr.mxu0 0.0
    %519 = vmatpush1.msra.mxu0 0.0
    %520 = vmatprep.subr.mxu0 0.0
    %521 = vmatpush1.msra.mxu0 0.0
    %522 = vmatprep.subr.mxu0 0.0
    %523 = vmatpush1.msra.mxu0 0.0
    %524 = vmatprep.subr.mxu0 0.0
    %525 = vmatpush1.msra.mxu0 0.0
    %526 = vmatprep.subr.mxu0 0.0
    %527 = vmatpush1.msra.mxu0 0.0
    %528 = vmatprep.subr.mxu0 0.0
    %529 = vmatpush1.msra.mxu0 0.0
    %530 = vmatprep.subr.mxu0 0.0
    %531 = vmatpush1.msra.mxu0 0.0
    %532 = vmatprep.subr.mxu0 0.0
    %533 = vmatpush1.msra.mxu0 0.0
    %534 = vmatprep.subr.mxu0 0.0
    %535 = vmatpush1.msra.mxu0 0.0
    %536 = vmatprep.subr.mxu0 0.0
    %537 = vmatpush1.msra.mxu0 0.0
    %538 = vmatprep.subr.mxu0 0.0
    %539 = vmatpush1.msra.mxu0 0.0
    %540 = vmatprep.subr.mxu0 0.0
    %541 = vmatpush1.msra.mxu0 0.0
    %542 = vmatprep.subr.mxu0 0.0
    %543 = vmatpush1.msra.mxu0 0.0
    %544 = vmatprep.subr.mxu0 0.0
    %545 = vmatpush1.msra.mxu0 0.0
    %546 = vmatprep.subr.mxu0 0.0
    %547 = vmatpush1.msra.mxu0 0.0
    %548 = vmatprep.subr.mxu0 0.0
    %549 = vmatpush1.msra.mxu0 0.0
    %550 = vmatprep.subr.mxu0 0.0
    %551 = vmatpush1.msra.mxu0 0.0
    %552 = vmatprep.subr.mxu0 0.0
    %553 = vmatpush1.msra.mxu0 0.0
    %554 = vmatprep.subr.mxu0 0.0
    %555 = vmatpush1.msra.mxu0 0.0
    %556 = vmatprep.subr.mxu0 0.0
    %557 = vmatpush1.msra.mxu0 0.0
    %558 = vmatprep.subr.mxu0 0.0
    %559 = vmatpush1.msra.mxu0 0.0
    %560 = vmatprep.subr.mxu0 0.0
    %561 = vmatpush1.msra.mxu0 0.0
    %562 = vmatprep.subr.mxu0 0.0
    %563 = vmatpush1.msra.mxu0 0.0
    %564 = vmatprep.mubr.f32.mxu0 0.0
    %565 = vmatmul.mubr.f32.gmra.mrb[0].mxu0 %v498
    %v566 = vpop.f32.mrb[0].mxu0
    %v567 = vadd.f32 0.0, %v566
    %v568 = vpop.f32.mrb[0].mxu0
    %569 = vdwg.mxu0
    %570 = vrot.lane.b32.xlu0 %v233, 120
    %v571 = vpop.permute.xlu0 %570
    %572 = vrot.lane.b32.xlu0 %v233, 88
    %v573 = vpop.permute.xlu0 %572
    %v574 = vsel %vm242, %v571, 0
    %v576 = vsel %vm242, %v573, 0
    %578 = vmatprep.subr.mxu0 0.0
    %579 = vmatpush1.xpose.msra.mxu0 %v576
    %580 = vmatprep.subr.mxu0 0.0
    %581 = vmatpush1.xpose.msra.mxu0 0.0
    %582 = vmatprep.subr.mxu0 0.0
    %583 = vmatpush1.xpose.msra.mxu0 0.0
    %584 = vmatprep.subr.mxu0 0.0
    %585 = vmatpush1.xpose.msra.mxu0 0.0
    %586 = vmatprep.subr.mxu0 0.0
    %587 = vmatpush1.xpose.msra.mxu0 0.0
    %588 = vmatprep.subr.mxu0 0.0
    %589 = vmatpush1.xpose.msra.mxu0 0.0
    %590 = vmatprep.subr.mxu0 0.0
    %591 = vmatpush1.xpose.msra.mxu0 0.0
    %592 = vmatprep.subr.mxu0 0.0
    %593 = vmatpush1.xpose.msra.mxu0 0.0
    %594 = vmatprep.subr.mxu0 0.0
    %595 = vmatpush1.xpose.msra.mxu0 0.0
    %596 = vmatprep.subr.mxu0 0.0
    %597 = vmatpush1.xpose.msra.mxu0 0.0
    %598 = vmatprep.subr.mxu0 0.0
    %599 = vmatpush1.xpose.msra.mxu0 0.0
    %600 = vmatprep.subr.mxu0 0.0
    %601 = vmatpush1.xpose.msra.mxu0 0.0
    %602 = vmatprep.subr.mxu0 0.0
    %603 = vmatpush1.xpose.msra.mxu0 0.0
    %604 = vmatprep.subr.mxu0 0.0
    %605 = vmatpush1.xpose.msra.mxu0 0.0
    %606 = vmatprep.subr.mxu0 0.0
    %607 = vmatpush1.xpose.msra.mxu0 0.0
    %608 = vmatprep.subr.mxu0 0.0
    %609 = vmatpush1.xpose.msra.mxu0 0.0
    %610 = vmatprep.subr.mxu0 0.0
    %611 = vmatpush1.xpose.msra.mxu0 0.0
    %612 = vmatprep.subr.mxu0 0.0
    %613 = vmatpush1.xpose.msra.mxu0 0.0
    %614 = vmatprep.subr.mxu0 0.0
    %615 = vmatpush1.xpose.msra.mxu0 0.0
    %616 = vmatprep.subr.mxu0 0.0
    %617 = vmatpush1.xpose.msra.mxu0 0.0
    %618 = vmatprep.subr.mxu0 0.0
    %619 = vmatpush1.xpose.msra.mxu0 0.0
    %620 = vmatprep.subr.mxu0 0.0
    %621 = vmatpush1.xpose.msra.mxu0 0.0
    %622 = vmatprep.subr.mxu0 0.0
    %623 = vmatpush1.xpose.msra.mxu0 0.0
    %624 = vmatprep.subr.mxu0 0.0
    %625 = vmatpush1.xpose.msra.mxu0 0.0
    %626 = vmatprep.subr.mxu0 0.0
    %627 = vmatpush1.xpose.msra.mxu0 0.0
    %628 = vmatprep.subr.mxu0 0.0
    %629 = vmatpush1.xpose.msra.mxu0 0.0
    %630 = vmatprep.subr.mxu0 0.0
    %631 = vmatpush1.xpose.msra.mxu0 0.0
    %632 = vmatprep.subr.mxu0 0.0
    %633 = vmatpush1.xpose.msra.mxu0 0.0
    %634 = vmatprep.subr.mxu0 0.0
    %635 = vmatpush1.xpose.msra.mxu0 0.0
    %636 = vmatprep.subr.mxu0 0.0
    %637 = vmatpush1.xpose.msra.mxu0 0.0
    %638 = vmatprep.subr.mxu0 0.0
    %639 = vmatpush1.xpose.msra.mxu0 0.0
    %640 = vmatprep.subr.mxu0 0.0
    %641 = vmatpush1.xpose.msra.mxu0 0.0
    %642 = vmatprep.mubr.f32.mxu0 0.0
    %643 = vmatmul.mubr.f32.gmra.mrb[0].mxu0 %v574
    %v644 = vpop.f32.mrb[0].mxu0
    %v645 = vadd.f32 0.0, %v644
    %v646 = vpop.f32.mrb[0].mxu0
    %647 = vdwg.mxu0
    %648 = vrot.lane.b32.xlu0 %v236, 120
    %v649 = vpop.permute.xlu0 %648
    %650 = vrot.lane.b32.xlu0 %v236, 88
    %v651 = vpop.permute.xlu0 %650
    %v652 = vsel %vm242, %v649, 0
    %v654 = vsel %vm242, %v651, 0
    %656 = vmatprep.subr.mxu0 0.0
    %657 = vmatpush1.xpose.msra.mxu0 %v654
    %658 = vmatprep.subr.mxu0 0.0
    %659 = vmatpush1.xpose.msra.mxu0 0.0
    %660 = vmatprep.subr.mxu0 0.0
    %661 = vmatpush1.xpose.msra.mxu0 0.0
    %662 = vmatprep.subr.mxu0 0.0
    %663 = vmatpush1.xpose.msra.mxu0 0.0
    %664 = vmatprep.subr.mxu0 0.0
    %665 = vmatpush1.xpose.msra.mxu0 0.0
    %666 = vmatprep.subr.mxu0 0.0
    %667 = vmatpush1.xpose.msra.mxu0 0.0
    %668 = vmatprep.subr.mxu0 0.0
    %669 = vmatpush1.xpose.msra.mxu0 0.0
    %670 = vmatprep.subr.mxu0 0.0
    %671 = vmatpush1.xpose.msra.mxu0 0.0
    %672 = vmatprep.subr.mxu0 0.0
    %673 = vmatpush1.xpose.msra.mxu0 0.0
    %674 = vmatprep.subr.mxu0 0.0
    %675 = vmatpush1.xpose.msra.mxu0 0.0
    %676 = vmatprep.subr.mxu0 0.0
    %677 = vmatpush1.xpose.msra.mxu0 0.0
    %678 = vmatprep.subr.mxu0 0.0
    %679 = vmatpush1.xpose.msra.mxu0 0.0
    %680 = vmatprep.subr.mxu0 0.0
    %681 = vmatpush1.xpose.msra.mxu0 0.0
    %682 = vmatprep.subr.mxu0 0.0
    %683 = vmatpush1.xpose.msra.mxu0 0.0
    %684 = vmatprep.subr.mxu0 0.0
    %685 = vmatpush1.xpose.msra.mxu0 0.0
    %686 = vmatprep.subr.mxu0 0.0
    %687 = vmatpush1.xpose.msra.mxu0 0.0
    %688 = vmatprep.subr.mxu0 0.0
    %689 = vmatpush1.xpose.msra.mxu0 0.0
    %690 = vmatprep.subr.mxu0 0.0
    %691 = vmatpush1.xpose.msra.mxu0 0.0
    %692 = vmatprep.subr.mxu0 0.0
    %693 = vmatpush1.xpose.msra.mxu0 0.0
    %694 = vmatprep.subr.mxu0 0.0
    %695 = vmatpush1.xpose.msra.mxu0 0.0
    %696 = vmatprep.subr.mxu0 0.0
    %697 = vmatpush1.xpose.msra.mxu0 0.0
    %698 = vmatprep.subr.mxu0 0.0
    %699 = vmatpush1.xpose.msra.mxu0 0.0
    %700 = vmatprep.subr.mxu0 0.0
    %701 = vmatpush1.xpose.msra.mxu0 0.0
    %702 = vmatprep.subr.mxu0 0.0
    %703 = vmatpush1.xpose.msra.mxu0 0.0
    %704 = vmatprep.subr.mxu0 0.0
    %705 = vmatpush1.xpose.msra.mxu0 0.0
    %706 = vmatprep.subr.mxu0 0.0
    %707 = vmatpush1.xpose.msra.mxu0 0.0
    %708 = vmatprep.subr.mxu0 0.0
    %709 = vmatpush1.xpose.msra.mxu0 0.0
    %710 = vmatprep.subr.mxu0 0.0
    %711 = vmatpush1.xpose.msra.mxu0 0.0
    %712 = vmatprep.subr.mxu0 0.0
    %713 = vmatpush1.xpose.msra.mxu0 0.0
    %714 = vmatprep.subr.mxu0 0.0
    %715 = vmatpush1.xpose.msra.mxu0 0.0
    %716 = vmatprep.subr.mxu0 0.0
    %717 = vmatpush1.xpose.msra.mxu0 0.0
    %718 = vmatprep.subr.mxu0 0.0
    %719 = vmatpush1.xpose.msra.mxu0 0.0
    %720 = vmatprep.mubr.f32.mxu0 0.0
    %721 = vmatmul.mubr.f32.gmra.mrb[0].mxu0 %v652
    %v722 = vpop.f32.mrb[0].mxu0
    %v723 = vadd.f32 0.0, %v722
    %v724 = vpop.f32.mrb[0].mxu0
    %725 = vdwg.mxu0
    %v726 = vmul.f32 %v645, 0.35355338
    %v727 = vmul.f32 %v723, 0.35355338
    %v728 = vsel %vm242, %v726, -inf
    %729 = vmax.xlane.f32.xlu0 %v728
    %v730 = vpop.xlane.xlu0 %729
    %v731 = vsel %vm242, %v727, -inf
    %732 = vmax.xlane.f32.xlu0 %v731
    %v733 = vpop.xlane.xlu0 %732
    %v734 = vsub.f32 %v726, %v730
    %v735 = vsub.f32 %v727, %v733
    %v736 = vmul.f32 %v734, 1.442695
    %v737 = vpow.pop %v736
    %v738 = vmul.f32 %v735, 1.442695
    %v739 = vpow.pop %v738
    %v740 = vsel %vm242, %v737, 0.0
    %741 = vadd.xlane.f32.xlu0 %v740
    %v742 = vpop.xlane.xlu0 %741
    %v743 = vsel %vm242, %v739, 0.0
    %744 = vadd.xlane.f32.xlu0 %v743
    %v745 = vpop.xlane.xlu0 %744
    %v746 = vrcp.pop %v742
    %v747 = vrcp.pop %v745
    %v748 = vmul.f32 %v737, %v746
    %v749 = vmul.f32 %v739, %v747
    %750 = vrot.lane.b32.xlu0 %v233, 56
    %v751 = vpop.permute.xlu0 %750
    %v754 = vsel %vm242, %v748, 0
    %756 = vmatprep.subr.mxu0 0.0
    %757 = vmatpush1.msra.mxu0 %v751
    %758 = vmatprep.subr.mxu0 0.0
    %759 = vmatpush1.msra.mxu0 0.0
    %760 = vmatprep.subr.mxu0 0.0
    %761 = vmatpush1.msra.mxu0 0.0
    %762 = vmatprep.subr.mxu0 0.0
    %763 = vmatpush1.msra.mxu0 0.0
    %764 = vmatprep.subr.mxu0 0.0
    %765 = vmatpush1.msra.mxu0 0.0
    %766 = vmatprep.subr.mxu0 0.0
    %767 = vmatpush1.msra.mxu0 0.0
    %768 = vmatprep.subr.mxu0 0.0
    %769 = vmatpush1.msra.mxu0 0.0
    %770 = vmatprep.subr.mxu0 0.0
    %771 = vmatpush1.msra.mxu0 0.0
    %772 = vmatprep.subr.mxu0 0.0
    %773 = vmatpush1.msra.mxu0 0.0
    %774 = vmatprep.subr.mxu0 0.0
    %775 = vmatpush1.msra.mxu0 0.0
    %776 = vmatprep.subr.mxu0 0.0
    %777 = vmatpush1.msra.mxu0 0.0
    %778 = vmatprep.subr.mxu0 0.0
    %779 = vmatpush1.msra.mxu0 0.0
    %780 = vmatprep.subr.mxu0 0.0
    %781 = vmatpush1.msra.mxu0 0.0
    %782 = vmatprep.subr.mxu0 0.0
    %783 = vmatpush1.msra.mxu0 0.0
    %784 = vmatprep.subr.mxu0 0.0
    %785 = vmatpush1.msra.mxu0 0.0
    %786 = vmatprep.subr.mxu0 0.0
    %787 = vmatpush1.msra.mxu0 0.0
    %788 = vmatprep.subr.mxu0 0.0
    %789 = vmatpush1.msra.mxu0 0.0
    %790 = vmatprep.subr.mxu0 0.0
    %791 = vmatpush1.msra.mxu0 0.0
    %792 = vmatprep.subr.mxu0 0.0
    %793 = vmatpush1.msra.mxu0 0.0
    %794 = vmatprep.subr.mxu0 0.0
    %795 = vmatpush1.msra.mxu0 0.0
    %796 = vmatprep.subr.mxu0 0.0
    %797 = vmatpush1.msra.mxu0 0.0
    %798 = vmatprep.subr.mxu0 0.0
    %799 = vmatpush1.msra.mxu0 0.0
    %800 = vmatprep.subr.mxu0 0.0
    %801 = vmatpush1.msra.mxu0 0.0
    %802 = vmatprep.subr.mxu0 0.0
    %803 = vmatpush1.msra.mxu0 0.0
    %804 = vmatprep.subr.mxu0 0.0
    %805 = vmatpush1.msra.mxu0 0.0
    %806 = vmatprep.subr.mxu0 0.0
    %807 = vmatpush1.msra.mxu0 0.0
    %808 = vmatprep.subr.mxu0 0.0
    %809 = vmatpush1.msra.mxu0 0.0
    %810 = vmatprep.subr.mxu0 0.0
    %811 = vmatpush1.msra.mxu0 0.0
    %812 = vmatprep.subr.mxu0 0.0
    %813 = vmatpush1.msra.mxu0 0.0
    %814 = vmatprep.subr.mxu0 0.0
    %815 = vmatpush1.msra.mxu0 0.0
    %816 = vmatprep.subr.mxu0 0.0
    %817 = vmatpush1.msra.mxu0 0.0
    %818 = vmatprep.subr.mxu0 0.0
    %819 = vmatpush1.msra.mxu0 0.0
    %820 = vmatprep.mubr.f32.mxu0 0.0
    %821 = vmatmul.mubr.f32.gmra.mrb[0].mxu0 %v754
    %v822 = vpop.f32.mrb[0].mxu0
    %v823 = vadd.f32 0.0, %v822
    %v824 = vpop.f32.mrb[0].mxu0
    %825 = vdwg.mxu0
    %826 = vrot.lane.b32.xlu0 %v236, 56
    %v827 = vpop.permute.xlu0 %826
    %v830 = vsel %vm242, %v749, 0
    %832 = vmatprep.subr.mxu0 0.0
    %833 = vmatpush1.msra.mxu0 %v827
    %834 = vmatprep.subr.mxu0 0.0
    %835 = vmatpush1.msra.mxu0 0.0
    %836 = vmatprep.subr.mxu0 0.0
    %837 = vmatpush1.msra.mxu0 0.0
    %838 = vmatprep.subr.mxu0 0.0
    %839 = vmatpush1.msra.mxu0 0.0
    %840 = vmatprep.subr.mxu0 0.0
    %841 = vmatpush1.msra.mxu0 0.0
    %842 = vmatprep.subr.mxu0 0.0
    %843 = vmatpush1.msra.mxu0 0.0
    %844 = vmatprep.subr.mxu0 0.0
    %845 = vmatpush1.msra.mxu0 0.0
    %846 = vmatprep.subr.mxu0 0.0
    %847 = vmatpush1.msra.mxu0 0.0
    %848 = vmatprep.subr.mxu0 0.0
    %849 = vmatpush1.msra.mxu0 0.0
    %850 = vmatprep.subr.mxu0 0.0
    %851 = vmatpush1.msra.mxu0 0.0
    %852 = vmatprep.subr.mxu0 0.0
    %853 = vmatpush1.msra.mxu0 0.0
    %854 = vmatprep.subr.mxu0 0.0
    %855 = vmatpush1.msra.mxu0 0.0
    %856 = vmatprep.subr.mxu0 0.0
    %857 = vmatpush1.msra.mxu0 0.0
    %858 = vmatprep.subr.mxu0 0.0
    %859 = vmatpush1.msra.mxu0 0.0
    %860 = vmatprep.subr.mxu0 0.0
    %861 = vmatpush1.msra.mxu0 0.0
    %862 = vmatprep.subr.mxu0 0.0
    %863 = vmatpush1.msra.mxu0 0.0
    %864 = vmatprep.subr.mxu0 0.0
    %865 = vmatpush1.msra.mxu0 0.0
    %866 = vmatprep.subr.mxu0 0.0
    %867 = vmatpush1.msra.mxu0 0.0
    %868 = vmatprep.subr.mxu0 0.0
    %869 = vmatpush1.msra.mxu0 0.0
    %870 = vmatprep.subr.mxu0 0.0
    %871 = vmatpush1.msra.mxu0 0.0
    %872 = vmatprep.subr.mxu0 0.0
    %873 = vmatpush1.msra.mxu0 0.0
    %874 = vmatprep.subr.mxu0 0.0
    %875 = vmatpush1.msra.mxu0 0.0
    %876 = vmatprep.subr.mxu0 0.0
    %877 = vmatpush1.msra.mxu0 0.0
    %878 = vmatprep.subr.mxu0 0.0
    %879 = vmatpush1.msra.mxu0 0.0
    %880 = vmatprep.subr.mxu0 0.0
    %881 = vmatpush1.msra.mxu0 0.0
    %882 = vmatprep.subr.mxu0 0.0
    %883 = vmatpush1.msra.mxu0 0.0
    %884 = vmatprep.subr.mxu0 0.0
    %885 = vmatpush1.msra.mxu0 0.0
    %886 = vmatprep.subr.mxu0 0.0
    %887 = vmatpush1.msra.mxu0 0.0
    %888 = vmatprep.subr.mxu0 0.0
    %889 = vmatpush1.msra.mxu0 0.0
    %890 = vmatprep.subr.mxu0 0.0
    %891 = vmatpush1.msra.mxu0 0.0
    %892 = vmatprep.subr.mxu0 0.0
    %893 = vmatpush1.msra.mxu0 0.0
    %894 = vmatprep.subr.mxu0 0.0
    %895 = vmatpush1.msra.mxu0 0.0
    %896 = vmatprep.mubr.f32.mxu0 0.0
    %897 = vmatmul.mubr.f32.gmra.mrb[0].mxu0 %v830
    %v898 = vpop.f32.mrb[0].mxu0
    %v899 = vadd.f32 0.0, %v898
    %v900 = vpop.f32.mrb[0].mxu0
    %901 = vdwg.mxu0
    %902 = vrot.lane.b32.xlu0 %v233, 112
    %v903 = vpop.permute.xlu0 %902
    %904 = vrot.lane.b32.xlu0 %v233, 80
    %v905 = vpop.permute.xlu0 %904
    %v906 = vsel %vm242, %v903, 0
    %v908 = vsel %vm242, %v905, 0
    %910 = vmatprep.subr.mxu0 0.0
    %911 = vmatpush1.xpose.msra.mxu0 %v908
    %912 = vmatprep.subr.mxu0 0.0
    %913 = vmatpush1.xpose.msra.mxu0 0.0
    %914 = vmatprep.subr.mxu0 0.0
    %915 = vmatpush1.xpose.msra.mxu0 0.0
    %916 = vmatprep.subr.mxu0 0.0
    %917 = vmatpush1.xpose.msra.mxu0 0.0
    %918 = vmatprep.subr.mxu0 0.0
    %919 = vmatpush1.xpose.msra.mxu0 0.0
    %920 = vmatprep.subr.mxu0 0.0
    %921 = vmatpush1.xpose.msra.mxu0 0.0
    %922 = vmatprep.subr.mxu0 0.0
    %923 = vmatpush1.xpose.msra.mxu0 0.0
    %924 = vmatprep.subr.mxu0 0.0
    %925 = vmatpush1.xpose.msra.mxu0 0.0
    %926 = vmatprep.subr.mxu0 0.0
    %927 = vmatpush1.xpose.msra.mxu0 0.0
    %928 = vmatprep.subr.mxu0 0.0
    %929 = vmatpush1.xpose.msra.mxu0 0.0
    %930 = vmatprep.subr.mxu0 0.0
    %931 = vmatpush1.xpose.msra.mxu0 0.0
    %932 = vmatprep.subr.mxu0 0.0
    %933 = vmatpush1.xpose.msra.mxu0 0.0
    %934 = vmatprep.subr.mxu0 0.0
    %935 = vmatpush1.xpose.msra.mxu0 0.0
    %936 = vmatprep.subr.mxu0 0.0
    %937 = vmatpush1.xpose.msra.mxu0 0.0
    %938 = vmatprep.subr.mxu0 0.0
    %939 = vmatpush1.xpose.msra.mxu0 0.0
    %940 = vmatprep.subr.mxu0 0.0
    %941 = vmatpush1.xpose.msra.mxu0 0.0
    %942 = vmatprep.subr.mxu0 0.0
    %943 = vmatpush1.xpose.msra.mxu0 0.0
    %944 = vmatprep.subr.mxu0 0.0
    %945 = vmatpush1.xpose.msra.mxu0 0.0
    %946 = vmatprep.subr.mxu0 0.0
    %947 = vmatpush1.xpose.msra.mxu0 0.0
    %948 = vmatprep.subr.mxu0 0.0
    %949 = vmatpush1.xpose.msra.mxu0 0.0
    %950 = vmatprep.subr.mxu0 0.0
    %951 = vmatpush1.xpose.msra.mxu0 0.0
    %952 = vmatprep.subr.mxu0 0.0
    %953 = vmatpush1.xpose.msra.mxu0 0.0
    %954 = vmatprep.subr.mxu0 0.0
    %955 = vmatpush1.xpose.msra.mxu0 0.0
    %956 = vmatprep.subr.mxu0 0.0
    %957 = vmatpush1.xpose.msra.mxu0 0.0
    %958 = vmatprep.subr.mxu0 0.0
    %959 = vmatpush1.xpose.msra.mxu0 0.0
    %960 = vmatprep.subr.mxu0 0.0
    %961 = vmatpush1.xpose.msra.mxu0 0.0
    %962 = vmatprep.subr.mxu0 0.0
    %963 = vmatpush1.xpose.msra.mxu0 0.0
    %964 = vmatprep.subr.mxu0 0.0
    %965 = vmatpush1.xpose.msra.mxu0 0.0
    %966 = vmatprep.subr.mxu0 0.0
    %967 = vmatpush1.xpose.msra.mxu0 0.0
    %968 = vmatprep.subr.mxu0 0.0
    %969 = vmatpush1.xpose.msra.mxu0 0.0
    %970 = vmatprep.subr.mxu0 0.0
    %971 = vmatpush1.xpose.msra.mxu0 0.0
    %972 = vmatprep.subr.mxu0 0.0
    %973 = vmatpush1.xpose.msra.mxu0 0.0
    %974 = vmatprep.mubr.f32.mxu0 0.0
    %975 = vmatmul.mubr.f32.gmra.mrb[0].mxu0 %v906
    %v976 = vpop.f32.mrb[0].mxu0
    %v977 = vadd.f32 0.0, %v976
    %v978 = vpop.f32.mrb[0].mxu0
    %979 = vdwg.mxu0
    %980 = vrot.lane.b32.xlu0 %v236, 112
    %v981 = vpop.permute.xlu0 %980
    %982 = vrot.lane.b32.xlu0 %v236, 80
    %v983 = vpop.permute.xlu0 %982
    %v984 = vsel %vm242, %v981, 0
    %v986 = vsel %vm242, %v983, 0
    %988 = vmatprep.subr.mxu0 0.0
    %989 = vmatpush1.xpose.msra.mxu0 %v986
    %990 = vmatprep.subr.mxu0 0.0
    %991 = vmatpush1.xpose.msra.mxu0 0.0
    %992 = vmatprep.subr.mxu0 0.0
    %993 = vmatpush1.xpose.msra.mxu0 0.0
    %994 = vmatprep.subr.mxu0 0.0
    %995 = vmatpush1.xpose.msra.mxu0 0.0
    %996 = vmatprep.subr.mxu0 0.0
    %997 = vmatpush1.xpose.msra.mxu0 0.0
    %998 = vmatprep.subr.mxu0 0.0
    %999 = vmatpush1.xpose.msra.mxu0 0.0
    %1000 = vmatprep.subr.mxu0 0.0
    %1001 = vmatpush1.xpose.msra.mxu0 0.0
    %1002 = vmatprep.subr.mxu0 0.0
    %1003 = vmatpush1.xpose.msra.mxu0 0.0
    %1004 = vmatprep.subr.mxu0 0.0
    %1005 = vmatpush1.xpose.msra.mxu0 0.0
    %1006 = vmatprep.subr.mxu0 0.0
    %1007 = vmatpush1.xpose.msra.mxu0 0.0
    %1008 = vmatprep.subr.mxu0 0.0
    %1009 = vmatpush1.xpose.msra.mxu0 0.0
    %1010 = vmatprep.subr.mxu0 0.0
    %1011 = vmatpush1.xpose.msra.mxu0 0.0
    %1012 = vmatprep.subr.mxu0 0.0
    %1013 = vmatpush1.xpose.msra.mxu0 0.0
    %1014 = vmatprep.subr.mxu0 0.0
    %1015 = vmatpush1.xpose.msra.mxu0 0.0
    %1016 = vmatprep.subr.mxu0 0.0
    %1017 = vmatpush1.xpose.msra.mxu0 0.0
    %1018 = vmatprep.subr.mxu0 0.0
    %1019 = vmatpush1.xpose.msra.mxu0 0.0
    %1020 = vmatprep.subr.mxu0 0.0
    %1021 = vmatpush1.xpose.msra.mxu0 0.0
    %1022 = vmatprep.subr.mxu0 0.0
    %1023 = vmatpush1.xpose.msra.mxu0 0.0
    %1024 = vmatprep.subr.mxu0 0.0
    %1025 = vmatpush1.xpose.msra.mxu0 0.0
    %1026 = vmatprep.subr.mxu0 0.0
    %1027 = vmatpush1.xpose.msra.mxu0 0.0
    %1028 = vmatprep.subr.mxu0 0.0
    %1029 = vmatpush1.xpose.msra.mxu0 0.0
    %1030 = vmatprep.subr.mxu0 0.0
    %1031 = vmatpush1.xpose.msra.mxu0 0.0
    %1032 = vmatprep.subr.mxu0 0.0
    %1033 = vmatpush1.xpose.msra.mxu0 0.0
    %1034 = vmatprep.subr.mxu0 0.0
    %1035 = vmatpush1.xpose.msra.mxu0 0.0
    %1036 = vmatprep.subr.mxu0 0.0
    %1037 = vmatpush1.xpose.msra.mxu0 0.0
    %1038 = vmatprep.subr.mxu0 0.0
    %1039 = vmatpush1.xpose.msra.mxu0 0.0
    %1040 = vmatprep.subr.mxu0 0.0
    %1041 = vmatpush1.xpose.msra.mxu0 0.0
    %1042 = vmatprep.subr.mxu0 0.0
    %1043 = vmatpush1.xpose.msra.mxu0 0.0
    %1044 = vmatprep.subr.mxu0 0.0
    %1045 = vmatpush1.xpose.msra.mxu0 0.0
    %1046 = vmatprep.subr.mxu0 0.0
    %1047 = vmatpush1.xpose.msra.mxu0 0.0
    %1048 = vmatprep.subr.mxu0 0.0
    %1049 = vmatpush1.xpose.msra.mxu0 0.0
    %1050 = vmatprep.subr.mxu0 0.0
    %1051 = vmatpush1.xpose.msra.mxu0 0.0
    %1052 = vmatprep.mubr.f32.mxu0 0.0
    %1053 = vmatmul.mubr.f32.gmra.mrb[0].mxu0 %v984
    %v1054 = vpop.f32.mrb[0].mxu0
    %v1055 = vadd.f32 0.0, %v1054
    %v1056 = vpop.f32.mrb[0].mxu0
    %1057 = vdwg.mxu0
    %v1058 = vmul.f32 %v977, 0.35355338
    %v1059 = vmul.f32 %v1055, 0.35355338
    %v1060 = vsel %vm242, %v1058, -inf
    %1061 = vmax.xlane.f32.xlu0 %v1060
    %v1062 = vpop.xlane.xlu0 %1061
    %v1063 = vsel %vm242, %v1059, -inf
    %1064 = vmax.xlane.f32.xlu0 %v1063
    %v1065 = vpop.xlane.xlu0 %1064
    %v1066 = vsub.f32 %v1058, %v1062
    %v1067 = vsub.f32 %v1059, %v1065
    %v1068 = vmul.f32 %v1066, 1.442695
    %v1069 = vpow.pop %v1068
    %v1070 = vmul.f32 %v1067, 1.442695
    %v1071 = vpow.pop %v1070
    %v1072 = vsel %vm242, %v1069, 0.0
    %1073 = vadd.xlane.f32.xlu0 %v1072
    %v1074 = vpop.xlane.xlu0 %1073
    %v1075 = vsel %vm242, %v1071, 0.0
    %1076 = vadd.xlane.f32.xlu0 %v1075
    %v1077 = vpop.xlane.xlu0 %1076
    %v1078 = vrcp.pop %v1074
    %v1079 = vrcp.pop %v1077
    %v1080 = vmul.f32 %v1069, %v1078
    %v1081 = vmul.f32 %v1071, %v1079
    %1082 = vrot.lane.b32.xlu0 %v233, 48
    %v1083 = vpop.permute.xlu0 %1082
    %v1086 = vsel %vm242, %v1080, 0
    %1088 = vmatprep.subr.mxu0 0.0
    %1089 = vmatpush1.msra.mxu0 %v1083
    %1090 = vmatprep.subr.mxu0 0.0
    %1091 = vmatpush1.msra.mxu0 0.0
    %1092 = vmatprep.subr.mxu0 0.0
    %1093 = vmatpush1.msra.mxu0 0.0
    %1094 = vmatprep.subr.mxu0 0.0
    %1095 = vmatpush1.msra.mxu0 0.0
    %1096 = vmatprep.subr.mxu0 0.0
    %1097 = vmatpush1.msra.mxu0 0.0
    %1098 = vmatprep.subr.mxu0 0.0
    %1099 = vmatpush1.msra.mxu0 0.0
    %1100 = vmatprep.subr.mxu0 0.0
    %1101 = vmatpush1.msra.mxu0 0.0
    %1102 = vmatprep.subr.mxu0 0.0
    %1103 = vmatpush1.msra.mxu0 0.0
    %1104 = vmatprep.subr.mxu0 0.0
    %1105 = vmatpush1.msra.mxu0 0.0
    %1106 = vmatprep.subr.mxu0 0.0
    %1107 = vmatpush1.msra.mxu0 0.0
    %1108 = vmatprep.subr.mxu0 0.0
    %1109 = vmatpush1.msra.mxu0 0.0
    %1110 = vmatprep.subr.mxu0 0.0
    %1111 = vmatpush1.msra.mxu0 0.0
    %1112 = vmatprep.subr.mxu0 0.0
    %1113 = vmatpush1.msra.mxu0 0.0
    %1114 = vmatprep.subr.mxu0 0.0
    %1115 = vmatpush1.msra.mxu0 0.0
    %1116 = vmatprep.subr.mxu0 0.0
    %1117 = vmatpush1.msra.mxu0 0.0
    %1118 = vmatprep.subr.mxu0 0.0
    %1119 = vmatpush1.msra.mxu0 0.0
    %1120 = vmatprep.subr.mxu0 0.0
    %1121 = vmatpush1.msra.mxu0 0.0
    %1122 = vmatprep.subr.mxu0 0.0
    %1123 = vmatpush1.msra.mxu0 0.0
    %1124 = vmatprep.subr.mxu0 0.0
    %1125 = vmatpush1.msra.mxu0 0.0
    %1126 = vmatprep.subr.mxu0 0.0
    %1127 = vmatpush1.msra.mxu0 0.0
    %1128 = vmatprep.subr.mxu0 0.0
    %1129 = vmatpush1.msra.mxu0 0.0
    %1130 = vmatprep.subr.mxu0 0.0
    %1131 = vmatpush1.msra.mxu0 0.0
    %1132 = vmatprep.subr.mxu0 0.0
    %1133 = vmatpush1.msra.mxu0 0.0
    %1134 = vmatprep.subr.mxu0 0.0
    %1135 = vmatpush1.msra.mxu0 0.0
    %1136 = vmatprep.subr.mxu0 0.0
    %1137 = vmatpush1.msra.mxu0 0.0
    %1138 = vmatprep.subr.mxu0 0.0
    %1139 = vmatpush1.msra.mxu0 0.0
    %1140 = vmatprep.subr.mxu0 0.0
    %1141 = vmatpush1.msra.mxu0 0.0
    %1142 = vmatprep.subr.mxu0 0.0
    %1143 = vmatpush1.msra.mxu0 0.0
    %1144 = vmatprep.subr.mxu0 0.0
    %1145 = vmatpush1.msra.mxu0 0.0
    %1146 = vmatprep.subr.mxu0 0.0
    %1147 = vmatpush1.msra.mxu0 0.0
    %1148 = vmatprep.subr.mxu0 0.0
    %1149 = vmatpush1.msra.mxu0 0.0
    %1150 = vmatprep.subr.mxu0 0.0
    %1151 = vmatpush1.msra.mxu0 0.0
    %1152 = vmatprep.mubr.f32.mxu0 0.0
    %1153 = vmatmul.mubr.f32.gmra.mrb[0].mxu0 %v1086
    %v1154 = vpop.f32.mrb[0].mxu0
    %v1155 = vadd.f32 0.0, %v1154
    %v1156 = vpop.f32.mrb[0].mxu0
    %1157 = vdwg.mxu0
    %1158 = vrot.lane.b32.xlu0 %v236, 48
    %v1159 = vpop.permute.xlu0 %1158
    %v1162 = vsel %vm242, %v1081, 0
    %1164 = vmatprep.subr.mxu0 0.0
    %1165 = vmatpush1.msra.mxu0 %v1159
    %1166 = vmatprep.subr.mxu0 0.0
    %1167 = vmatpush1.msra.mxu0 0.0
    %1168 = vmatprep.subr.mxu0 0.0
    %1169 = vmatpush1.msra.mxu0 0.0
    %1170 = vmatprep.subr.mxu0 0.0
    %1171 = vmatpush1.msra.mxu0 0.0
    %1172 = vmatprep.subr.mxu0 0.0
    %1173 = vmatpush1.msra.mxu0 0.0
    %1174 = vmatprep.subr.mxu0 0.0
    %1175 = vmatpush1.msra.mxu0 0.0
    %1176 = vmatprep.subr.mxu0 0.0
    %1177 = vmatpush1.msra.mxu0 0.0
    %1178 = vmatprep.subr.mxu0 0.0
    %1179 = vmatpush1.msra.mxu0 0.0
    %1180 = vmatprep.subr.mxu0 0.0
    %1181 = vmatpush1.msra.mxu0 0.0
    %1182 = vmatprep.subr.mxu0 0.0
    %1183 = vmatpush1.msra.mxu0 0.0
    %1184 = vmatprep.subr.mxu0 0.0
    %1185 = vmatpush1.msra.mxu0 0.0
    %1186 = vmatprep.subr.mxu0 0.0
    %1187 = vmatpush1.msra.mxu0 0.0
    %1188 = vmatprep.subr.mxu0 0.0
    %1189 = vmatpush1.msra.mxu0 0.0
    %1190 = vmatprep.subr.mxu0 0.0
    %1191 = vmatpush1.msra.mxu0 0.0
    %1192 = vmatprep.subr.mxu0 0.0
    %1193 = vmatpush1.msra.mxu0 0.0
    %1194 = vmatprep.subr.mxu0 0.0
    %1195 = vmatpush1.msra.mxu0 0.0
    %1196 = vmatprep.subr.mxu0 0.0
    %1197 = vmatpush1.msra.mxu0 0.0
    %1198 = vmatprep.subr.mxu0 0.0
    %1199 = vmatpush1.msra.mxu0 0.0
    %1200 = vmatprep.subr.mxu0 0.0
    %1201 = vmatpush1.msra.mxu0 0.0
    %1202 = vmatprep.subr.mxu0 0.0
    %1203 = vmatpush1.msra.mxu0 0.0
    %1204 = vmatprep.subr.mxu0 0.0
    %1205 = vmatpush1.msra.mxu0 0.0
    %1206 = vmatprep.subr.mxu0 0.0
    %1207 = vmatpush1.msra.mxu0 0.0
    %1208 = vmatprep.subr.mxu0 0.0
    %1209 = vmatpush1.msra.mxu0 0.0
    %1210 = vmatprep.subr.mxu0 0.0
    %1211 = vmatpush1.msra.mxu0 0.0
    %1212 = vmatprep.subr.mxu0 0.0
    %1213 = vmatpush1.msra.mxu0 0.0
    %1214 = vmatprep.subr.mxu0 0.0
    %1215 = vmatpush1.msra.mxu0 0.0
    %1216 = vmatprep.subr.mxu0 0.0
    %1217 = vmatpush1.msra.mxu0 0.0
    %1218 = vmatprep.subr.mxu0 0.0
    %1219 = vmatpush1.msra.mxu0 0.0
    %1220 = vmatprep.subr.mxu0 0.0
    %1221 = vmatpush1.msra.mxu0 0.0
    %1222 = vmatprep.subr.mxu0 0.0
    %1223 = vmatpush1.msra.mxu0 0.0
    %1224 = vmatprep.subr.mxu0 0.0
    %1225 = vmatpush1.msra.mxu0 0.0
    %1226 = vmatprep.subr.mxu0 0.0
    %1227 = vmatpush1.msra.mxu0 0.0
    %1228 = vmatprep.mubr.f32.mxu0 0.0
    %1229 = vmatmul.mubr.f32.gmra.mrb[0].mxu0 %v1162
    %v1230 = vpop.f32.mrb[0].mxu0
    %v1231 = vadd.f32 0.0, %v1230
    %v1232 = vpop.f32.mrb[0].mxu0
    %1233 = vdwg.mxu0
    %1234 = vrot.lane.b32.xlu0 %v233, 104
    %v1235 = vpop.permute.xlu0 %1234
    %1236 = vrot.lane.b32.xlu0 %v233, 72
    %v1237 = vpop.permute.xlu0 %1236
    %v1238 = vsel %vm242, %v1235, 0
    %v1240 = vsel %vm242, %v1237, 0
    %1242 = vmatprep.subr.mxu0 0.0
    %1243 = vmatpush1.xpose.msra.mxu0 %v1240
    %1244 = vmatprep.subr.mxu0 0.0
    %1245 = vmatpush1.xpose.msra.mxu0 0.0
    %1246 = vmatprep.subr.mxu0 0.0
    %1247 = vmatpush1.xpose.msra.mxu0 0.0
    %1248 = vmatprep.subr.mxu0 0.0
    %1249 = vmatpush1.xpose.msra.mxu0 0.0
    %1250 = vmatprep.subr.mxu0 0.0
    %1251 = vmatpush1.xpose.msra.mxu0 0.0
    %1252 = vmatprep.subr.mxu0 0.0
    %1253 = vmatpush1.xpose.msra.mxu0 0.0
    %1254 = vmatprep.subr.mxu0 0.0
    %1255 = vmatpush1.xpose.msra.mxu0 0.0
    %1256 = vmatprep.subr.mxu0 0.0
    %1257 = vmatpush1.xpose.msra.mxu0 0.0
    %1258 = vmatprep.subr.mxu0 0.0
    %1259 = vmatpush1.xpose.msra.mxu0 0.0
    %1260 = vmatprep.subr.mxu0 0.0
    %1261 = vmatpush1.xpose.msra.mxu0 0.0
    %1262 = vmatprep.subr.mxu0 0.0
    %1263 = vmatpush1.xpose.msra.mxu0 0.0
    %1264 = vmatprep.subr.mxu0 0.0
    %1265 = vmatpush1.xpose.msra.mxu0 0.0
    %1266 = vmatprep.subr.mxu0 0.0
    %1267 = vmatpush1.xpose.msra.mxu0 0.0
    %1268 = vmatprep.subr.mxu0 0.0
    %1269 = vmatpush1.xpose.msra.mxu0 0.0
    %1270 = vmatprep.subr.mxu0 0.0
    %1271 = vmatpush1.xpose.msra.mxu0 0.0
    %1272 = vmatprep.subr.mxu0 0.0
    %1273 = vmatpush1.xpose.msra.mxu0 0.0
    %1274 = vmatprep.subr.mxu0 0.0
    %1275 = vmatpush1.xpose.msra.mxu0 0.0
    %1276 = vmatprep.subr.mxu0 0.0
    %1277 = vmatpush1.xpose.msra.mxu0 0.0
    %1278 = vmatprep.subr.mxu0 0.0
    %1279 = vmatpush1.xpose.msra.mxu0 0.0
    %1280 = vmatprep.subr.mxu0 0.0
    %1281 = vmatpush1.xpose.msra.mxu0 0.0
    %1282 = vmatprep.subr.mxu0 0.0
    %1283 = vmatpush1.xpose.msra.mxu0 0.0
    %1284 = vmatprep.subr.mxu0 0.0
    %1285 = vmatpush1.xpose.msra.mxu0 0.0
    %1286 = vmatprep.subr.mxu0 0.0
    %1287 = vmatpush1.xpose.msra.mxu0 0.0
    %1288 = vmatprep.subr.mxu0 0.0
    %1289 = vmatpush1.xpose.msra.mxu0 0.0
    %1290 = vmatprep.subr.mxu0 0.0
    %1291 = vmatpush1.xpose.msra.mxu0 0.0
    %1292 = vmatprep.subr.mxu0 0.0
    %1293 = vmatpush1.xpose.msra.mxu0 0.0
    %1294 = vmatprep.subr.mxu0 0.0
    %1295 = vmatpush1.xpose.msra.mxu0 0.0
    %1296 = vmatprep.subr.mxu0 0.0
    %1297 = vmatpush1.xpose.msra.mxu0 0.0
    %1298 = vmatprep.subr.mxu0 0.0
    %1299 = vmatpush1.xpose.msra.mxu0 0.0
    %1300 = vmatprep.subr.mxu0 0.0
    %1301 = vmatpush1.xpose.msra.mxu0 0.0
    %1302 = vmatprep.subr.mxu0 0.0
    %1303 = vmatpush1.xpose.msra.mxu0 0.0
    %1304 = vmatprep.subr.mxu0 0.0
    %1305 = vmatpush1.xpose.msra.mxu0 0.0
    %1306 = vmatprep.mubr.f32.mxu0 0.0
    %1307 = vmatmul.mubr.f32.gmra.mrb[0].mxu0 %v1238
    %v1308 = vpop.f32.mrb[0].mxu0
    %v1309 = vadd.f32 0.0, %v1308
    %v1310 = vpop.f32.mrb[0].mxu0
    %1311 = vdwg.mxu0
    %1312 = vrot.lane.b32.xlu0 %v236, 104
    %v1313 = vpop.permute.xlu0 %1312
    %1314 = vrot.lane.b32.xlu0 %v236, 72
    %v1315 = vpop.permute.xlu0 %1314
    %v1316 = vsel %vm242, %v1313, 0
    %v1318 = vsel %vm242, %v1315, 0
    %1320 = vmatprep.subr.mxu0 0.0
    %1321 = vmatpush1.xpose.msra.mxu0 %v1318
    %1322 = vmatprep.subr.mxu0 0.0
    %1323 = vmatpush1.xpose.msra.mxu0 0.0
    %1324 = vmatprep.subr.mxu0 0.0
    %1325 = vmatpush1.xpose.msra.mxu0 0.0
    %1326 = vmatprep.subr.mxu0 0.0
    %1327 = vmatpush1.xpose.msra.mxu0 0.0
    %1328 = vmatprep.subr.mxu0 0.0
    %1329 = vmatpush1.xpose.msra.mxu0 0.0
    %1330 = vmatprep.subr.mxu0 0.0
    %1331 = vmatpush1.xpose.msra.mxu0 0.0
    %1332 = vmatprep.subr.mxu0 0.0
    %1333 = vmatpush1.xpose.msra.mxu0 0.0
    %1334 = vmatprep.subr.mxu0 0.0
    %1335 = vmatpush1.xpose.msra.mxu0 0.0
    %1336 = vmatprep.subr.mxu0 0.0
    %1337 = vmatpush1.xpose.msra.mxu0 0.0
    %1338 = vmatprep.subr.mxu0 0.0
    %1339 = vmatpush1.xpose.msra.mxu0 0.0
    %1340 = vmatprep.subr.mxu0 0.0
    %1341 = vmatpush1.xpose.msra.mxu0 0.0
    %1342 = vmatprep.subr.mxu0 0.0
    %1343 = vmatpush1.xpose.msra.mxu0 0.0
    %1344 = vmatprep.subr.mxu0 0.0
    %1345 = vmatpush1.xpose.msra.mxu0 0.0
    %1346 = vmatprep.subr.mxu0 0.0
    %1347 = vmatpush1.xpose.msra.mxu0 0.0
    %1348 = vmatprep.subr.mxu0 0.0
    %1349 = vmatpush1.xpose.msra.mxu0 0.0
    %1350 = vmatprep.subr.mxu0 0.0
    %1351 = vmatpush1.xpose.msra.mxu0 0.0
    %1352 = vmatprep.subr.mxu0 0.0
    %1353 = vmatpush1.xpose.msra.mxu0 0.0
    %1354 = vmatprep.subr.mxu0 0.0
    %1355 = vmatpush1.xpose.msra.mxu0 0.0
    %1356 = vmatprep.subr.mxu0 0.0
    %1357 = vmatpush1.xpose.msra.mxu0 0.0
    %1358 = vmatprep.subr.mxu0 0.0
    %1359 = vmatpush1.xpose.msra.mxu0 0.0
    %1360 = vmatprep.subr.mxu0 0.0
    %1361 = vmatpush1.xpose.msra.mxu0 0.0
    %1362 = vmatprep.subr.mxu0 0.0
    %1363 = vmatpush1.xpose.msra.mxu0 0.0
    %1364 = vmatprep.subr.mxu0 0.0
    %1365 = vmatpush1.xpose.msra.mxu0 0.0
    %1366 = vmatprep.subr.mxu0 0.0
    %1367 = vmatpush1.xpose.msra.mxu0 0.0
    %1368 = vmatprep.subr.mxu0 0.0
    %1369 = vmatpush1.xpose.msra.mxu0 0.0
    %1370 = vmatprep.subr.mxu0 0.0
    %1371 = vmatpush1.xpose.msra.mxu0 0.0
    %1372 = vmatprep.subr.mxu0 0.0
    %1373 = vmatpush1.xpose.msra.mxu0 0.0
    %1374 = vmatprep.subr.mxu0 0.0
    %1375 = vmatpush1.xpose.msra.mxu0 0.0
    %1376 = vmatprep.subr.mxu0 0.0
    %1377 = vmatpush1.xpose.msra.mxu0 0.0
    %1378 = vmatprep.subr.mxu0 0.0
    %1379 = vmatpush1.xpose.msra.mxu0 0.0
    %1380 = vmatprep.subr.mxu0 0.0
    %1381 = vmatpush1.xpose.msra.mxu0 0.0
    %1382 = vmatprep.subr.mxu0 0.0
    %1383 = vmatpush1.xpose.msra.mxu0 0.0
    %1384 = vmatprep.mubr.f32.mxu0 0.0
    %1385 = vmatmul.mubr.f32.gmra.mrb[0].mxu0 %v1316
    %v1386 = vpop.f32.mrb[0].mxu0
    %v1387 = vadd.f32 0.0, %v1386
    %v1388 = vpop.f32.mrb[0].mxu0
    %1389 = vdwg.mxu0
    %v1390 = vmul.f32 %v1309, 0.35355338
    %v1391 = vmul.f32 %v1387, 0.35355338
    %v1392 = vsel %vm242, %v1390, -inf
    %1393 = vmax.xlane.f32.xlu0 %v1392
    %v1394 = vpop.xlane.xlu0 %1393
    %v1395 = vsel %vm242, %v1391, -inf
    %1396 = vmax.xlane.f32.xlu0 %v1395
    %v1397 = vpop.xlane.xlu0 %1396
    %v1398 = vsub.f32 %v1390, %v1394
    %v1399 = vsub.f32 %v1391, %v1397
    %v1400 = vmul.f32 %v1398, 1.442695
    %v1401 = vpow.pop %v1400
    %v1402 = vmul.f32 %v1399, 1.442695
    %v1403 = vpow.pop %v1402
    %v1404 = vsel %vm242, %v1401, 0.0
    %1405 = vadd.xlane.f32.xlu0 %v1404
    %v1406 = vpop.xlane.xlu0 %1405
    %v1407 = vsel %vm242, %v1403, 0.0
    %1408 = vadd.xlane.f32.xlu0 %v1407
    %v1409 = vpop.xlane.xlu0 %1408
    %v1410 = vrcp.pop %v1406
    %v1411 = vrcp.pop %v1409
    %v1412 = vmul.f32 %v1401, %v1410
    %v1413 = vmul.f32 %v1403, %v1411
    %1414 = vrot.lane.b32.xlu0 %v233, 40
    %v1415 = vpop.permute.xlu0 %1414
    %v1418 = vsel %vm242, %v1412, 0
    %1420 = vmatprep.subr.mxu0 0.0
    %1421 = vmatpush1.msra.mxu0 %v1415
    %1422 = vmatprep.subr.mxu0 0.0
    %1423 = vmatpush1.msra.mxu0 0.0
    %1424 = vmatprep.subr.mxu0 0.0
    %1425 = vmatpush1.msra.mxu0 0.0
    %1426 = vmatprep.subr.mxu0 0.0
    %1427 = vmatpush1.msra.mxu0 0.0
    %1428 = vmatprep.subr.mxu0 0.0
    %1429 = vmatpush1.msra.mxu0 0.0
    %1430 = vmatprep.subr.mxu0 0.0
    %1431 = vmatpush1.msra.mxu0 0.0
    %1432 = vmatprep.subr.mxu0 0.0
    %1433 = vmatpush1.msra.mxu0 0.0
    %1434 = vmatprep.subr.mxu0 0.0
    %1435 = vmatpush1.msra.mxu0 0.0
    %1436 = vmatprep.subr.mxu0 0.0
    %1437 = vmatpush1.msra.mxu0 0.0
    %1438 = vmatprep.subr.mxu0 0.0
    %1439 = vmatpush1.msra.mxu0 0.0
    %1440 = vmatprep.subr.mxu0 0.0
    %1441 = vmatpush1.msra.mxu0 0.0
    %1442 = vmatprep.subr.mxu0 0.0
    %1443 = vmatpush1.msra.mxu0 0.0
    %1444 = vmatprep.subr.mxu0 0.0
    %1445 = vmatpush1.msra.mxu0 0.0
    %1446 = vmatprep.subr.mxu0 0.0
    %1447 = vmatpush1.msra.mxu0 0.0
    %1448 = vmatprep.subr.mxu0 0.0
    %1449 = vmatpush1.msra.mxu0 0.0
    %1450 = vmatprep.subr.mxu0 0.0
    %1451 = vmatpush1.msra.mxu0 0.0
    %1452 = vmatprep.subr.mxu0 0.0
    %1453 = vmatpush1.msra.mxu0 0.0
    %1454 = vmatprep.subr.mxu0 0.0
    %1455 = vmatpush1.msra.mxu0 0.0
    %1456 = vmatprep.subr.mxu0 0.0
    %1457 = vmatpush1.msra.mxu0 0.0
    %1458 = vmatprep.subr.mxu0 0.0
    %1459 = vmatpush1.msra.mxu0 0.0
    %1460 = vmatprep.subr.mxu0 0.0
    %1461 = vmatpush1.msra.mxu0 0.0
    %1462 = vmatprep.subr.mxu0 0.0
    %1463 = vmatpush1.msra.mxu0 0.0
    %1464 = vmatprep.subr.mxu0 0.0
    %1465 = vmatpush1.msra.mxu0 0.0
    %1466 = vmatprep.subr.mxu0 0.0
    %1467 = vmatpush1.msra.mxu0 0.0
    %1468 = vmatprep.subr.mxu0 0.0
    %1469 = vmatpush1.msra.mxu0 0.0
    %1470 = vmatprep.subr.mxu0 0.0
    %1471 = vmatpush1.msra.mxu0 0.0
    %1472 = vmatprep.subr.mxu0 0.0
    %1473 = vmatpush1.msra.mxu0 0.0
    %1474 = vmatprep.subr.mxu0 0.0
    %1475 = vmatpush1.msra.mxu0 0.0
    %1476 = vmatprep.subr.mxu0 0.0
    %1477 = vmatpush1.msra.mxu0 0.0
    %1478 = vmatprep.subr.mxu0 0.0
    %1479 = vmatpush1.msra.mxu0 0.0
    %1480 = vmatprep.subr.mxu0 0.0
    %1481 = vmatpush1.msra.mxu0 0.0
    %1482 = vmatprep.subr.mxu0 0.0
    %1483 = vmatpush1.msra.mxu0 0.0
    %1484 = vmatprep.mubr.f32.mxu0 0.0
    %1485 = vmatmul.mubr.f32.gmra.mrb[0].mxu0 %v1418
    %v1486 = vpop.f32.mrb[0].mxu0
    %v1487 = vadd.f32 0.0, %v1486
    %v1488 = vpop.f32.mrb[0].mxu0
    %1489 = vdwg.mxu0
    %1490 = vrot.lane.b32.xlu0 %v236, 40
    %v1491 = vpop.permute.xlu0 %1490
    %v1494 = vsel %vm242, %v1413, 0
    %1496 = vmatprep.subr.mxu0 0.0
    %1497 = vmatpush1.msra.mxu0 %v1491
    %1498 = vmatprep.subr.mxu0 0.0
    %1499 = vmatpush1.msra.mxu0 0.0
    %1500 = vmatprep.subr.mxu0 0.0
    %1501 = vmatpush1.msra.mxu0 0.0
    %1502 = vmatprep.subr.mxu0 0.0
    %1503 = vmatpush1.msra.mxu0 0.0
    %1504 = vmatprep.subr.mxu0 0.0
    %1505 = vmatpush1.msra.mxu0 0.0
    %1506 = vmatprep.subr.mxu0 0.0
    %1507 = vmatpush1.msra.mxu0 0.0
    %1508 = vmatprep.subr.mxu0 0.0
    %1509 = vmatpush1.msra.mxu0 0.0
    %1510 = vmatprep.subr.mxu0 0.0
    %1511 = vmatpush1.msra.mxu0 0.0
    %1512 = vmatprep.subr.mxu0 0.0
    %1513 = vmatpush1.msra.mxu0 0.0
    %1514 = vmatprep.subr.mxu0 0.0
    %1515 = vmatpush1.msra.mxu0 0.0
    %1516 = vmatprep.subr.mxu0 0.0
    %1517 = vmatpush1.msra.mxu0 0.0
    %1518 = vmatprep.subr.mxu0 0.0
    %1519 = vmatpush1.msra.mxu0 0.0
    %1520 = vmatprep.subr.mxu0 0.0
    %1521 = vmatpush1.msra.mxu0 0.0
    %1522 = vmatprep.subr.mxu0 0.0
    %1523 = vmatpush1.msra.mxu0 0.0
    %1524 = vmatprep.subr.mxu0 0.0
    %1525 = vmatpush1.msra.mxu0 0.0
    %1526 = vmatprep.subr.mxu0 0.0
    %1527 = vmatpush1.msra.mxu0 0.0
    %1528 = vmatprep.subr.mxu0 0.0
    %1529 = vmatpush1.msra.mxu0 0.0
    %1530 = vmatprep.subr.mxu0 0.0
    %1531 = vmatpush1.msra.mxu0 0.0
    %1532 = vmatprep.subr.mxu0 0.0
    %1533 = vmatpush1.msra.mxu0 0.0
    %1534 = vmatprep.subr.mxu0 0.0
    %1535 = vmatpush1.msra.mxu0 0.0
    %1536 = vmatprep.subr.mxu0 0.0
    %1537 = vmatpush1.msra.mxu0 0.0
    %1538 = vmatprep.subr.mxu0 0.0
    %1539 = vmatpush1.msra.mxu0 0.0
    %1540 = vmatprep.subr.mxu0 0.0
    %1541 = vmatpush1.msra.mxu0 0.0
    %1542 = vmatprep.subr.mxu0 0.0
    %1543 = vmatpush1.msra.mxu0 0.0
    %1544 = vmatprep.subr.mxu0 0.0
    %1545 = vmatpush1.msra.mxu0 0.0
    %1546 = vmatprep.subr.mxu0 0.0
    %1547 = vmatpush1.msra.mxu0 0.0
    %1548 = vmatprep.subr.mxu0 0.0
    %1549 = vmatpush1.msra.mxu0 0.0
    %1550 = vmatprep.subr.mxu0 0.0
    %1551 = vmatpush1.msra.mxu0 0.0
    %1552 = vmatprep.subr.mxu0 0.0
    %1553 = vmatpush1.msra.mxu0 0.0
    %1554 = vmatprep.subr.mxu0 0.0
    %1555 = vmatpush1.msra.mxu0 0.0
    %1556 = vmatprep.subr.mxu0 0.0
    %1557 = vmatpush1.msra.mxu0 0.0
    %1558 = vmatprep.subr.mxu0 0.0
    %1559 = vmatpush1.msra.mxu0 0.0
    %1560 = vmatprep.mubr.f32.mxu0 0.0
    %1561 = vmatmul.mubr.f32.gmra.mrb[0].mxu0 %v1494
    %v1562 = vpop.f32.mrb[0].mxu0
    %v1563 = vadd.f32 0.0, %v1562
    %v1564 = vpop.f32.mrb[0].mxu0
    %1565 = vdwg.mxu0
    %1568 = vrot.lane.b32.xlu0 %v823, 8
    %v1569 = vpop.permute.xlu0 %1568
    %1570 = vrot.lane.b32.xlu0 %v899, 8
    %v1571 = vpop.permute.xlu0 %1570
    %1576 = vrot.lane.b32.xlu0 %v1155, 16
    %v1577 = vpop.permute.xlu0 %1576
    %1578 = vrot.lane.b32.xlu0 %v1231, 16
    %v1579 = vpop.permute.xlu0 %1578
    %1584 = vrot.lane.b32.xlu0 %v1487, 24
    %v1585 = vpop.permute.xlu0 %1584
    %1586 = vrot.lane.b32.xlu0 %v1563, 24
    %v1587 = vpop.permute.xlu0 %1586
    %v1590 = vsel %vm242, %v491, %v1569
    %v1591 = vsel %vm242, %v567, %v1571
    %vm1592 = vcmask 130048
    %v1593 = vsel %vm1592, %v1590, %v1577
    %v1594 = vsel %vm1592, %v1591, %v1579
    %vm1595 = vcmask 195584
    %v1596 = vsel %vm1595, %v1593, %v1585
    %v1597 = vsel %vm1595, %v1594, %v1587
    %v1598 = vpack.c.bf16 %v1597, %v1596
    %v1599 = vld [vmem:[%s3] sm:$0xf]
    %v1600 = vld [vmem:[%s3 + $0x4] sm:$0xf]
    %v1601 = vld [vmem:[%s3 + $0x8] sm:$0xf]
    %v1602 = vld [vmem:[%s3 + $0xc] sm:$0xf]
    %v1603 = vlaneseq
    %v1604 = vshrl.u32 %v1603, 7
    %v1605 = vsub.s32 1, %v1604
    %v1606 = vrot.slane %v172, %v1605
    %v1611 = vunpack.c.l.b16 %v1599
    %v1612 = vunpack.c.l.b16 %v1600
    %v1613 = vunpack.c.l.b16 %v1601
    %v1614 = vunpack.c.l.b16 %v1602
    %v1615 = vpack.c.b16 %v1612, %v1611
    %v1616 = vpack.c.b16 %v1614, %v1613
    %v1620 = vsel %vm194, %v1598, 0
    %1622 = vmatprep.subr.bf16.mxu0 0
    %1623 = vmatpush1.bf16.msra.mxu0 %v1615
    %1624 = vmatprep.subr.bf16.mxu0 0
    %1625 = vmatpush1.bf16.msra.mxu0 %v1616
    %1626 = vmatprep.subr.bf16.mxu0 0
    %1627 = vmatpush1.bf16.msra.mxu0 0
    %1628 = vmatprep.subr.bf16.mxu0 0
    %1629 = vmatpush1.bf16.msra.mxu0 0
    %1630 = vmatprep.subr.bf16.mxu0 0
    %1631 = vmatpush1.bf16.msra.mxu0 0
    %1632 = vmatprep.subr.bf16.mxu0 0
    %1633 = vmatpush1.bf16.msra.mxu0 0
    %1634 = vmatprep.subr.bf16.mxu0 0
    %1635 = vmatpush1.bf16.msra.mxu0 0
    %1636 = vmatprep.subr.bf16.mxu0 0
    %1637 = vmatpush1.bf16.msra.mxu0 0
    %1638 = vmatprep.subr.bf16.mxu0 0
    %1639 = vmatpush1.bf16.msra.mxu0 0
    %1640 = vmatprep.subr.bf16.mxu0 0
    %1641 = vmatpush1.bf16.msra.mxu0 0
    %1642 = vmatprep.subr.bf16.mxu0 0
    %1643 = vmatpush1.bf16.msra.mxu0 0
    %1644 = vmatprep.subr.bf16.mxu0 0
    %1645 = vmatpush1.bf16.msra.mxu0 0
    %1646 = vmatprep.subr.bf16.mxu0 0
    %1647 = vmatpush1.bf16.msra.mxu0 0
    %1648 = vmatprep.subr.bf16.mxu0 0
    %1649 = vmatpush1.bf16.msra.mxu0 0
    %1650 = vmatprep.subr.bf16.mxu0 0
    %1651 = vmatpush1.bf16.msra.mxu0 0
    %1652 = vmatprep.subr.bf16.mxu0 0
    %1653 = vmatpush1.bf16.msra.mxu0 0
    %1654 = vmatprep.mubr.bf16.mxu0 0
    %1655 = vmatmul.mubr.bf16.gmra.mrb[0].mxu0 %v1620
    %v1656 = vpop.f32.mrb[0].mxu0
    %v1657 = vadd.f32 %v1606, %v1656
    %v1658 = vpop.f32.mrb[0].mxu0
    %v1659 = vpop.f32.mrb[0].mxu0
    %v1660 = vadd.f32 %v1606, %v1659
    %v1661 = vpop.f32.mrb[0].mxu0
    %1662 = vdwg.mxu0
    %v1663 = vadd.f32 %v164, %v1657
    %v1664 = vadd.f32 %v169, %v1660
    %v1665 = vsel %vm194, %v1663, 0.0
    %1666 = vadd.xlane.f32.xlu0 %v1665
    %v1667 = vpop.xlane.xlu0 %1666
    %v1668 = vsel %vm194, %v1664, 0.0
    %1669 = vadd.xlane.f32.xlu0 %v1668
    %v1670 = vpop.xlane.xlu0 %1669
    %v1671 = vrcp.pop 32.0
    %v1672 = vmul.f32 %v1667, %v1671
    %v1673 = vmul.f32 %v1670, %v1671
    %v1674 = vsub.f32 %v1663, %v1672
    %v1675 = vsub.f32 %v1664, %v1673
    %v1676 = vmul.f32 %v1674, %v1674
    %v1677 = vmul.f32 %v1675, %v1675
    %v1678 = vsel %vm194, %v1676, 0.0
    %1679 = vadd.xlane.f32.xlu0 %v1678
    %v1680 = vpop.xlane.xlu0 %1679
    %v1681 = vsel %vm194, %v1677, 0.0
    %1682 = vadd.xlane.f32.xlu0 %v1681
    %v1683 = vpop.xlane.xlu0 %1682
    %v1684 = vmul.f32 %v1680, %v1671
    %v1685 = vmul.f32 %v1683, %v1671
    %v1686 = vadd.f32 %v1684, 1e-05
    %v1687 = vadd.f32 %v1685, 1e-05
    %v1688 = vrsqrt.pop %v1686
    %v1689 = vrsqrt.pop %v1687
    %v1690 = vmul.f32 %v1674, %v1688
    %v1691 = vmul.f32 %v1675, %v1689
    %v1692 = vlaneseq
    %v1693 = vshrl.u32 %v1692, 7
    %v1694 = vsub.s32 2, %v1693
    %v1695 = vrot.slane %v172, %v1694
    %v1696 = vmul.f32 %v1690, %v1695
    %v1697 = vmul.f32 %v1691, %v1695
    %v1698 = vlaneseq
    %v1699 = vshrl.u32 %v1698, 7
    %v1700 = vsub.s32 3, %v1699
    %v1701 = vrot.slane %v172, %v1700
    %v1702 = vadd.f32 %v1696, %v1701
    %v1703 = vadd.f32 %v1697, %v1701
    %v1704 = vpack.c.bf16 %v1703, %v1702
    %v1705 = vld [vmem:[#allocation2] sm:$0xff]
    %v1706 = vld [vmem:[#allocation2 + $0x8] sm:$0xff]
    %v1707 = vld [vmem:[#allocation2 + $0x10] sm:$0xff]
    %v1708 = vld [vmem:[#allocation2 + $0x18] sm:$0xff]
    %v1709 = vld [vmem:[#allocation2 + $0x20] sm:$0xff]
    %v1710 = vld [vmem:[#allocation2 + $0x28] sm:$0xff]
    %v1711 = vld [vmem:[#allocation2 + $0x30] sm:$0xff]
    %v1712 = vld [vmem:[#allocation2 + $0x38] sm:$0xff]
    %v1713 = vld [vmem:[#allocation2 + $0x40] sm:$0xff]
    %v1714 = vld [vmem:[#allocation2 + $0x48] sm:$0xff]
    %v1715 = vld [vmem:[#allocation2 + $0x50] sm:$0xff]
    %v1716 = vld [vmem:[#allocation2 + $0x58] sm:$0xff]
    %v1717 = vld [vmem:[#allocation2 + $0x60] sm:$0xff]
    %v1718 = vld [vmem:[#allocation2 + $0x68] sm:$0xff]
    %v1719 = vld [vmem:[#allocation2 + $0x70] sm:$0xff]
    %v1720 = vld [vmem:[#allocation2 + $0x78] sm:$0xff]
    %v1721 = vld [vmem:[#allocation2 + $0x80] sm:$0xff]
    %v1722 = vld [vmem:[#allocation2 + $0x88] sm:$0xff]
    %v1723 = vld [vmem:[#allocation2 + $0x90] sm:$0xff]
    %v1724 = vld [vmem:[#allocation2 + $0x98] sm:$0xff]
    %v1725 = vld [vmem:[#allocation2 + $0xa0] sm:$0xff]
    %v1726 = vld [vmem:[#allocation2 + $0xa8] sm:$0xff]
    %v1727 = vld [vmem:[#allocation2 + $0xb0] sm:$0xff]
    %v1728 = vld [vmem:[#allocation2 + $0xb8] sm:$0xff]
    %v1729 = vld [vmem:[#allocation2 + $0xc0] sm:$0xff]
    %v1730 = vld [vmem:[#allocation2 + $0xc8] sm:$0xff]
    %v1731 = vld [vmem:[#allocation2 + $0xd0] sm:$0xff]
    %v1732 = vld [vmem:[#allocation2 + $0xd8] sm:$0xff]
    %v1733 = vld [vmem:[#allocation2 + $0xe0] sm:$0xff]
    %v1734 = vld [vmem:[#allocation2 + $0xe8] sm:$0xff]
    %v1735 = vld [vmem:[#allocation2 + $0xf0] sm:$0xff]
    %v1736 = vld [vmem:[#allocation2 + $0xf8] sm:$0xff]
    %v1737 = vld [vmem:[%s5] sm:$0xff]
    %v1738 = vld [vmem:[%s5 + $0x8] sm:$0xff]
    %v1741 = vlaneseq
    %v1742 = vshrl.u32 %v1741, 7
    %v1743 = vsub.s32 0, %v1742
    %v1744 = vrot.slane %v1737, %v1743
    %v1745 = vlaneseq
    %v1746 = vshrl.u32 %v1745, 7
    %v1747 = vsub.s32 1, %v1746
    %v1748 = vrot.slane %v1737, %v1747
    %v1749 = vlaneseq
    %v1750 = vshrl.u32 %v1749, 7
    %v1751 = vsub.s32 2, %v1750
    %v1752 = vrot.slane %v1737, %v1751
    %v1753 = vlaneseq
    %v1754 = vshrl.u32 %v1753, 7
    %v1755 = vsub.s32 3, %v1754
    %v1756 = vrot.slane %v1737, %v1755
    %v1757 = vlaneseq
    %v1758 = vshrl.u32 %v1757, 7
    %v1759 = vsub.s32 4, %v1758
    %v1760 = vrot.slane %v1737, %v1759
    %v1761 = vlaneseq
    %v1762 = vshrl.u32 %v1761, 7
    %v1763 = vsub.s32 5, %v1762
    %v1764 = vrot.slane %v1737, %v1763
    %v1765 = vlaneseq
    %v1766 = vshrl.u32 %v1765, 7
    %v1767 = vsub.s32 6, %v1766
    %v1768 = vrot.slane %v1737, %v1767
    %v1769 = vlaneseq
    %v1770 = vshrl.u32 %v1769, 7
    %v1771 = vsub.s32 7, %v1770
    %v1772 = vrot.slane %v1737, %v1771
    %v1773 = vlaneseq
    %v1774 = vshrl.u32 %v1773, 7
    %v1775 = vsub.s32 0, %v1774
    %v1776 = vrot.slane %v1738, %v1775
    %v1777 = vlaneseq
    %v1778 = vshrl.u32 %v1777, 7
    %v1779 = vsub.s32 1, %v1778
    %v1780 = vrot.slane %v1738, %v1779
    %v1781 = vlaneseq
    %v1782 = vshrl.u32 %v1781, 7
    %v1783 = vsub.s32 2, %v1782
    %v1784 = vrot.slane %v1738, %v1783
    %v1785 = vlaneseq
    %v1786 = vshrl.u32 %v1785, 7
    %v1787 = vsub.s32 3, %v1786
    %v1788 = vrot.slane %v1738, %v1787
    %v1789 = vlaneseq
    %v1790 = vshrl.u32 %v1789, 7
    %v1791 = vsub.s32 4, %v1790
    %v1792 = vrot.slane %v1738, %v1791
    %v1793 = vlaneseq
    %v1794 = vshrl.u32 %v1793, 7
    %v1795 = vsub.s32 5, %v1794
    %v1796 = vrot.slane %v1738, %v1795
    %v1797 = vlaneseq
    %v1798 = vshrl.u32 %v1797, 7
    %v1799 = vsub.s32 6, %v1798
    %v1800 = vrot.slane %v1738, %v1799
    %v1801 = vlaneseq
    %v1802 = vshrl.u32 %v1801, 7
    %v1803 = vsub.s32 7, %v1802
    %v1804 = vrot.slane %v1738, %v1803
    %v1853 = vunpack.c.l.b16 %v1705
    %v1854 = vunpack.c.h.b16 %v1705
    %v1855 = vunpack.c.l.b16 %v1706
    %v1856 = vunpack.c.h.b16 %v1706
    %v1857 = vunpack.c.l.b16 %v1707
    %v1858 = vunpack.c.h.b16 %v1707
    %v1859 = vunpack.c.l.b16 %v1708
    %v1860 = vunpack.c.h.b16 %v1708
    %v1861 = vunpack.c.l.b16 %v1709
    %v1862 = vunpack.c.h.b16 %v1709
    %v1863 = vunpack.c.l.b16 %v1710
    %v1864 = vunpack.c.h.b16 %v1710
    %v1865 = vunpack.c.l.b16 %v1711
    %v1866 = vunpack.c.h.b16 %v1711
    %v1867 = vunpack.c.l.b16 %v1712
    %v1868 = vunpack.c.h.b16 %v1712
    %v1869 = vunpack.c.l.b16 %v1713
    %v1870 = vunpack.c.h.b16 %v1713
    %v1871 = vunpack.c.l.b16 %v1714
    %v1872 = vunpack.c.h.b16 %v1714
    %v1873 = vunpack.c.l.b16 %v1715
    %v1874 = vunpack.c.h.b16 %v1715
    %v1875 = vunpack.c.l.b16 %v1716
    %v1876 = vunpack.c.h.b16 %v1716
    %v1877 = vunpack.c.l.b16 %v1717
    %v1878 = vunpack.c.h.b16 %v1717
    %v1879 = vunpack.c.l.b16 %v1718
    %v1880 = vunpack.c.h.b16 %v1718
    %v1881 = vunpack.c.l.b16 %v1719
    %v1882 = vunpack.c.h.b16 %v1719
    %v1883 = vunpack.c.l.b16 %v1720
    %v1884 = vunpack.c.h.b16 %v1720
    %v1885 = vunpack.c.l.b16 %v1721
    %v1886 = vunpack.c.h.b16 %v1721
    %v1887 = vunpack.c.l.b16 %v1722
    %v1888 = vunpack.c.h.b16 %v1722
    %v1889 = vunpack.c.l.b16 %v1723
    %v1890 = vunpack.c.h.b16 %v1723
    %v1891 = vunpack.c.l.b16 %v1724
    %v1892 = vunpack.c.h.b16 %v1724
    %v1893 = vunpack.c.l.b16 %v1725
    %v1894 = vunpack.c.h.b16 %v1725
    %v1895 = vunpack.c.l.b16 %v1726
    %v1896 = vunpack.c.h.b16 %v1726
    %v1897 = vunpack.c.l.b16 %v1727
    %v1898 = vunpack.c.h.b16 %v1727
    %v1899 = vunpack.c.l.b16 %v1728
    %v1900 = vunpack.c.h.b16 %v1728
    %v1901 = vunpack.c.l.b16 %v1729
    %v1902 = vunpack.c.h.b16 %v1729
    %v1903 = vunpack.c.l.b16 %v1730
    %v1904 = vunpack.c.h.b16 %v1730
    %v1905 = vunpack.c.l.b16 %v1731
    %v1906 = vunpack.c.h.b16 %v1731
    %v1907 = vunpack.c.l.b16 %v1732
    %v1908 = vunpack.c.h.b16 %v1732
    %v1909 = vunpack.c.l.b16 %v1733
    %v1910 = vunpack.c.h.b16 %v1733
    %v1911 = vunpack.c.l.b16 %v1734
    %v1912 = vunpack.c.h.b16 %v1734
    %v1913 = vunpack.c.l.b16 %v1735
    %v1914 = vunpack.c.h.b16 %v1735
    %v1915 = vunpack.c.l.b16 %v1736
    %v1916 = vunpack.c.h.b16 %v1736
    %v1917 = vpack.c.b16 %v1869, %v1853
    %v1918 = vpack.c.b16 %v1870, %v1854
    %v1919 = vpack.c.b16 %v1871, %v1855
    %v1920 = vpack.c.b16 %v1872, %v1856
    %v1921 = vpack.c.b16 %v1873, %v1857
    %v1922 = vpack.c.b16 %v1874, %v1858
    %v1923 = vpack.c.b16 %v1875, %v1859
    %v1924 = vpack.c.b16 %v1876, %v1860
    %v1925 = vpack.c.b16 %v1877, %v1861
    %v1926 = vpack.c.b16 %v1878, %v1862
    %v1927 = vpack.c.b16 %v1879, %v1863
    %v1928 = vpack.c.b16 %v1880, %v1864
    %v1929 = vpack.c.b16 %v1881, %v1865
    %v1930 = vpack.c.b16 %v1882, %v1866
    %v1931 = vpack.c.b16 %v1883, %v1867
    %v1932 = vpack.c.b16 %v1884, %v1868
    %v1933 = vpack.c.b16 %v1901, %v1885
    %v1934 = vpack.c.b16 %v1902, %v1886
    %v1935 = vpack.c.b16 %v1903, %v1887
    %v1936 = vpack.c.b16 %v1904, %v1888
    %v1937 = vpack.c.b16 %v1905, %v1889
    %v1938 = vpack.c.b16 %v1906, %v1890
    %v1939 = vpack.c.b16 %v1907, %v1891
    %v1940 = vpack.c.b16 %v1908, %v1892
    %v1941 = vpack.c.b16 %v1909, %v1893
    %v1942 = vpack.c.b16 %v1910, %v1894
    %v1943 = vpack.c.b16 %v1911, %v1895
    %v1944 = vpack.c.b16 %v1912, %v1896
    %v1945 = vpack.c.b16 %v1913, %v1897
    %v1946 = vpack.c.b16 %v1914, %v1898
    %v1947 = vpack.c.b16 %v1915, %v1899
    %v1948 = vpack.c.b16 %v1916, %v1900
    %v1982 = vsel %vm194, %v1704, 0
    %1984 = vmatprep.subr.bf16.mxu0 %v1918
    %1985 = vmatpush1.bf16.msra.mxu0 %v1917
    %1986 = vmatprep.subr.bf16.mxu0 %v1934
    %1987 = vmatpush1.bf16.msra.mxu0 %v1933
    %1988 = vmatprep.subr.bf16.mxu0 0
    %1989 = vmatpush1.bf16.msra.mxu0 0
    %1990 = vmatprep.subr.bf16.mxu0 0
    %1991 = vmatpush1.bf16.msra.mxu0 0
    %1992 = vmatprep.subr.bf16.mxu0 0
    %1993 = vmatpush1.bf16.msra.mxu0 0
    %1994 = vmatprep.subr.bf16.mxu0 0
    %1995 = vmatpush1.bf16.msra.mxu0 0
    %1996 = vmatprep.subr.bf16.mxu0 0
    %1997 = vmatpush1.bf16.msra.mxu0 0
    %1998 = vmatprep.subr.bf16.mxu0 0
    %1999 = vmatpush1.bf16.msra.mxu0 0
    %2000 = vmatprep.subr.bf16.mxu0 0
    %2001 = vmatpush1.bf16.msra.mxu0 0
    %2002 = vmatprep.subr.bf16.mxu0 0
    %2003 = vmatpush1.bf16.msra.mxu0 0
    %2004 = vmatprep.subr.bf16.mxu0 0
    %2005 = vmatpush1.bf16.msra.mxu0 0
    %2006 = vmatprep.subr.bf16.mxu0 0
    %2007 = vmatpush1.bf16.msra.mxu0 0
    %2008 = vmatprep.subr.bf16.mxu0 0
    %2009 = vmatpush1.bf16.msra.mxu0 0
    %2010 = vmatprep.subr.bf16.mxu0 0
    %2011 = vmatpush1.bf16.msra.mxu0 0
    %2012 = vmatprep.subr.bf16.mxu0 0
    %2013 = vmatpush1.bf16.msra.mxu0 0
    %2014 = vmatprep.subr.bf16.mxu0 0
    %2015 = vmatpush1.bf16.msra.mxu0 0
    %2016 = vmatprep.mubr.bf16.mxu0 0
    %2017 = vmatmul.mubr.bf16.gmra.mrb[0].mxu0 %v1982
    %v2018 = vpop.f32.mrb[0].mxu0
    %v2019 = vadd.f32 %v1744, %v2018
    %v2020 = vpop.f32.mrb[0].mxu0
    %v2021 = vadd.f32 %v1748, %v2020
    %v2022 = vpop.f32.mrb[0].mxu0
    %v2023 = vadd.f32 %v1744, %v2022
    %v2024 = vpop.f32.mrb[0].mxu0
    %v2025 = vadd.f32 %v1748, %v2024
    %2026 = vdwg.mxu0
    %2027 = vmatprep.subr.bf16.mxu0 %v1920
    %2028 = vmatpush1.bf16.msra.mxu0 %v1919
    %2029 = vmatprep.subr.bf16.mxu0 %v1936
    %2030 = vmatpush1.bf16.msra.mxu0 %v1935
    %2031 = vmatprep.subr.bf16.mxu0 0
    %2032 = vmatpush1.bf16.msra.mxu0 0
    %2033 = vmatprep.subr.bf16.mxu0 0
    %2034 = vmatpush1.bf16.msra.mxu0 0
    %2035 = vmatprep.subr.bf16.mxu0 0
    %2036 = vmatpush1.bf16.msra.mxu0 0
    %2037 = vmatprep.subr.bf16.mxu0 0
    %2038 = vmatpush1.bf16.msra.mxu0 0
    %2039 = vmatprep.subr.bf16.mxu0 0
    %2040 = vmatpush1.bf16.msra.mxu0 0
    %2041 = vmatprep.subr.bf16.mxu0 0
    %2042 = vmatpush1.bf16.msra.mxu0 0
    %2043 = vmatprep.subr.bf16.mxu0 0
    %2044 = vmatpush1.bf16.msra.mxu0 0
    %2045 = vmatprep.subr.bf16.mxu0 0
    %2046 = vmatpush1.bf16.msra.mxu0 0
    %2047 = vmatprep.subr.bf16.mxu0 0
    %2048 = vmatpush1.bf16.msra.mxu0 0
    %2049 = vmatprep.subr.bf16.mxu0 0
    %2050 = vmatpush1.bf16.msra.mxu0 0
    %2051 = vmatprep.subr.bf16.mxu0 0
    %2052 = vmatpush1.bf16.msra.mxu0 0
    %2053 = vmatprep.subr.bf16.mxu0 0
    %2054 = vmatpush1.bf16.msra.mxu0 0
    %2055 = vmatprep.subr.bf16.mxu0 0
    %2056 = vmatpush1.bf16.msra.mxu0 0
    %2057 = vmatprep.subr.bf16.mxu0 0
    %2058 = vmatpush1.bf16.msra.mxu0 0
    %2059 = vmatprep.mubr.bf16.mxu0 0
    %2060 = vmatmul.mubr.bf16.gmra.mrb[0].mxu0 %v1982
    %v2061 = vpop.f32.mrb[0].mxu0
    %v2062 = vadd.f32 %v1752, %v2061
    %v2063 = vpop.f32.mrb[0].mxu0
    %v2064 = vadd.f32 %v1756, %v2063
    %v2065 = vpop.f32.mrb[0].mxu0
    %v2066 = vadd.f32 %v1752, %v2065
    %v2067 = vpop.f32.mrb[0].mxu0
    %v2068 = vadd.f32 %v1756, %v2067
    %2069 = vdwg.mxu0
    %2070 = vmatprep.subr.bf16.mxu0 %v1922
    %2071 = vmatpush1.bf16.msra.mxu0 %v1921
    %2072 = vmatprep.subr.bf16.mxu0 %v1938
    %2073 = vmatpush1.bf16.msra.mxu0 %v1937
    %2074 = vmatprep.subr.bf16.mxu0 0
    %2075 = vmatpush1.bf16.msra.mxu0 0
    %2076 = vmatprep.subr.bf16.mxu0 0
    %2077 = vmatpush1.bf16.msra.mxu0 0
    %2078 = vmatprep.subr.bf16.mxu0 0
    %2079 = vmatpush1.bf16.msra.mxu0 0
    %2080 = vmatprep.subr.bf16.mxu0 0
    %2081 = vmatpush1.bf16.msra.mxu0 0
    %2082 = vmatprep.subr.bf16.mxu0 0
    %2083 = vmatpush1.bf16.msra.mxu0 0
    %2084 = vmatprep.subr.bf16.mxu0 0
    %2085 = vmatpush1.bf16.msra.mxu0 0
    %2086 = vmatprep.subr.bf16.mxu0 0
    %2087 = vmatpush1.bf16.msra.mxu0 0
    %2088 = vmatprep.subr.bf16.mxu0 0
    %2089 = vmatpush1.bf16.msra.mxu0 0
    %2090 = vmatprep.subr.bf16.mxu0 0
    %2091 = vmatpush1.bf16.msra.mxu0 0
    %2092 = vmatprep.subr.bf16.mxu0 0
    %2093 = vmatpush1.bf16.msra.mxu0 0
    %2094 = vmatprep.subr.bf16.mxu0 0
    %2095 = vmatpush1.bf16.msra.mxu0 0
    %2096 = vmatprep.subr.bf16.mxu0 0
    %2097 = vmatpush1.bf16.msra.mxu0 0
    %2098 = vmatprep.subr.bf16.mxu0 0
    %2099 = vmatpush1.bf16.msra.mxu0 0
    %2100 = vmatprep.subr.bf16.mxu0 0
    %2101 = vmatpush1.bf16.msra.mxu0 0
    %2102 = vmatprep.mubr.bf16.mxu0 0
    %2103 = vmatmul.mubr.bf16.gmra.mrb[0].mxu0 %v1982
    %v2104 = vpop.f32.mrb[0].mxu0
    %v2105 = vadd.f32 %v1760, %v2104
    %v2106 = vpop.f32.mrb[0].mxu0
    %v2107 = vadd.f32 %v1764, %v2106
    %v2108 = vpop.f32.mrb[0].mxu0
    %v2109 = vadd.f32 %v1760, %v2108
    %v2110 = vpop.f32.mrb[0].mxu0
    %v2111 = vadd.f32 %v1764, %v2110
    %2112 = vdwg.mxu0
    %2113 = vmatprep.subr.bf16.mxu0 %v1924
    %2114 = vmatpush1.bf16.msra.mxu0 %v1923
    %2115 = vmatprep.subr.bf16.mxu0 %v1940
    %2116 = vmatpush1.bf16.msra.mxu0 %v1939
    %2117 = vmatprep.subr.bf16.mxu0 0
    %2118 = vmatpush1.bf16.msra.mxu0 0
    %2119 = vmatprep.subr.bf16.mxu0 0
    %2120 = vmatpush1.bf16.msra.mxu0 0
    %2121 = vmatprep.subr.bf16.mxu0 0
    %2122 = vmatpush1.bf16.msra.mxu0 0
    %2123 = vmatprep.subr.bf16.mxu0 0
    %2124 = vmatpush1.bf16.msra.mxu0 0
    %2125 = vmatprep.subr.bf16.mxu0 0
    %2126 = vmatpush1.bf16.msra.mxu0 0
    %2127 = vmatprep.subr.bf16.mxu0 0
    %2128 = vmatpush1.bf16.msra.mxu0 0
    %2129 = vmatprep.subr.bf16.mxu0 0
    %2130 = vmatpush1.bf16.msra.mxu0 0
    %2131 = vmatprep.subr.bf16.mxu0 0
    %2132 = vmatpush1.bf16.msra.mxu0 0
    %2133 = vmatprep.subr.bf16.mxu0 0
    %2134 = vmatpush1.bf16.msra.mxu0 0
    %2135 = vmatprep.subr.bf16.mxu0 0
    %2136 = vmatpush1.bf16.msra.mxu0 0
    %2137 = vmatprep.subr.bf16.mxu0 0
    %2138 = vmatpush1.bf16.msra.mxu0 0
    %2139 = vmatprep.subr.bf16.mxu0 0
    %2140 = vmatpush1.bf16.msra.mxu0 0
    %2141 = vmatprep.subr.bf16.mxu0 0
    %2142 = vmatpush1.bf16.msra.mxu0 0
    %2143 = vmatprep.subr.bf16.mxu0 0
    %2144 = vmatpush1.bf16.msra.mxu0 0
    %2145 = vmatprep.mubr.bf16.mxu0 0
    %2146 = vmatmul.mubr.bf16.gmra.mrb[0].mxu0 %v1982
    %v2147 = vpop.f32.mrb[0].mxu0
    %v2148 = vadd.f32 %v1768, %v2147
    %v2149 = vpop.f32.mrb[0].mxu0
    %v2150 = vadd.f32 %v1772, %v2149
    %v2151 = vpop.f32.mrb[0].mxu0
    %v2152 = vadd.f32 %v1768, %v2151
    %v2153 = vpop.f32.mrb[0].mxu0
    %v2154 = vadd.f32 %v1772, %v2153
    %2155 = vdwg.mxu0
    %2156 = vmatprep.subr.bf16.mxu0 %v1926
    %2157 = vmatpush1.bf16.msra.mxu0 %v1925
    %2158 = vmatprep.subr.bf16.mxu0 %v1942
    %2159 = vmatpush1.bf16.msra.mxu0 %v1941
    %2160 = vmatprep.subr.bf16.mxu0 0
    %2161 = vmatpush1.bf16.msra.mxu0 0
    %2162 = vmatprep.subr.bf16.mxu0 0
    %2163 = vmatpush1.bf16.msra.mxu0 0
    %2164 = vmatprep.subr.bf16.mxu0 0
    %2165 = vmatpush1.bf16.msra.mxu0 0
    %2166 = vmatprep.subr.bf16.mxu0 0
    %2167 = vmatpush1.bf16.msra.mxu0 0
    %2168 = vmatprep.subr.bf16.mxu0 0
    %2169 = vmatpush1.bf16.msra.mxu0 0
    %2170 = vmatprep.subr.bf16.mxu0 0
    %2171 = vmatpush1.bf16.msra.mxu0 0
    %2172 = vmatprep.subr.bf16.mxu0 0
    %2173 = vmatpush1.bf16.msra.mxu0 0
    %2174 = vmatprep.subr.bf16.mxu0 0
    %2175 = vmatpush1.bf16.msra.mxu0 0
    %2176 = vmatprep.subr.bf16.mxu0 0
    %2177 = vmatpush1.bf16.msra.mxu0 0
    %2178 = vmatprep.subr.bf16.mxu0 0
    %2179 = vmatpush1.bf16.msra.mxu0 0
    %2180 = vmatprep.subr.bf16.mxu0 0
    %2181 = vmatpush1.bf16.msra.mxu0 0
    %2182 = vmatprep.subr.bf16.mxu0 0
    %2183 = vmatpush1.bf16.msra.mxu0 0
    %2184 = vmatprep.subr.bf16.mxu0 0
    %2185 = vmatpush1.bf16.msra.mxu0 0
    %2186 = vmatprep.subr.bf16.mxu0 0
    %2187 = vmatpush1.bf16.msra.mxu0 0
    %2188 = vmatprep.mubr.bf16.mxu0 0
    %2189 = vmatmul.mubr.bf16.gmra.mrb[0].mxu0 %v1982
    %v2190 = vpop.f32.mrb[0].mxu0
    %v2191 = vadd.f32 %v1776, %v2190
    %v2192 = vpop.f32.mrb[0].mxu0
    %v2193 = vadd.f32 %v1780, %v2192
    %v2194 = vpop.f32.mrb[0].mxu0
    %v2195 = vadd.f32 %v1776, %v2194
    %v2196 = vpop.f32.mrb[0].mxu0
    %v2197 = vadd.f32 %v1780, %v2196
    %2198 = vdwg.mxu0
    %2199 = vmatprep.subr.bf16.mxu0 %v1928
    %2200 = vmatpush1.bf16.msra.mxu0 %v1927
    %2201 = vmatprep.subr.bf16.mxu0 %v1944
    %2202 = vmatpush1.bf16.msra.mxu0 %v1943
    %2203 = vmatprep.subr.bf16.mxu0 0
    %2204 = vmatpush1.bf16.msra.mxu0 0
    %2205 = vmatprep.subr.bf16.mxu0 0
    %2206 = vmatpush1.bf16.msra.mxu0 0
    %2207 = vmatprep.subr.bf16.mxu0 0
    %2208 = vmatpush1.bf16.msra.mxu0 0
    %2209 = vmatprep.subr.bf16.mxu0 0
    %2210 = vmatpush1.bf16.msra.mxu0 0
    %2211 = vmatprep.subr.bf16.mxu0 0
    %2212 = vmatpush1.bf16.msra.mxu0 0
    %2213 = vmatprep.subr.bf16.mxu0 0
    %2214 = vmatpush1.bf16.msra.mxu0 0
    %2215 = vmatprep.subr.bf16.mxu0 0
    %2216 = vmatpush1.bf16.msra.mxu0 0
    %2217 = vmatprep.subr.bf16.mxu0 0
    %2218 = vmatpush1.bf16.msra.mxu0 0
    %2219 = vmatprep.subr.bf16.mxu0 0
    %2220 = vmatpush1.bf16.msra.mxu0 0
    %2221 = vmatprep.subr.bf16.mxu0 0
    %2222 = vmatpush1.bf16.msra.mxu0 0
    %2223 = vmatprep.subr.bf16.mxu0 0
    %2224 = vmatpush1.bf16.msra.mxu0 0
    %2225 = vmatprep.subr.bf16.mxu0 0
    %2226 = vmatpush1.bf16.msra.mxu0 0
    %2227 = vmatprep.subr.bf16.mxu0 0
    %2228 = vmatpush1.bf16.msra.mxu0 0
    %2229 = vmatprep.subr.bf16.mxu0 0
    %2230 = vmatpush1.bf16.msra.mxu0 0
    %2231 = vmatprep.mubr.bf16.mxu0 0
    %2232 = vmatmul.mubr.bf16.gmra.mrb[0].mxu0 %v1982
    %v2233 = vpop.f32.mrb[0].mxu0
    %v2234 = vadd.f32 %v1784, %v2233
    %v2235 = vpop.f32.mrb[0].mxu0
    %v2236 = vadd.f32 %v1788, %v2235
    %v2237 = vpop.f32.mrb[0].mxu0
    %v2238 = vadd.f32 %v1784, %v2237
    %v2239 = vpop.f32.mrb[0].mxu0
    %v2240 = vadd.f32 %v1788, %v2239
    %2241 = vdwg.mxu0
    %2242 = vmatprep.subr.bf16.mxu0 %v1930
    %2243 = vmatpush1.bf16.msra.mxu0 %v1929
    %2244 = vmatprep.subr.bf16.mxu0 %v1946
    %2245 = vmatpush1.bf16.msra.mxu0 %v1945
    %2246 = vmatprep.subr.bf16.mxu0 0
    %2247 = vmatpush1.bf16.msra.mxu0 0
    %2248 = vmatprep.subr.bf16.mxu0 0
    %2249 = vmatpush1.bf16.msra.mxu0 0
    %2250 = vmatprep.subr.bf16.mxu0 0
    %2251 = vmatpush1.bf16.msra.mxu0 0
    %2252 = vmatprep.subr.bf16.mxu0 0
    %2253 = vmatpush1.bf16.msra.mxu0 0
    %2254 = vmatprep.subr.bf16.mxu0 0
    %2255 = vmatpush1.bf16.msra.mxu0 0
    %2256 = vmatprep.subr.bf16.mxu0 0
    %2257 = vmatpush1.bf16.msra.mxu0 0
    %2258 = vmatprep.subr.bf16.mxu0 0
    %2259 = vmatpush1.bf16.msra.mxu0 0
    %2260 = vmatprep.subr.bf16.mxu0 0
    %2261 = vmatpush1.bf16.msra.mxu0 0
    %2262 = vmatprep.subr.bf16.mxu0 0
    %2263 = vmatpush1.bf16.msra.mxu0 0
    %2264 = vmatprep.subr.bf16.mxu0 0
    %2265 = vmatpush1.bf16.msra.mxu0 0
    %2266 = vmatprep.subr.bf16.mxu0 0
    %2267 = vmatpush1.bf16.msra.mxu0 0
    %2268 = vmatprep.subr.bf16.mxu0 0
    %2269 = vmatpush1.bf16.msra.mxu0 0
    %2270 = vmatprep.subr.bf16.mxu0 0
    %2271 = vmatpush1.bf16.msra.mxu0 0
    %2272 = vmatprep.subr.bf16.mxu0 0
    %2273 = vmatpush1.bf16.msra.mxu0 0
    %2274 = vmatprep.mubr.bf16.mxu0 0
    %2275 = vmatmul.mubr.bf16.gmra.mrb[0].mxu0 %v1982
    %v2276 = vpop.f32.mrb[0].mxu0
    %v2277 = vadd.f32 %v1792, %v2276
    %v2278 = vpop.f32.mrb[0].mxu0
    %v2279 = vadd.f32 %v1796, %v2278
    %v2280 = vpop.f32.mrb[0].mxu0
    %v2281 = vadd.f32 %v1792, %v2280
    %v2282 = vpop.f32.mrb[0].mxu0
    %v2283 = vadd.f32 %v1796, %v2282
    %2284 = vdwg.mxu0
    %2285 = vmatprep.subr.bf16.mxu0 %v1932
    %2286 = vmatpush1.bf16.msra.mxu0 %v1931
    %2287 = vmatprep.subr.bf16.mxu0 %v1948
    %2288 = vmatpush1.bf16.msra.mxu0 %v1947
    %2289 = vmatprep.subr.bf16.mxu0 0
    %2290 = vmatpush1.bf16.msra.mxu0 0
    %2291 = vmatprep.subr.bf16.mxu0 0
    %2292 = vmatpush1.bf16.msra.mxu0 0
    %2293 = vmatprep.subr.bf16.mxu0 0
    %2294 = vmatpush1.bf16.msra.mxu0 0
    %2295 = vmatprep.subr.bf16.mxu0 0
    %2296 = vmatpush1.bf16.msra.mxu0 0
    %2297 = vmatprep.subr.bf16.mxu0 0
    %2298 = vmatpush1.bf16.msra.mxu0 0
    %2299 = vmatprep.subr.bf16.mxu0 0
    %2300 = vmatpush1.bf16.msra.mxu0 0
    %2301 = vmatprep.subr.bf16.mxu0 0
    %2302 = vmatpush1.bf16.msra.mxu0 0
    %2303 = vmatprep.subr.bf16.mxu0 0
    %2304 = vmatpush1.bf16.msra.mxu0 0
    %2305 = vmatprep.subr.bf16.mxu0 0
    %2306 = vmatpush1.bf16.msra.mxu0 0
    %2307 = vmatprep.subr.bf16.mxu0 0
    %2308 = vmatpush1.bf16.msra.mxu0 0
    %2309 = vmatprep.subr.bf16.mxu0 0
    %2310 = vmatpush1.bf16.msra.mxu0 0
    %2311 = vmatprep.subr.bf16.mxu0 0
    %2312 = vmatpush1.bf16.msra.mxu0 0
    %2313 = vmatprep.subr.bf16.mxu0 0
    %2314 = vmatpush1.bf16.msra.mxu0 0
    %2315 = vmatprep.subr.bf16.mxu0 0
    %2316 = vmatpush1.bf16.msra.mxu0 0
    %2317 = vmatprep.mubr.bf16.mxu0 0
    %2318 = vmatmul.mubr.bf16.gmra.mrb[0].mxu0 %v1982
    %v2319 = vpop.f32.mrb[0].mxu0
    %v2320 = vadd.f32 %v1800, %v2319
    %v2321 = vpop.f32.mrb[0].mxu0
    %v2322 = vadd.f32 %v1804, %v2321
    %v2323 = vpop.f32.mrb[0].mxu0
    %v2324 = vadd.f32 %v1800, %v2323
    %v2325 = vpop.f32.mrb[0].mxu0
    %v2326 = vadd.f32 %v1804, %v2325
    %2327 = vdwg.mxu0
    %v2328 = vmax.f32 %v2019, 0.0
    %v2329 = vmax.f32 %v2021, 0.0
    %v2330 = vmax.f32 %v2062, 0.0
    %v2331 = vmax.f32 %v2064, 0.0
    %v2332 = vmax.f32 %v2105, 0.0
    %v2333 = vmax.f32 %v2107, 0.0
    %v2334 = vmax.f32 %v2148, 0.0
    %v2335 = vmax.f32 %v2150, 0.0
    %v2336 = vmax.f32 %v2191, 0.0
    %v2337 = vmax.f32 %v2193, 0.0
    %v2338 = vmax.f32 %v2234, 0.0
    %v2339 = vmax.f32 %v2236, 0.0
    %v2340 = vmax.f32 %v2277, 0.0
    %v2341 = vmax.f32 %v2279, 0.0
    %v2342 = vmax.f32 %v2320, 0.0
    %v2343 = vmax.f32 %v2322, 0.0
    %v2344 = vmax.f32 %v2023, 0.0
    %v2345 = vmax.f32 %v2025, 0.0
    %v2346 = vmax.f32 %v2066, 0.0
    %v2347 = vmax.f32 %v2068, 0.0
    %v2348 = vmax.f32 %v2109, 0.0
    %v2349 = vmax.f32 %v2111, 0.0
    %v2350 = vmax.f32 %v2152, 0.0
    %v2351 = vmax.f32 %v2154, 0.0
    %v2352 = vmax.f32 %v2195, 0.0
    %v2353 = vmax.f32 %v2197, 0.0
    %v2354 = vmax.f32 %v2238, 0.0
    %v2355 = vmax.f32 %v2240, 0.0
    %v2356 = vmax.f32 %v2281, 0.0
    %v2357 = vmax.f32 %v2283, 0.0
    %v2358 = vmax.f32 %v2324, 0.0
    %v2359 = vmax.f32 %v2326, 0.0
    %v2360 = vpack.c.bf16 %v2344, %v2328
    %v2361 = vpack.c.bf16 %v2345, %v2329
    %v2362 = vpack.c.bf16 %v2346, %v2330
    %v2363 = vpack.c.bf16 %v2347, %v2331
    %v2364 = vpack.c.bf16 %v2348, %v2332
    %v2365 = vpack.c.bf16 %v2349, %v2333
    %v2366 = vpack.c.bf16 %v2350, %v2334
    %v2367 = vpack.c.bf16 %v2351, %v2335
    %v2368 = vpack.c.bf16 %v2352, %v2336
    %v2369 = vpack.c.bf16 %v2353, %v2337
    %v2370 = vpack.c.bf16 %v2354, %v2338
    %v2371 = vpack.c.bf16 %v2355, %v2339
    %v2372 = vpack.c.bf16 %v2356, %v2340
    %v2373 = vpack.c.bf16 %v2357, %v2341
    %v2374 = vpack.c.bf16 %v2358, %v2342
    %v2375 = vpack.c.bf16 %v2359, %v2343
    %v2376 = vld [vmem:[#allocation5] sm:$0xff]
    %v2377 = vld [vmem:[#allocation5 + $0x8] sm:$0xff]
    %v2378 = vld [vmem:[#allocation5 + $0x10] sm:$0xff]
    %v2379 = vld [vmem:[#allocation5 + $0x18] sm:$0xff]
    %v2380 = vld [vmem:[#allocation5 + $0x20] sm:$0xff]
    %v2381 = vld [vmem:[#allocation5 + $0x28] sm:$0xff]
    %v2382 = vld [vmem:[#allocation5 + $0x30] sm:$0xff]
    %v2383 = vld [vmem:[#allocation5 + $0x38] sm:$0xff]
    %v2384 = vld [vmem:[#allocation5 + $0x40] sm:$0xff]
    %v2385 = vld [vmem:[#allocation5 + $0x48] sm:$0xff]
    %v2386 = vld [vmem:[#allocation5 + $0x50] sm:$0xff]
    %v2387 = vld [vmem:[#allocation5 + $0x58] sm:$0xff]
    %v2388 = vld [vmem:[#allocation5 + $0x60] sm:$0xff]
    %v2389 = vld [vmem:[#allocation5 + $0x68] sm:$0xff]
    %v2390 = vld [vmem:[#allocation5 + $0x70] sm:$0xff]
    %v2391 = vld [vmem:[#allocation5 + $0x78] sm:$0xff]
    %v2392 = vld [vmem:[#allocation5 + $0x80] sm:$0xff]
    %v2393 = vld [vmem:[#allocation5 + $0x88] sm:$0xff]
    %v2394 = vld [vmem:[#allocation5 + $0x90] sm:$0xff]
    %v2395 = vld [vmem:[#allocation5 + $0x98] sm:$0xff]
    %v2396 = vld [vmem:[#allocation5 + $0xa0] sm:$0xff]
    %v2397 = vld [vmem:[#allocation5 + $0xa8] sm:$0xff]
    %v2398 = vld [vmem:[#allocation5 + $0xb0] sm:$0xff]
    %v2399 = vld [vmem:[#allocation5 + $0xb8] sm:$0xff]
    %v2400 = vld [vmem:[#allocation5 + $0xc0] sm:$0xff]
    %v2401 = vld [vmem:[#allocation5 + $0xc8] sm:$0xff]
    %v2402 = vld [vmem:[#allocation5 + $0xd0] sm:$0xff]
    %v2403 = vld [vmem:[#allocation5 + $0xd8] sm:$0xff]
    %v2404 = vld [vmem:[#allocation5 + $0xe0] sm:$0xff]
    %v2405 = vld [vmem:[#allocation5 + $0xe8] sm:$0xff]
    %v2406 = vld [vmem:[#allocation5 + $0xf0] sm:$0xff]
    %v2407 = vld [vmem:[#allocation5 + $0xf8] sm:$0xff]
    %v2408 = vlaneseq
    %v2409 = vshrl.u32 %v2408, 7
    %v2410 = vsub.s32 4, %v2409
    %v2411 = vrot.slane %v172, %v2410
    %v2444 = vunpack.c.l.b16 %v2376
    %v2445 = vunpack.c.h.b16 %v2376
    %v2446 = vunpack.c.l.b16 %v2377
    %v2447 = vunpack.c.h.b16 %v2377
    %v2448 = vunpack.c.l.b16 %v2378
    %v2449 = vunpack.c.h.b16 %v2378
    %v2450 = vunpack.c.l.b16 %v2379
    %v2451 = vunpack.c.h.b16 %v2379
    %v2452 = vunpack.c.l.b16 %v2380
    %v2453 = vunpack.c.h.b16 %v2380
    %v2454 = vunpack.c.l.b16 %v2381
    %v2455 = vunpack.c.h.b16 %v2381
    %v2456 = vunpack.c.l.b16 %v2382
    %v2457 = vunpack.c.h.b16 %v2382
    %v2458 = vunpack.c.l.b16 %v2383
    %v2459 = vunpack.c.h.b16 %v2383
    %v2460 = vunpack.c.l.b16 %v2384
    %v2461 = vunpack.c.h.b16 %v2384
    %v2462 = vunpack.c.l.b16 %v2385
    %v2463 = vunpack.c.h.b16 %v2385
    %v2464 = vunpack.c.l.b16 %v2386
    %v2465 = vunpack.c.h.b16 %v2386
    %v2466 = vunpack.c.l.b16 %v2387
    %v2467 = vunpack.c.h.b16 %v2387
    %v2468 = vunpack.c.l.b16 %v2388
    %v2469 = vunpack.c.h.b16 %v2388
    %v2470 = vunpack.c.l.b16 %v2389
    %v2471 = vunpack.c.h.b16 %v2389
    %v2472 = vunpack.c.l.b16 %v2390
    %v2473 = vunpack.c.h.b16 %v2390
    %v2474 = vunpack.c.l.b16 %v2391
    %v2475 = vunpack.c.h.b16 %v2391
    %v2476 = vunpack.c.l.b16 %v2392
    %v2477 = vunpack.c.h.b16 %v2392
    %v2478 = vunpack.c.l.b16 %v2393
    %v2479 = vunpack.c.h.b16 %v2393
    %v2480 = vunpack.c.l.b16 %v2394
    %v2481 = vunpack.c.h.b16 %v2394
    %v2482 = vunpack.c.l.b16 %v2395
    %v2483 = vunpack.c.h.b16 %v2395
    %v2484 = vunpack.c.l.b16 %v2396
    %v2485 = vunpack.c.h.b16 %v2396
    %v2486 = vunpack.c.l.b16 %v2397
    %v2487 = vunpack.c.h.b16 %v2397
    %v2488 = vunpack.c.l.b16 %v2398
    %v2489 = vunpack.c.h.b16 %v2398
    %v2490 = vunpack.c.l.b16 %v2399
    %v2491 = vunpack.c.h.b16 %v2399
    %v2492 = vunpack.c.l.b16 %v2400
    %v2493 = vunpack.c.h.b16 %v2400
    %v2494 = vunpack.c.l.b16 %v2401
    %v2495 = vunpack.c.h.b16 %v2401
    %v2496 = vunpack.c.l.b16 %v2402
    %v2497 = vunpack.c.h.b16 %v2402
    %v2498 = vunpack.c.l.b16 %v2403
    %v2499 = vunpack.c.h.b16 %v2403
    %v2500 = vunpack.c.l.b16 %v2404
    %v2501 = vunpack.c.h.b16 %v2404
    %v2502 = vunpack.c.l.b16 %v2405
    %v2503 = vunpack.c.h.b16 %v2405
    %v2504 = vunpack.c.l.b16 %v2406
    %v2505 = vunpack.c.h.b16 %v2406
    %v2506 = vunpack.c.l.b16 %v2407
    %v2507 = vunpack.c.h.b16 %v2407
    %v2508 = vpack.c.b16 %v2460, %v2444
    %v2509 = vpack.c.b16 %v2461, %v2445
    %v2510 = vpack.c.b16 %v2462, %v2446
    %v2511 = vpack.c.b16 %v2463, %v2447
    %v2512 = vpack.c.b16 %v2464, %v2448
    %v2513 = vpack.c.b16 %v2465, %v2449
    %v2514 = vpack.c.b16 %v2466, %v2450
    %v2515 = vpack.c.b16 %v2467, %v2451
    %v2516 = vpack.c.b16 %v2468, %v2452
    %v2517 = vpack.c.b16 %v2469, %v2453
    %v2518 = vpack.c.b16 %v2470, %v2454
    %v2519 = vpack.c.b16 %v2471, %v2455
    %v2520 = vpack.c.b16 %v2472, %v2456
    %v2521 = vpack.c.b16 %v2473, %v2457
    %v2522 = vpack.c.b16 %v2474, %v2458
    %v2523 = vpack.c.b16 %v2475, %v2459
    %v2524 = vpack.c.b16 %v2492, %v2476
    %v2525 = vpack.c.b16 %v2493, %v2477
    %v2526 = vpack.c.b16 %v2494, %v2478
    %v2527 = vpack.c.b16 %v2495, %v2479
    %v2528 = vpack.c.b16 %v2496, %v2480
    %v2529 = vpack.c.b16 %v2497, %v2481
    %v2530 = vpack.c.b16 %v2498, %v2482
    %v2531 = vpack.c.b16 %v2499, %v2483
    %v2532 = vpack.c.b16 %v2500, %v2484
    %v2533 = vpack.c.b16 %v2501, %v2485
    %v2534 = vpack.c.b16 %v2502, %v2486
    %v2535 = vpack.c.b16 %v2503, %v2487
    %v2536 = vpack.c.b16 %v2504, %v2488
    %v2537 = vpack.c.b16 %v2505, %v2489
    %v2538 = vpack.c.b16 %v2506, %v2490
    %v2539 = vpack.c.b16 %v2507, %v2491
    %2572 = vmatprep.subr.bf16.mxu0 %v2509
    %2573 = vmatpush1.bf16.xpose.msra.mxu0 %v2508
    %2574 = vmatprep.subr.bf16.mxu0 %v2525
    %2575 = vmatpush1.bf16.xpose.msra.mxu0 %v2524
    %2576 = vmatprep.subr.bf16.mxu0 0
    %2577 = vmatpush1.bf16.xpose.msra.mxu0 0
    %2578 = vmatprep.subr.bf16.mxu0 0
    %2579 = vmatpush1.bf16.xpose.msra.mxu0 0
    %2580 = vmatprep.subr.bf16.mxu0 0
    %2581 = vmatpush1.bf16.xpose.msra.mxu0 0
    %2582 = vmatprep.subr.bf16.mxu0 0
    %2583 = vmatpush1.bf16.xpose.msra.mxu0 0
    %2584 = vmatprep.subr.bf16.mxu0 0
    %2585 = vmatpush1.bf16.xpose.msra.mxu0 0
    %2586 = vmatprep.subr.bf16.mxu0 0
    %2587 = vmatpush1.bf16.xpose.msra.mxu0 0
    %2588 = vmatprep.subr.bf16.mxu0 0
    %2589 = vmatpush1.bf16.xpose.msra.mxu0 0
    %2590 = vmatprep.subr.bf16.mxu0 0
    %2591 = vmatpush1.bf16.xpose.msra.mxu0 0
    %2592 = vmatprep.subr.bf16.mxu0 0
    %2593 = vmatpush1.bf16.xpose.msra.mxu0 0
    %2594 = vmatprep.subr.bf16.mxu0 0
    %2595 = vmatpush1.bf16.xpose.msra.mxu0 0
    %2596 = vmatprep.subr.bf16.mxu0 0
    %2597 = vmatpush1.bf16.xpose.msra.mxu0 0
    %2598 = vmatprep.subr.bf16.mxu0 0
    %2599 = vmatpush1.bf16.xpose.msra.mxu0 0
    %2600 = vmatprep.subr.bf16.mxu0 0
    %2601 = vmatpush1.bf16.xpose.msra.mxu0 0
    %2602 = vmatprep.subr.bf16.mxu0 0
    %2603 = vmatpush1.bf16.xpose.msra.mxu0 0
    %2604 = vmatprep.mubr.bf16.mxu0 %v2361
    %2605 = vmatmul.mubr.bf16.gmra.mrb[0].mxu0 %v2360
    %v2606 = vpop.f32.mrb[0].mxu0
    %v2607 = vadd.f32 %v2411, %v2606
    %v2608 = vpop.f32.mrb[0].mxu0
    %v2609 = vpop.f32.mrb[0].mxu0
    %v2610 = vadd.f32 %v2411, %v2609
    %v2611 = vpop.f32.mrb[0].mxu0
    %2612 = vdwg.mxu0
    %2613 = vmatprep.subr.bf16.mxu0 %v2511
    %2614 = vmatpush1.bf16.xpose.msra.mxu0 %v2510
    %2615 = vmatprep.subr.bf16.mxu0 %v2527
    %2616 = vmatpush1.bf16.xpose.msra.mxu0 %v2526
    %2617 = vmatprep.subr.bf16.mxu0 0
    %2618 = vmatpush1.bf16.xpose.msra.mxu0 0
    %2619 = vmatprep.subr.bf16.mxu0 0
    %2620 = vmatpush1.bf16.xpose.msra.mxu0 0
    %2621 = vmatprep.subr.bf16.mxu0 0
    %2622 = vmatpush1.bf16.xpose.msra.mxu0 0
    %2623 = vmatprep.subr.bf16.mxu0 0
    %2624 = vmatpush1.bf16.xpose.msra.mxu0 0
    %2625 = vmatprep.subr.bf16.mxu0 0
    %2626 = vmatpush1.bf16.xpose.msra.mxu0 0
    %2627 = vmatprep.subr.bf16.mxu0 0
    %2628 = vmatpush1.bf16.xpose.msra.mxu0 0
    %2629 = vmatprep.subr.bf16.mxu0 0
    %2630 = vmatpush1.bf16.xpose.msra.mxu0 0
    %2631 = vmatprep.subr.bf16.mxu0 0
    %2632 = vmatpush1.bf16.xpose.msra.mxu0 0
    %2633 = vmatprep.subr.bf16.mxu0 0
    %2634 = vmatpush1.bf16.xpose.msra.mxu0 0
    %2635 = vmatprep.subr.bf16.mxu0 0
    %2636 = vmatpush1.bf16.xpose.msra.mxu0 0
    %2637 = vmatprep.subr.bf16.mxu0 0
    %2638 = vmatpush1.bf16.xpose.msra.mxu0 0
    %2639 = vmatprep.subr.bf16.mxu0 0
    %2640 = vmatpush1.bf16.xpose.msra.mxu0 0
    %2641 = vmatprep.subr.bf16.mxu0 0
    %2642 = vmatpush1.bf16.xpose.msra.mxu0 0
    %2643 = vmatprep.subr.bf16.mxu0 0
    %2644 = vmatpush1.bf16.xpose.msra.mxu0 0
    %2645 = vmatprep.mubr.bf16.mxu0 %v2363
    %2646 = vmatmul.mubr.bf16.gmra.mrb[0].mxu0 %v2362
    %v2647 = vpop.f32.mrb[0].mxu0
    %v2648 = vadd.f32 %v2607, %v2647
    %v2649 = vpop.f32.mrb[0].mxu0
    %v2650 = vpop.f32.mrb[0].mxu0
    %v2651 = vadd.f32 %v2610, %v2650
    %v2652 = vpop.f32.mrb[0].mxu0
    %2653 = vdwg.mxu0
    %2654 = vmatprep.subr.bf16.mxu0 %v2513
    %2655 = vmatpush1.bf16.xpose.msra.mxu0 %v2512
    %2656 = vmatprep.subr.bf16.mxu0 %v2529
    %2657 = vmatpush1.bf16.xpose.msra.mxu0 %v2528
    %2658 = vmatprep.subr.bf16.mxu0 0
    %2659 = vmatpush1.bf16.xpose.msra.mxu0 0
    %2660 = vmatprep.subr.bf16.mxu0 0
    %2661 = vmatpush1.bf16.xpose.msra.mxu0 0
    %2662 = vmatprep.subr.bf16.mxu0 0
    %2663 = vmatpush1.bf16.xpose.msra.mxu0 0
    %2664 = vmatprep.subr.bf16.mxu0 0
    %2665 = vmatpush1.bf16.xpose.msra.mxu0 0
    %2666 = vmatprep.subr.bf16.mxu0 0
    %2667 = vmatpush1.bf16.xpose.msra.mxu0 0
    %2668 = vmatprep.subr.bf16.mxu0 0
    %2669 = vmatpush1.bf16.xpose.msra.mxu0 0
    %2670 = vmatprep.subr.bf16.mxu0 0
    %2671 = vmatpush1.bf16.xpose.msra.mxu0 0
    %2672 = vmatprep.subr.bf16.mxu0 0
    %2673 = vmatpush1.bf16.xpose.msra.mxu0 0
    %2674 = vmatprep.subr.bf16.mxu0 0
    %2675 = vmatpush1.bf16.xpose.msra.mxu0 0
    %2676 = vmatprep.subr.bf16.mxu0 0
    %2677 = vmatpush1.bf16.xpose.msra.mxu0 0
    %2678 = vmatprep.subr.bf16.mxu0 0
    %2679 = vmatpush1.bf16.xpose.msra.mxu0 0
    %2680 = vmatprep.subr.bf16.mxu0 0
    %2681 = vmatpush1.bf16.xpose.msra.mxu0 0
    %2682 = vmatprep.subr.bf16.mxu0 0
    %2683 = vmatpush1.bf16.xpose.msra.mxu0 0
    %2684 = vmatprep.subr.bf16.mxu0 0
    %2685 = vmatpush1.bf16.xpose.msra.mxu0 0
    %2686 = vmatprep.mubr.bf16.mxu0 %v2365
    %2687 = vmatmul.mubr.bf16.gmra.mrb[0].mxu0 %v2364
    %v2688 = vpop.f32.mrb[0].mxu0
    %v2689 = vadd.f32 %v2648, %v2688
    %v2690 = vpop.f32.mrb[0].mxu0
    %v2691 = vpop.f32.mrb[0].mxu0
    %v2692 = vadd.f32 %v2651, %v2691
    %v2693 = vpop.f32.mrb[0].mxu0
    %2694 = vdwg.mxu0
    %2695 = vmatprep.subr.bf16.mxu0 %v2515
    %2696 = vmatpush1.bf16.xpose.msra.mxu0 %v2514
    %2697 = vmatprep.subr.bf16.mxu0 %v2531
    %2698 = vmatpush1.bf16.xpose.msra.mxu0 %v2530
    %2699 = vmatprep.subr.bf16.mxu0 0
    %2700 = vmatpush1.bf16.xpose.msra.mxu0 0
    %2701 = vmatprep.subr.bf16.mxu0 0
    %2702 = vmatpush1.bf16.xpose.msra.mxu0 0
    %2703 = vmatprep.subr.bf16.mxu0 0
    %2704 = vmatpush1.bf16.xpose.msra.mxu0 0
    %2705 = vmatprep.subr.bf16.mxu0 0
    %2706 = vmatpush1.bf16.xpose.msra.mxu0 0
    %2707 = vmatprep.subr.bf16.mxu0 0
    %2708 = vmatpush1.bf16.xpose.msra.mxu0 0
    %2709 = vmatprep.subr.bf16.mxu0 0
    %2710 = vmatpush1.bf16.xpose.msra.mxu0 0
    %2711 = vmatprep.subr.bf16.mxu0 0
    %2712 = vmatpush1.bf16.xpose.msra.mxu0 0
    %2713 = vmatprep.subr.bf16.mxu0 0
    %2714 = vmatpush1.bf16.xpose.msra.mxu0 0
    %2715 = vmatprep.subr.bf16.mxu0 0
    %2716 = vmatpush1.bf16.xpose.msra.mxu0 0
    %2717 = vmatprep.subr.bf16.mxu0 0
    %2718 = vmatpush1.bf16.xpose.msra.mxu0 0
    %2719 = vmatprep.subr.bf16.mxu0 0
    %2720 = vmatpush1.bf16.xpose.msra.mxu0 0
    %2721 = vmatprep.subr.bf16.mxu0 0
    %2722 = vmatpush1.bf16.xpose.msra.mxu0 0
    %2723 = vmatprep.subr.bf16.mxu0 0
    %2724 = vmatpush1.bf16.xpose.msra.mxu0 0
    %2725 = vmatprep.subr.bf16.mxu0 0
    %2726 = vmatpush1.bf16.xpose.msra.mxu0 0
    %2727 = vmatprep.mubr.bf16.mxu0 %v2367
    %2728 = vmatmul.mubr.bf16.gmra.mrb[0].mxu0 %v2366
    %v2729 = vpop.f32.mrb[0].mxu0
    %v2730 = vadd.f32 %v2689, %v2729
    %v2731 = vpop.f32.mrb[0].mxu0
    %v2732 = vpop.f32.mrb[0].mxu0
    %v2733 = vadd.f32 %v2692, %v2732
    %v2734 = vpop.f32.mrb[0].mxu0
    %2735 = vdwg.mxu0
    %2736 = vmatprep.subr.bf16.mxu0 %v2517
    %2737 = vmatpush1.bf16.xpose.msra.mxu0 %v2516
    %2738 = vmatprep.subr.bf16.mxu0 %v2533
    %2739 = vmatpush1.bf16.xpose.msra.mxu0 %v2532
    %2740 = vmatprep.subr.bf16.mxu0 0
    %2741 = vmatpush1.bf16.xpose.msra.mxu0 0
    %2742 = vmatprep.subr.bf16.mxu0 0
    %2743 = vmatpush1.bf16.xpose.msra.mxu0 0
    %2744 = vmatprep.subr.bf16.mxu0 0
    %2745 = vmatpush1.bf16.xpose.msra.mxu0 0
    %2746 = vmatprep.subr.bf16.mxu0 0
    %2747 = vmatpush1.bf16.xpose.msra.mxu0 0
    %2748 = vmatprep.subr.bf16.mxu0 0
    %2749 = vmatpush1.bf16.xpose.msra.mxu0 0
    %2750 = vmatprep.subr.bf16.mxu0 0
    %2751 = vmatpush1.bf16.xpose.msra.mxu0 0
    %2752 = vmatprep.subr.bf16.mxu0 0
    %2753 = vmatpush1.bf16.xpose.msra.mxu0 0
    %2754 = vmatprep.subr.bf16.mxu0 0
    %2755 = vmatpush1.bf16.xpose.msra.mxu0 0
    %2756 = vmatprep.subr.bf16.mxu0 0
    %2757 = vmatpush1.bf16.xpose.msra.mxu0 0
    %2758 = vmatprep.subr.bf16.mxu0 0
    %2759 = vmatpush1.bf16.xpose.msra.mxu0 0
    %2760 = vmatprep.subr.bf16.mxu0 0
    %2761 = vmatpush1.bf16.xpose.msra.mxu0 0
    %2762 = vmatprep.subr.bf16.mxu0 0
    %2763 = vmatpush1.bf16.xpose.msra.mxu0 0
    %2764 = vmatprep.subr.bf16.mxu0 0
    %2765 = vmatpush1.bf16.xpose.msra.mxu0 0
    %2766 = vmatprep.subr.bf16.mxu0 0
    %2767 = vmatpush1.bf16.xpose.msra.mxu0 0
    %2768 = vmatprep.mubr.bf16.mxu0 %v2369
    %2769 = vmatmul.mubr.bf16.gmra.mrb[0].mxu0 %v2368
    %v2770 = vpop.f32.mrb[0].mxu0
    %v2771 = vadd.f32 %v2730, %v2770
    %v2772 = vpop.f32.mrb[0].mxu0
    %v2773 = vpop.f32.mrb[0].mxu0
    %v2774 = vadd.f32 %v2733, %v2773
    %v2775 = vpop.f32.mrb[0].mxu0
    %2776 = vdwg.mxu0
    %2777 = vmatprep.subr.bf16.mxu0 %v2519
    %2778 = vmatpush1.bf16.xpose.msra.mxu0 %v2518
    %2779 = vmatprep.subr.bf16.mxu0 %v2535
    %2780 = vmatpush1.bf16.xpose.msra.mxu0 %v2534
    %2781 = vmatprep.subr.bf16.mxu0 0
    %2782 = vmatpush1.bf16.xpose.msra.mxu0 0
    %2783 = vmatprep.subr.bf16.mxu0 0
    %2784 = vmatpush1.bf16.xpose.msra.mxu0 0
    %2785 = vmatprep.subr.bf16.mxu0 0
    %2786 = vmatpush1.bf16.xpose.msra.mxu0 0
    %2787 = vmatprep.subr.bf16.mxu0 0
    %2788 = vmatpush1.bf16.xpose.msra.mxu0 0
    %2789 = vmatprep.subr.bf16.mxu0 0
    %2790 = vmatpush1.bf16.xpose.msra.mxu0 0
    %2791 = vmatprep.subr.bf16.mxu0 0
    %2792 = vmatpush1.bf16.xpose.msra.mxu0 0
    %2793 = vmatprep.subr.bf16.mxu0 0
    %2794 = vmatpush1.bf16.xpose.msra.mxu0 0
    %2795 = vmatprep.subr.bf16.mxu0 0
    %2796 = vmatpush1.bf16.xpose.msra.mxu0 0
    %2797 = vmatprep.subr.bf16.mxu0 0
    %2798 = vmatpush1.bf16.xpose.msra.mxu0 0
    %2799 = vmatprep.subr.bf16.mxu0 0
    %2800 = vmatpush1.bf16.xpose.msra.mxu0 0
    %2801 = vmatprep.subr.bf16.mxu0 0
    %2802 = vmatpush1.bf16.xpose.msra.mxu0 0
    %2803 = vmatprep.subr.bf16.mxu0 0
    %2804 = vmatpush1.bf16.xpose.msra.mxu0 0
    %2805 = vmatprep.subr.bf16.mxu0 0
    %2806 = vmatpush1.bf16.xpose.msra.mxu0 0
    %2807 = vmatprep.subr.bf16.mxu0 0
    %2808 = vmatpush1.bf16.xpose.msra.mxu0 0
    %2809 = vmatprep.mubr.bf16.mxu0 %v2371
    %2810 = vmatmul.mubr.bf16.gmra.mrb[0].mxu0 %v2370
    %v2811 = vpop.f32.mrb[0].mxu0
    %v2812 = vadd.f32 %v2771, %v2811
    %v2813 = vpop.f32.mrb[0].mxu0
    %v2814 = vpop.f32.mrb[0].mxu0
    %v2815 = vadd.f32 %v2774, %v2814
    %v2816 = vpop.f32.mrb[0].mxu0
    %2817 = vdwg.mxu0
    %2818 = vmatprep.subr.bf16.mxu0 %v2521
    %2819 = vmatpush1.bf16.xpose.msra.mxu0 %v2520
    %2820 = vmatprep.subr.bf16.mxu0 %v2537
    %2821 = vmatpush1.bf16.xpose.msra.mxu0 %v2536
    %2822 = vmatprep.subr.bf16.mxu0 0
    %2823 = vmatpush1.bf16.xpose.msra.mxu0 0
    %2824 = vmatprep.subr.bf16.mxu0 0
    %2825 = vmatpush1.bf16.xpose.msra.mxu0 0
    %2826 = vmatprep.subr.bf16.mxu0 0
    %2827 = vmatpush1.bf16.xpose.msra.mxu0 0
    %2828 = vmatprep.subr.bf16.mxu0 0
    %2829 = vmatpush1.bf16.xpose.msra.mxu0 0
    %2830 = vmatprep.subr.bf16.mxu0 0
    %2831 = vmatpush1.bf16.xpose.msra.mxu0 0
    %2832 = vmatprep.subr.bf16.mxu0 0
    %2833 = vmatpush1.bf16.xpose.msra.mxu0 0
    %2834 = vmatprep.subr.bf16.mxu0 0
    %2835 = vmatpush1.bf16.xpose.msra.mxu0 0
    %2836 = vmatprep.subr.bf16.mxu0 0
    %2837 = vmatpush1.bf16.xpose.msra.mxu0 0
    %2838 = vmatprep.subr.bf16.mxu0 0
    %2839 = vmatpush1.bf16.xpose.msra.mxu0 0
    %2840 = vmatprep.subr.bf16.mxu0 0
    %2841 = vmatpush1.bf16.xpose.msra.mxu0 0
    %2842 = vmatprep.subr.bf16.mxu0 0
    %2843 = vmatpush1.bf16.xpose.msra.mxu0 0
    %2844 = vmatprep.subr.bf16.mxu0 0
    %2845 = vmatpush1.bf16.xpose.msra.mxu0 0
    %2846 = vmatprep.subr.bf16.mxu0 0
    %2847 = vmatpush1.bf16.xpose.msra.mxu0 0
    %2848 = vmatprep.subr.bf16.mxu0 0
    %2849 = vmatpush1.bf16.xpose.msra.mxu0 0
    %2850 = vmatprep.mubr.bf16.mxu0 %v2373
    %2851 = vmatmul.mubr.bf16.gmra.mrb[0].mxu0 %v2372
    %v2852 = vpop.f32.mrb[0].mxu0
    %v2853 = vadd.f32 %v2812, %v2852
    %v2854 = vpop.f32.mrb[0].mxu0
    %v2855 = vpop.f32.mrb[0].mxu0
    %v2856 = vadd.f32 %v2815, %v2855
    %v2857 = vpop.f32.mrb[0].mxu0
    %2858 = vdwg.mxu0
    %2859 = vmatprep.subr.bf16.mxu0 %v2523
    %2860 = vmatpush1.bf16.xpose.msra.mxu0 %v2522
    %2861 = vmatprep.subr.bf16.mxu0 %v2539
    %2862 = vmatpush1.bf16.xpose.msra.mxu0 %v2538
    %2863 = vmatprep.subr.bf16.mxu0 0
    %2864 = vmatpush1.bf16.xpose.msra.mxu0 0
    %2865 = vmatprep.subr.bf16.mxu0 0
    %2866 = vmatpush1.bf16.xpose.msra.mxu0 0
    %2867 = vmatprep.subr.bf16.mxu0 0
    %2868 = vmatpush1.bf16.xpose.msra.mxu0 0
    %2869 = vmatprep.subr.bf16.mxu0 0
    %2870 = vmatpush1.bf16.xpose.msra.mxu0 0
    %2871 = vmatprep.subr.bf16.mxu0 0
    %2872 = vmatpush1.bf16.xpose.msra.mxu0 0
    %2873 = vmatprep.subr.bf16.mxu0 0
    %2874 = vmatpush1.bf16.xpose.msra.mxu0 0
    %2875 = vmatprep.subr.bf16.mxu0 0
    %2876 = vmatpush1.bf16.xpose.msra.mxu0 0
    %2877 = vmatprep.subr.bf16.mxu0 0
    %2878 = vmatpush1.bf16.xpose.msra.mxu0 0
    %2879 = vmatprep.subr.bf16.mxu0 0
    %2880 = vmatpush1.bf16.xpose.msra.mxu0 0
    %2881 = vmatprep.subr.bf16.mxu0 0
    %2882 = vmatpush1.bf16.xpose.msra.mxu0 0
    %2883 = vmatprep.subr.bf16.mxu0 0
    %2884 = vmatpush1.bf16.xpose.msra.mxu0 0
    %2885 = vmatprep.subr.bf16.mxu0 0
    %2886 = vmatpush1.bf16.xpose.msra.mxu0 0
    %2887 = vmatprep.subr.bf16.mxu0 0
    %2888 = vmatpush1.bf16.xpose.msra.mxu0 0
    %2889 = vmatprep.subr.bf16.mxu0 0
    %2890 = vmatpush1.bf16.xpose.msra.mxu0 0
    %2891 = vmatprep.mubr.bf16.mxu0 %v2375
    %2892 = vmatmul.mubr.bf16.gmra.mrb[0].mxu0 %v2374
    %v2893 = vpop.f32.mrb[0].mxu0
    %v2894 = vadd.f32 %v2853, %v2893
    %v2895 = vpop.f32.mrb[0].mxu0
    %v2896 = vpop.f32.mrb[0].mxu0
    %v2897 = vadd.f32 %v2856, %v2896
    %v2898 = vpop.f32.mrb[0].mxu0
    %2899 = vdwg.mxu0
    %v2900 = vadd.f32 %v1702, %v2894
    %v2901 = vadd.f32 %v1703, %v2897
    %v2902 = vsel %vm194, %v2900, 0.0
    %2903 = vadd.xlane.f32.xlu0 %v2902
    %v2904 = vpop.xlane.xlu0 %2903
    %v2905 = vsel %vm194, %v2901, 0.0
    %2906 = vadd.xlane.f32.xlu0 %v2905
    %v2907 = vpop.xlane.xlu0 %2906
    %v2908 = vmul.f32 %v2904, %v1671
    %v2909 = vmul.f32 %v2907, %v1671
    %v2910 = vsub.f32 %v2900, %v2908
    %v2911 = vsub.f32 %v2901, %v2909
    %v2912 = vmul.f32 %v2910, %v2910
    %v2913 = vmul.f32 %v2911, %v2911
    %v2914 = vsel %vm194, %v2912, 0.0
    %2915 = vadd.xlane.f32.xlu0 %v2914
    %v2916 = vpop.xlane.xlu0 %2915
    %v2917 = vsel %vm194, %v2913, 0.0
    %2918 = vadd.xlane.f32.xlu0 %v2917
    %v2919 = vpop.xlane.xlu0 %2918
    %v2920 = vmul.f32 %v2916, %v1671
    %v2921 = vmul.f32 %v2919, %v1671
    %v2922 = vadd.f32 %v2920, 1e-05
    %v2923 = vadd.f32 %v2921, 1e-05
    %v2924 = vrsqrt.pop %v2922
    %v2925 = vrsqrt.pop %v2923
    %v2926 = vmul.f32 %v2910, %v2924
    %v2927 = vmul.f32 %v2911, %v2925
    %v2928 = vlaneseq
    %v2929 = vshrl.u32 %v2928, 7
    %v2930 = vsub.s32 5, %v2929
    %v2931 = vrot.slane %v172, %v2930
    %v2932 = vmul.f32 %v2926, %v2931
    %v2933 = vmul.f32 %v2927, %v2931
    %v2934 = vlaneseq
    %v2935 = vshrl.u32 %v2934, 7
    %v2936 = vsub.s32 6, %v2935
    %v2937 = vrot.slane %v172, %v2936
    %v2938 = vadd.f32 %v2932, %v2937
    %v2939 = vadd.f32 %v2933, %v2937
    %s2940 = scalar_lea.vmem %s7, 8
    %v2941 = vld [vmem:[%s2940] sm:$0xff]
    %v2942 = vpack.c.bf16 %v2939, %v2938
    %s2943 = scalar_lea.vmem %s2, 16
    %v2944 = vld [vmem:[%s2943] sm:$0xf]
    %v2945 = vld [vmem:[%s2943 + $0x4] sm:$0xf]
    %v2946 = vld [vmem:[%s2943 + $0x8] sm:$0xf]
    %v2947 = vld [vmem:[%s2943 + $0xc] sm:$0xf]
    %v2948 = vlaneseq
    %v2949 = vshrl.u32 %v2948, 7
    %v2950 = vsub.s32 0, %v2949
    %v2951 = vrot.slane %v2941, %v2950
    %v2956 = vunpack.c.l.b16 %v2944
    %v2957 = vunpack.c.l.b16 %v2945
    %v2958 = vunpack.c.l.b16 %v2946
    %v2959 = vunpack.c.l.b16 %v2947
    %v2960 = vpack.c.b16 %v2957, %v2956
    %v2961 = vpack.c.b16 %v2959, %v2958
    %v2965 = vsel %vm194, %v2942, 0
    %2967 = vmatprep.subr.bf16.mxu0 0
    %2968 = vmatpush1.bf16.msra.mxu0 %v2960
    %2969 = vmatprep.subr.bf16.mxu0 0
    %2970 = vmatpush1.bf16.msra.mxu0 %v2961
    %2971 = vmatprep.subr.bf16.mxu0 0
    %2972 = vmatpush1.bf16.msra.mxu0 0
    %2973 = vmatprep.subr.bf16.mxu0 0
    %2974 = vmatpush1.bf16.msra.mxu0 0
    %2975 = vmatprep.subr.bf16.mxu0 0
    %2976 = vmatpush1.bf16.msra.mxu0 0
    %2977 = vmatprep.subr.bf16.mxu0 0
    %2978 = vmatpush1.bf16.msra.mxu0 0
    %2979 = vmatprep.subr.bf16.mxu0 0
    %2980 = vmatpush1.bf16.msra.mxu0 0
    %2981 = vmatprep.subr.bf16.mxu0 0
    %2982 = vmatpush1.bf16.msra.mxu0 0
    %2983 = vmatprep.subr.bf16.mxu0 0
    %2984 = vmatpush1.bf16.msra.mxu0 0
    %2985 = vmatprep.subr.bf16.mxu0 0
    %2986 = vmatpush1.bf16.msra.mxu0 0
    %2987 = vmatprep.subr.bf16.mxu0 0
    %2988 = vmatpush1.bf16.msra.mxu0 0
    %2989 = vmatprep.subr.bf16.mxu0 0
    %2990 = vmatpush1.bf16.msra.mxu0 0
    %2991 = vmatprep.subr.bf16.mxu0 0
    %2992 = vmatpush1.bf16.msra.mxu0 0
    %2993 = vmatprep.subr.bf16.mxu0 0
    %2994 = vmatpush1.bf16.msra.mxu0 0
    %2995 = vmatprep.subr.bf16.mxu0 0
    %2996 = vmatpush1.bf16.msra.mxu0 0
    %2997 = vmatprep.subr.bf16.mxu0 0
    %2998 = vmatpush1.bf16.msra.mxu0 0
    %2999 = vmatprep.mubr.bf16.mxu0 0
    %3000 = vmatmul.mubr.bf16.gmra.mrb[0].mxu0 %v2965
    %v3001 = vpop.f32.mrb[0].mxu0
    %v3002 = vadd.f32 %v2951, %v3001
    %v3003 = vpop.f32.mrb[0].mxu0
    %v3004 = vpop.f32.mrb[0].mxu0
    %v3005 = vadd.f32 %v2951, %v3004
    %v3006 = vpop.f32.mrb[0].mxu0
    %3007 = vdwg.mxu0
    %3009 = vrot.lane.b32.xlu0 %v3002, 96
    %v3010 = vpop.permute.xlu0 %3009
    %v3011 = vsel %vm242, %v3002, 0
    %v3013 = vsel %vm242, %v3010, 0
    %3015 = vmatprep.subr.mxu0 0.0
    %3016 = vmatpush1.xpose.msra.mxu0 %v3013
    %3017 = vmatprep.subr.mxu0 0.0
    %3018 = vmatpush1.xpose.msra.mxu0 0.0
    %3019 = vmatprep.subr.mxu0 0.0
    %3020 = vmatpush1.xpose.msra.mxu0 0.0
    %3021 = vmatprep.subr.mxu0 0.0
    %3022 = vmatpush1.xpose.msra.mxu0 0.0
    %3023 = vmatprep.subr.mxu0 0.0
    %3024 = vmatpush1.xpose.msra.mxu0 0.0
    %3025 = vmatprep.subr.mxu0 0.0
    %3026 = vmatpush1.xpose.msra.mxu0 0.0
    %3027 = vmatprep.subr.mxu0 0.0
    %3028 = vmatpush1.xpose.msra.mxu0 0.0
    %3029 = vmatprep.subr.mxu0 0.0
    %3030 = vmatpush1.xpose.msra.mxu0 0.0
    %3031 = vmatprep.subr.mxu0 0.0
    %3032 = vmatpush1.xpose.msra.mxu0 0.0
    %3033 = vmatprep.subr.mxu0 0.0
    %3034 = vmatpush1.xpose.msra.mxu0 0.0
    %3035 = vmatprep.subr.mxu0 0.0
    %3036 = vmatpush1.xpose.msra.mxu0 0.0
    %3037 = vmatprep.subr.mxu0 0.0
    %3038 = vmatpush1.xpose.msra.mxu0 0.0
    %3039 = vmatprep.subr.mxu0 0.0
    %3040 = vmatpush1.xpose.msra.mxu0 0.0
    %3041 = vmatprep.subr.mxu0 0.0
    %3042 = vmatpush1.xpose.msra.mxu0 0.0
    %3043 = vmatprep.subr.mxu0 0.0
    %3044 = vmatpush1.xpose.msra.mxu0 0.0
    %3045 = vmatprep.subr.mxu0 0.0
    %3046 = vmatpush1.xpose.msra.mxu0 0.0
    %3047 = vmatprep.subr.mxu0 0.0
    %3048 = vmatpush1.xpose.msra.mxu0 0.0
    %3049 = vmatprep.subr.mxu0 0.0
    %3050 = vmatpush1.xpose.msra.mxu0 0.0
    %3051 = vmatprep.subr.mxu0 0.0
    %3052 = vmatpush1.xpose.msra.mxu0 0.0
    %3053 = vmatprep.subr.mxu0 0.0
    %3054 = vmatpush1.xpose.msra.mxu0 0.0
    %3055 = vmatprep.subr.mxu0 0.0
    %3056 = vmatpush1.xpose.msra.mxu0 0.0
    %3057 = vmatprep.subr.mxu0 0.0
    %3058 = vmatpush1.xpose.msra.mxu0 0.0
    %3059 = vmatprep.subr.mxu0 0.0
    %3060 = vmatpush1.xpose.msra.mxu0 0.0
    %3061 = vmatprep.subr.mxu0 0.0
    %3062 = vmatpush1.xpose.msra.mxu0 0.0
    %3063 = vmatprep.subr.mxu0 0.0
    %3064 = vmatpush1.xpose.msra.mxu0 0.0
    %3065 = vmatprep.subr.mxu0 0.0
    %3066 = vmatpush1.xpose.msra.mxu0 0.0
    %3067 = vmatprep.subr.mxu0 0.0
    %3068 = vmatpush1.xpose.msra.mxu0 0.0
    %3069 = vmatprep.subr.mxu0 0.0
    %3070 = vmatpush1.xpose.msra.mxu0 0.0
    %3071 = vmatprep.subr.mxu0 0.0
    %3072 = vmatpush1.xpose.msra.mxu0 0.0
    %3073 = vmatprep.subr.mxu0 0.0
    %3074 = vmatpush1.xpose.msra.mxu0 0.0
    %3075 = vmatprep.subr.mxu0 0.0
    %3076 = vmatpush1.xpose.msra.mxu0 0.0
    %3077 = vmatprep.subr.mxu0 0.0
    %3078 = vmatpush1.xpose.msra.mxu0 0.0
    %3079 = vmatprep.mubr.f32.mxu0 0.0
    %3080 = vmatmul.mubr.f32.gmra.mrb[0].mxu0 %v3011
    %v3081 = vpop.f32.mrb[0].mxu0
    %v3082 = vadd.f32 0.0, %v3081
    %v3083 = vpop.f32.mrb[0].mxu0
    %3084 = vdwg.mxu0
    %3086 = vrot.lane.b32.xlu0 %v3005, 96
    %v3087 = vpop.permute.xlu0 %3086
    %v3088 = vsel %vm242, %v3005, 0
    %v3090 = vsel %vm242, %v3087, 0
    %3092 = vmatprep.subr.mxu0 0.0
    %3093 = vmatpush1.xpose.msra.mxu0 %v3090
    %3094 = vmatprep.subr.mxu0 0.0
    %3095 = vmatpush1.xpose.msra.mxu0 0.0
    %3096 = vmatprep.subr.mxu0 0.0
    %3097 = vmatpush1.xpose.msra.mxu0 0.0
    %3098 = vmatprep.subr.mxu0 0.0
    %3099 = vmatpush1.xpose.msra.mxu0 0.0
    %3100 = vmatprep.subr.mxu0 0.0
    %3101 = vmatpush1.xpose.msra.mxu0 0.0
    %3102 = vmatprep.subr.mxu0 0.0
    %3103 = vmatpush1.xpose.msra.mxu0 0.0
    %3104 = vmatprep.subr.mxu0 0.0
    %3105 = vmatpush1.xpose.msra.mxu0 0.0
    %3106 = vmatprep.subr.mxu0 0.0
    %3107 = vmatpush1.xpose.msra.mxu0 0.0
    %3108 = vmatprep.subr.mxu0 0.0
    %3109 = vmatpush1.xpose.msra.mxu0 0.0
    %3110 = vmatprep.subr.mxu0 0.0
    %3111 = vmatpush1.xpose.msra.mxu0 0.0
    %3112 = vmatprep.subr.mxu0 0.0
    %3113 = vmatpush1.xpose.msra.mxu0 0.0
    %3114 = vmatprep.subr.mxu0 0.0
    %3115 = vmatpush1.xpose.msra.mxu0 0.0
    %3116 = vmatprep.subr.mxu0 0.0
    %3117 = vmatpush1.xpose.msra.mxu0 0.0
    %3118 = vmatprep.subr.mxu0 0.0
    %3119 = vmatpush1.xpose.msra.mxu0 0.0
    %3120 = vmatprep.subr.mxu0 0.0
    %3121 = vmatpush1.xpose.msra.mxu0 0.0
    %3122 = vmatprep.subr.mxu0 0.0
    %3123 = vmatpush1.xpose.msra.mxu0 0.0
    %3124 = vmatprep.subr.mxu0 0.0
    %3125 = vmatpush1.xpose.msra.mxu0 0.0
    %3126 = vmatprep.subr.mxu0 0.0
    %3127 = vmatpush1.xpose.msra.mxu0 0.0
    %3128 = vmatprep.subr.mxu0 0.0
    %3129 = vmatpush1.xpose.msra.mxu0 0.0
    %3130 = vmatprep.subr.mxu0 0.0
    %3131 = vmatpush1.xpose.msra.mxu0 0.0
    %3132 = vmatprep.subr.mxu0 0.0
    %3133 = vmatpush1.xpose.msra.mxu0 0.0
    %3134 = vmatprep.subr.mxu0 0.0
    %3135 = vmatpush1.xpose.msra.mxu0 0.0
    %3136 = vmatprep.subr.mxu0 0.0
    %3137 = vmatpush1.xpose.msra.mxu0 0.0
    %3138 = vmatprep.subr.mxu0 0.0
    %3139 = vmatpush1.xpose.msra.mxu0 0.0
    %3140 = vmatprep.subr.mxu0 0.0
    %3141 = vmatpush1.xpose.msra.mxu0 0.0
    %3142 = vmatprep.subr.mxu0 0.0
    %3143 = vmatpush1.xpose.msra.mxu0 0.0
    %3144 = vmatprep.subr.mxu0 0.0
    %3145 = vmatpush1.xpose.msra.mxu0 0.0
    %3146 = vmatprep.subr.mxu0 0.0
    %3147 = vmatpush1.xpose.msra.mxu0 0.0
    %3148 = vmatprep.subr.mxu0 0.0
    %3149 = vmatpush1.xpose.msra.mxu0 0.0
    %3150 = vmatprep.subr.mxu0 0.0
    %3151 = vmatpush1.xpose.msra.mxu0 0.0
    %3152 = vmatprep.subr.mxu0 0.0
    %3153 = vmatpush1.xpose.msra.mxu0 0.0
    %3154 = vmatprep.subr.mxu0 0.0
    %3155 = vmatpush1.xpose.msra.mxu0 0.0
    %3156 = vmatprep.mubr.f32.mxu0 0.0
    %3157 = vmatmul.mubr.f32.gmra.mrb[0].mxu0 %v3088
    %v3158 = vpop.f32.mrb[0].mxu0
    %v3159 = vadd.f32 0.0, %v3158
    %v3160 = vpop.f32.mrb[0].mxu0
    %3161 = vdwg.mxu0
    %v3162 = vmul.f32 %v3082, 0.35355338
    %v3163 = vmul.f32 %v3159, 0.35355338
    %v3164 = vsel %vm242, %v3162, -inf
    %3165 = vmax.xlane.f32.xlu0 %v3164
    %v3166 = vpop.xlane.xlu0 %3165
    %v3167 = vsel %vm242, %v3163, -inf
    %3168 = vmax.xlane.f32.xlu0 %v3167
    %v3169 = vpop.xlane.xlu0 %3168
    %v3170 = vsub.f32 %v3162, %v3166
    %v3171 = vsub.f32 %v3163, %v3169
    %v3172 = vmul.f32 %v3170, 1.442695
    %v3173 = vpow.pop %v3172
    %v3174 = vmul.f32 %v3171, 1.442695
    %v3175 = vpow.pop %v3174
    %v3176 = vsel %vm242, %v3173, 0.0
    %3177 = vadd.xlane.f32.xlu0 %v3176
    %v3178 = vpop.xlane.xlu0 %3177
    %v3179 = vsel %vm242, %v3175, 0.0
    %3180 = vadd.xlane.f32.xlu0 %v3179
    %v3181 = vpop.xlane.xlu0 %3180
    %v3182 = vrcp.pop %v3178
    %v3183 = vrcp.pop %v3181
    %v3184 = vmul.f32 %v3173, %v3182
    %v3185 = vmul.f32 %v3175, %v3183
    %3186 = vrot.lane.b32.xlu0 %v3002, 64
    %v3187 = vpop.permute.xlu0 %3186
    %v3190 = vsel %vm242, %v3184, 0
    %3192 = vmatprep.subr.mxu0 0.0
    %3193 = vmatpush1.msra.mxu0 %v3187
    %3194 = vmatprep.subr.mxu0 0.0
    %3195 = vmatpush1.msra.mxu0 0.0
    %3196 = vmatprep.subr.mxu0 0.0
    %3197 = vmatpush1.msra.mxu0 0.0
    %3198 = vmatprep.subr.mxu0 0.0
    %3199 = vmatpush1.msra.mxu0 0.0
    %3200 = vmatprep.subr.mxu0 0.0
    %3201 = vmatpush1.msra.mxu0 0.0
    %3202 = vmatprep.subr.mxu0 0.0
    %3203 = vmatpush1.msra.mxu0 0.0
    %3204 = vmatprep.subr.mxu0 0.0
    %3205 = vmatpush1.msra.mxu0 0.0
    %3206 = vmatprep.subr.mxu0 0.0
    %3207 = vmatpush1.msra.mxu0 0.0
    %3208 = vmatprep.subr.mxu0 0.0
    %3209 = vmatpush1.msra.mxu0 0.0
    %3210 = vmatprep.subr.mxu0 0.0
    %3211 = vmatpush1.msra.mxu0 0.0
    %3212 = vmatprep.subr.mxu0 0.0
    %3213 = vmatpush1.msra.mxu0 0.0
    %3214 = vmatprep.subr.mxu0 0.0
    %3215 = vmatpush1.msra.mxu0 0.0
    %3216 = vmatprep.subr.mxu0 0.0
    %3217 = vmatpush1.msra.mxu0 0.0
    %3218 = vmatprep.subr.mxu0 0.0
    %3219 = vmatpush1.msra.mxu0 0.0
    %3220 = vmatprep.subr.mxu0 0.0
    %3221 = vmatpush1.msra.mxu0 0.0
    %3222 = vmatprep.subr.mxu0 0.0
    %3223 = vmatpush1.msra.mxu0 0.0
    %3224 = vmatprep.subr.mxu0 0.0
    %3225 = vmatpush1.msra.mxu0 0.0
    %3226 = vmatprep.subr.mxu0 0.0
    %3227 = vmatpush1.msra.mxu0 0.0
    %3228 = vmatprep.subr.mxu0 0.0
    %3229 = vmatpush1.msra.mxu0 0.0
    %3230 = vmatprep.subr.mxu0 0.0
    %3231 = vmatpush1.msra.mxu0 0.0
    %3232 = vmatprep.subr.mxu0 0.0
    %3233 = vmatpush1.msra.mxu0 0.0
    %3234 = vmatprep.subr.mxu0 0.0
    %3235 = vmatpush1.msra.mxu0 0.0
    %3236 = vmatprep.subr.mxu0 0.0
    %3237 = vmatpush1.msra.mxu0 0.0
    %3238 = vmatprep.subr.mxu0 0.0
    %3239 = vmatpush1.msra.mxu0 0.0
    %3240 = vmatprep.subr.mxu0 0.0
    %3241 = vmatpush1.msra.mxu0 0.0
    %3242 = vmatprep.subr.mxu0 0.0
    %3243 = vmatpush1.msra.mxu0 0.0
    %3244 = vmatprep.subr.mxu0 0.0
    %3245 = vmatpush1.msra.mxu0 0.0
    %3246 = vmatprep.subr.mxu0 0.0
    %3247 = vmatpush1.msra.mxu0 0.0
    %3248 = vmatprep.subr.mxu0 0.0
    %3249 = vmatpush1.msra.mxu0 0.0
    %3250 = vmatprep.subr.mxu0 0.0
    %3251 = vmatpush1.msra.mxu0 0.0
    %3252 = vmatprep.subr.mxu0 0.0
    %3253 = vmatpush1.msra.mxu0 0.0
    %3254 = vmatprep.subr.mxu0 0.0
    %3255 = vmatpush1.msra.mxu0 0.0
    %3256 = vmatprep.mubr.f32.mxu0 0.0
    %3257 = vmatmul.mubr.f32.gmra.mrb[0].mxu0 %v3190
    %v3258 = vpop.f32.mrb[0].mxu0
    %v3259 = vadd.f32 0.0, %v3258
    %v3260 = vpop.f32.mrb[0].mxu0
    %3261 = vdwg.mxu0
    %3262 = vrot.lane.b32.xlu0 %v3005, 64
    %v3263 = vpop.permute.xlu0 %3262
    %v3266 = vsel %vm242, %v3185, 0
    %3268 = vmatprep.subr.mxu0 0.0
    %3269 = vmatpush1.msra.mxu0 %v3263
    %3270 = vmatprep.subr.mxu0 0.0
    %3271 = vmatpush1.msra.mxu0 0.0
    %3272 = vmatprep.subr.mxu0 0.0
    %3273 = vmatpush1.msra.mxu0 0.0
    %3274 = vmatprep.subr.mxu0 0.0
    %3275 = vmatpush1.msra.mxu0 0.0
    %3276 = vmatprep.subr.mxu0 0.0
    %3277 = vmatpush1.msra.mxu0 0.0
    %3278 = vmatprep.subr.mxu0 0.0
    %3279 = vmatpush1.msra.mxu0 0.0
    %3280 = vmatprep.subr.mxu0 0.0
    %3281 = vmatpush1.msra.mxu0 0.0
    %3282 = vmatprep.subr.mxu0 0.0
    %3283 = vmatpush1.msra.mxu0 0.0
    %3284 = vmatprep.subr.mxu0 0.0
    %3285 = vmatpush1.msra.mxu0 0.0
    %3286 = vmatprep.subr.mxu0 0.0
    %3287 = vmatpush1.msra.mxu0 0.0
    %3288 = vmatprep.subr.mxu0 0.0
    %3289 = vmatpush1.msra.mxu0 0.0
    %3290 = vmatprep.subr.mxu0 0.0
    %3291 = vmatpush1.msra.mxu0 0.0
    %3292 = vmatprep.subr.mxu0 0.0
    %3293 = vmatpush1.msra.mxu0 0.0
    %3294 = vmatprep.subr.mxu0 0.0
    %3295 = vmatpush1.msra.mxu0 0.0
    %3296 = vmatprep.subr.mxu0 0.0
    %3297 = vmatpush1.msra.mxu0 0.0
    %3298 = vmatprep.subr.mxu0 0.0
    %3299 = vmatpush1.msra.mxu0 0.0
    %3300 = vmatprep.subr.mxu0 0.0
    %3301 = vmatpush1.msra.mxu0 0.0
    %3302 = vmatprep.subr.mxu0 0.0
    %3303 = vmatpush1.msra.mxu0 0.0
    %3304 = vmatprep.subr.mxu0 0.0
    %3305 = vmatpush1.msra.mxu0 0.0
    %3306 = vmatprep.subr.mxu0 0.0
    %3307 = vmatpush1.msra.mxu0 0.0
    %3308 = vmatprep.subr.mxu0 0.0
    %3309 = vmatpush1.msra.mxu0 0.0
    %3310 = vmatprep.subr.mxu0 0.0
    %3311 = vmatpush1.msra.mxu0 0.0
    %3312 = vmatprep.subr.mxu0 0.0
    %3313 = vmatpush1.msra.mxu0 0.0
    %3314 = vmatprep.subr.mxu0 0.0
    %3315 = vmatpush1.msra.mxu0 0.0
    %3316 = vmatprep.subr.mxu0 0.0
    %3317 = vmatpush1.msra.mxu0 0.0
    %3318 = vmatprep.subr.mxu0 0.0
    %3319 = vmatpush1.msra.mxu0 0.0
    %3320 = vmatprep.subr.mxu0 0.0
    %3321 = vmatpush1.msra.mxu0 0.0
    %3322 = vmatprep.subr.mxu0 0.0
    %3323 = vmatpush1.msra.mxu0 0.0
    %3324 = vmatprep.subr.mxu0 0.0
    %3325 = vmatpush1.msra.mxu0 0.0
    %3326 = vmatprep.subr.mxu0 0.0
    %3327 = vmatpush1.msra.mxu0 0.0
    %3328 = vmatprep.subr.mxu0 0.0
    %3329 = vmatpush1.msra.mxu0 0.0
    %3330 = vmatprep.subr.mxu0 0.0
    %3331 = vmatpush1.msra.mxu0 0.0
    %3332 = vmatprep.mubr.f32.mxu0 0.0
    %3333 = vmatmul.mubr.f32.gmra.mrb[0].mxu0 %v3266
    %v3334 = vpop.f32.mrb[0].mxu0
    %v3335 = vadd.f32 0.0, %v3334
    %v3336 = vpop.f32.mrb[0].mxu0
    %3337 = vdwg.mxu0
    %3338 = vrot.lane.b32.xlu0 %v3002, 120
    %v3339 = vpop.permute.xlu0 %3338
    %3340 = vrot.lane.b32.xlu0 %v3002, 88
    %v3341 = vpop.permute.xlu0 %3340
    %v3342 = vsel %vm242, %v3339, 0
    %v3344 = vsel %vm242, %v3341, 0
    %3346 = vmatprep.subr.mxu0 0.0
    %3347 = vmatpush1.xpose.msra.mxu0 %v3344
    %3348 = vmatprep.subr.mxu0 0.0
    %3349 = vmatpush1.xpose.msra.mxu0 0.0
    %3350 = vmatprep.subr.mxu0 0.0
    %3351 = vmatpush1.xpose.msra.mxu0 0.0
    %3352 = vmatprep.subr.mxu0 0.0
    %3353 = vmatpush1.xpose.msra.mxu0 0.0
    %3354 = vmatprep.subr.mxu0 0.0
    %3355 = vmatpush1.xpose.msra.mxu0 0.0
    %3356 = vmatprep.subr.mxu0 0.0
    %3357 = vmatpush1.xpose.msra.mxu0 0.0
    %3358 = vmatprep.subr.mxu0 0.0
    %3359 = vmatpush1.xpose.msra.mxu0 0.0
    %3360 = vmatprep.subr.mxu0 0.0
    %3361 = vmatpush1.xpose.msra.mxu0 0.0
    %3362 = vmatprep.subr.mxu0 0.0
    %3363 = vmatpush1.xpose.msra.mxu0 0.0
    %3364 = vmatprep.subr.mxu0 0.0
    %3365 = vmatpush1.xpose.msra.mxu0 0.0
    %3366 = vmatprep.subr.mxu0 0.0
    %3367 = vmatpush1.xpose.msra.mxu0 0.0
    %3368 = vmatprep.subr.mxu0 0.0
    %3369 = vmatpush1.xpose.msra.mxu0 0.0
    %3370 = vmatprep.subr.mxu0 0.0
    %3371 = vmatpush1.xpose.msra.mxu0 0.0
    %3372 = vmatprep.subr.mxu0 0.0
    %3373 = vmatpush1.xpose.msra.mxu0 0.0
    %3374 = vmatprep.subr.mxu0 0.0
    %3375 = vmatpush1.xpose.msra.mxu0 0.0
    %3376 = vmatprep.subr.mxu0 0.0
    %3377 = vmatpush1.xpose.msra.mxu0 0.0
    %3378 = vmatprep.subr.mxu0 0.0
    %3379 = vmatpush1.xpose.msra.mxu0 0.0
    %3380 = vmatprep.subr.mxu0 0.0
    %3381 = vmatpush1.xpose.msra.mxu0 0.0
    %3382 = vmatprep.subr.mxu0 0.0
    %3383 = vmatpush1.xpose.msra.mxu0 0.0
    %3384 = vmatprep.subr.mxu0 0.0
    %3385 = vmatpush1.xpose.msra.mxu0 0.0
    %3386 = vmatprep.subr.mxu0 0.0
    %3387 = vmatpush1.xpose.msra.mxu0 0.0
    %3388 = vmatprep.subr.mxu0 0.0
    %3389 = vmatpush1.xpose.msra.mxu0 0.0
    %3390 = vmatprep.subr.mxu0 0.0
    %3391 = vmatpush1.xpose.msra.mxu0 0.0
    %3392 = vmatprep.subr.mxu0 0.0
    %3393 = vmatpush1.xpose.msra.mxu0 0.0
    %3394 = vmatprep.subr.mxu0 0.0
    %3395 = vmatpush1.xpose.msra.mxu0 0.0
    %3396 = vmatprep.subr.mxu0 0.0
    %3397 = vmatpush1.xpose.msra.mxu0 0.0
    %3398 = vmatprep.subr.mxu0 0.0
    %3399 = vmatpush1.xpose.msra.mxu0 0.0
    %3400 = vmatprep.subr.mxu0 0.0
    %3401 = vmatpush1.xpose.msra.mxu0 0.0
    %3402 = vmatprep.subr.mxu0 0.0
    %3403 = vmatpush1.xpose.msra.mxu0 0.0
    %3404 = vmatprep.subr.mxu0 0.0
    %3405 = vmatpush1.xpose.msra.mxu0 0.0
    %3406 = vmatprep.subr.mxu0 0.0
    %3407 = vmatpush1.xpose.msra.mxu0 0.0
    %3408 = vmatprep.subr.mxu0 0.0
    %3409 = vmatpush1.xpose.msra.mxu0 0.0
    %3410 = vmatprep.mubr.f32.mxu0 0.0
    %3411 = vmatmul.mubr.f32.gmra.mrb[0].mxu0 %v3342
    %v3412 = vpop.f32.mrb[0].mxu0
    %v3413 = vadd.f32 0.0, %v3412
    %v3414 = vpop.f32.mrb[0].mxu0
    %3415 = vdwg.mxu0
    %3416 = vrot.lane.b32.xlu0 %v3005, 120
    %v3417 = vpop.permute.xlu0 %3416
    %3418 = vrot.lane.b32.xlu0 %v3005, 88
    %v3419 = vpop.permute.xlu0 %3418
    %v3420 = vsel %vm242, %v3417, 0
    %v3422 = vsel %vm242, %v3419, 0
    %3424 = vmatprep.subr.mxu0 0.0
    %3425 = vmatpush1.xpose.msra.mxu0 %v3422
    %3426 = vmatprep.subr.mxu0 0.0
    %3427 = vmatpush1.xpose.msra.mxu0 0.0
    %3428 = vmatprep.subr.mxu0 0.0
    %3429 = vmatpush1.xpose.msra.mxu0 0.0
    %3430 = vmatprep.subr.mxu0 0.0
    %3431 = vmatpush1.xpose.msra.mxu0 0.0
    %3432 = vmatprep.subr.mxu0 0.0
    %3433 = vmatpush1.xpose.msra.mxu0 0.0
    %3434 = vmatprep.subr.mxu0 0.0
    %3435 = vmatpush1.xpose.msra.mxu0 0.0
    %3436 = vmatprep.subr.mxu0 0.0
    %3437 = vmatpush1.xpose.msra.mxu0 0.0
    %3438 = vmatprep.subr.mxu0 0.0
    %3439 = vmatpush1.xpose.msra.mxu0 0.0
    %3440 = vmatprep.subr.mxu0 0.0
    %3441 = vmatpush1.xpose.msra.mxu0 0.0
    %3442 = vmatprep.subr.mxu0 0.0
    %3443 = vmatpush1.xpose.msra.mxu0 0.0
    %3444 = vmatprep.subr.mxu0 0.0
    %3445 = vmatpush1.xpose.msra.mxu0 0.0
    %3446 = vmatprep.subr.mxu0 0.0
    %3447 = vmatpush1.xpose.msra.mxu0 0.0
    %3448 = vmatprep.subr.mxu0 0.0
    %3449 = vmatpush1.xpose.msra.mxu0 0.0
    %3450 = vmatprep.subr.mxu0 0.0
    %3451 = vmatpush1.xpose.msra.mxu0 0.0
    %3452 = vmatprep.subr.mxu0 0.0
    %3453 = vmatpush1.xpose.msra.mxu0 0.0
    %3454 = vmatprep.subr.mxu0 0.0
    %3455 = vmatpush1.xpose.msra.mxu0 0.0
    %3456 = vmatprep.subr.mxu0 0.0
    %3457 = vmatpush1.xpose.msra.mxu0 0.0
    %3458 = vmatprep.subr.mxu0 0.0
    %3459 = vmatpush1.xpose.msra.mxu0 0.0
    %3460 = vmatprep.subr.mxu0 0.0
    %3461 = vmatpush1.xpose.msra.mxu0 0.0
    %3462 = vmatprep.subr.mxu0 0.0
    %3463 = vmatpush1.xpose.msra.mxu0 0.0
    %3464 = vmatprep.subr.mxu0 0.0
    %3465 = vmatpush1.xpose.msra.mxu0 0.0
    %3466 = vmatprep.subr.mxu0 0.0
    %3467 = vmatpush1.xpose.msra.mxu0 0.0
    %3468 = vmatprep.subr.mxu0 0.0
    %3469 = vmatpush1.xpose.msra.mxu0 0.0
    %3470 = vmatprep.subr.mxu0 0.0
    %3471 = vmatpush1.xpose.msra.mxu0 0.0
    %3472 = vmatprep.subr.mxu0 0.0
    %3473 = vmatpush1.xpose.msra.mxu0 0.0
    %3474 = vmatprep.subr.mxu0 0.0
    %3475 = vmatpush1.xpose.msra.mxu0 0.0
    %3476 = vmatprep.subr.mxu0 0.0
    %3477 = vmatpush1.xpose.msra.mxu0 0.0
    %3478 = vmatprep.subr.mxu0 0.0
    %3479 = vmatpush1.xpose.msra.mxu0 0.0
    %3480 = vmatprep.subr.mxu0 0.0
    %3481 = vmatpush1.xpose.msra.mxu0 0.0
    %3482 = vmatprep.subr.mxu0 0.0
    %3483 = vmatpush1.xpose.msra.mxu0 0.0
    %3484 = vmatprep.subr.mxu0 0.0
    %3485 = vmatpush1.xpose.msra.mxu0 0.0
    %3486 = vmatprep.subr.mxu0 0.0
    %3487 = vmatpush1.xpose.msra.mxu0 0.0
    %3488 = vmatprep.mubr.f32.mxu0 0.0
    %3489 = vmatmul.mubr.f32.gmra.mrb[0].mxu0 %v3420
    %v3490 = vpop.f32.mrb[0].mxu0
    %v3491 = vadd.f32 0.0, %v3490
    %v3492 = vpop.f32.mrb[0].mxu0
    %3493 = vdwg.mxu0
    %v3494 = vmul.f32 %v3413, 0.35355338
    %v3495 = vmul.f32 %v3491, 0.35355338
    %v3496 = vsel %vm242, %v3494, -inf
    %3497 = vmax.xlane.f32.xlu0 %v3496
    %v3498 = vpop.xlane.xlu0 %3497
    %v3499 = vsel %vm242, %v3495, -inf
    %3500 = vmax.xlane.f32.xlu0 %v3499
    %v3501 = vpop.xlane.xlu0 %3500
    %v3502 = vsub.f32 %v3494, %v3498
    %v3503 = vsub.f32 %v3495, %v3501
    %v3504 = vmul.f32 %v3502, 1.442695
    %v3505 = vpow.pop %v3504
    %v3506 = vmul.f32 %v3503, 1.442695
    %v3507 = vpow.pop %v3506
    %v3508 = vsel %vm242, %v3505, 0.0
    %3509 = vadd.xlane.f32.xlu0 %v3508
    %v3510 = vpop.xlane.xlu0 %3509
    %v3511 = vsel %vm242, %v3507, 0.0
    %3512 = vadd.xlane.f32.xlu0 %v3511
    %v3513 = vpop.xlane.xlu0 %3512
    %v3514 = vrcp.pop %v3510
    %v3515 = vrcp.pop %v3513
    %v3516 = vmul.f32 %v3505, %v3514
    %v3517 = vmul.f32 %v3507, %v3515
    %3518 = vrot.lane.b32.xlu0 %v3002, 56
    %v3519 = vpop.permute.xlu0 %3518
    %v3522 = vsel %vm242, %v3516, 0
    %3524 = vmatprep.subr.mxu0 0.0
    %3525 = vmatpush1.msra.mxu0 %v3519
    %3526 = vmatprep.subr.mxu0 0.0
    %3527 = vmatpush1.msra.mxu0 0.0
    %3528 = vmatprep.subr.mxu0 0.0
    %3529 = vmatpush1.msra.mxu0 0.0
    %3530 = vmatprep.subr.mxu0 0.0
    %3531 = vmatpush1.msra.mxu0 0.0
    %3532 = vmatprep.subr.mxu0 0.0
    %3533 = vmatpush1.msra.mxu0 0.0
    %3534 = vmatprep.subr.mxu0 0.0
    %3535 = vmatpush1.msra.mxu0 0.0
    %3536 = vmatprep.subr.mxu0 0.0
    %3537 = vmatpush1.msra.mxu0 0.0
    %3538 = vmatprep.subr.mxu0 0.0
    %3539 = vmatpush1.msra.mxu0 0.0
    %3540 = vmatprep.subr.mxu0 0.0
    %3541 = vmatpush1.msra.mxu0 0.0
    %3542 = vmatprep.subr.mxu0 0.0
    %3543 = vmatpush1.msra.mxu0 0.0
    %3544 = vmatprep.subr.mxu0 0.0
    %3545 = vmatpush1.msra.mxu0 0.0
    %3546 = vmatprep.subr.mxu0 0.0
    %3547 = vmatpush1.msra.mxu0 0.0
    %3548 = vmatprep.subr.mxu0 0.0
    %3549 = vmatpush1.msra.mxu0 0.0
    %3550 = vmatprep.subr.mxu0 0.0
    %3551 = vmatpush1.msra.mxu0 0.0
    %3552 = vmatprep.subr.mxu0 0.0
    %3553 = vmatpush1.msra.mxu0 0.0
    %3554 = vmatprep.subr.mxu0 0.0
    %3555 = vmatpush1.msra.mxu0 0.0
    %3556 = vmatprep.subr.mxu0 0.0
    %3557 = vmatpush1.msra.mxu0 0.0
    %3558 = vmatprep.subr.mxu0 0.0
    %3559 = vmatpush1.msra.mxu0 0.0
    %3560 = vmatprep.subr.mxu0 0.0
    %3561 = vmatpush1.msra.mxu0 0.0
    %3562 = vmatprep.subr.mxu0 0.0
    %3563 = vmatpush1.msra.mxu0 0.0
    %3564 = vmatprep.subr.mxu0 0.0
    %3565 = vmatpush1.msra.mxu0 0.0
    %3566 = vmatprep.subr.mxu0 0.0
    %3567 = vmatpush1.msra.mxu0 0.0
    %3568 = vmatprep.subr.mxu0 0.0
    %3569 = vmatpush1.msra.mxu0 0.0
    %3570 = vmatprep.subr.mxu0 0.0
    %3571 = vmatpush1.msra.mxu0 0.0
    %3572 = vmatprep.subr.mxu0 0.0
    %3573 = vmatpush1.msra.mxu0 0.0
    %3574 = vmatprep.subr.mxu0 0.0
    %3575 = vmatpush1.msra.mxu0 0.0
    %3576 = vmatprep.subr.mxu0 0.0
    %3577 = vmatpush1.msra.mxu0 0.0
    %3578 = vmatprep.subr.mxu0 0.0
    %3579 = vmatpush1.msra.mxu0 0.0
    %3580 = vmatprep.subr.mxu0 0.0
    %3581 = vmatpush1.msra.mxu0 0.0
    %3582 = vmatprep.subr.mxu0 0.0
    %3583 = vmatpush1.msra.mxu0 0.0
    %3584 = vmatprep.subr.mxu0 0.0
    %3585 = vmatpush1.msra.mxu0 0.0
    %3586 = vmatprep.subr.mxu0 0.0
    %3587 = vmatpush1.msra.mxu0 0.0
    %3588 = vmatprep.mubr.f32.mxu0 0.0
    %3589 = vmatmul.mubr.f32.gmra.mrb[0].mxu0 %v3522
    %v3590 = vpop.f32.mrb[0].mxu0
    %v3591 = vadd.f32 0.0, %v3590
    %v3592 = vpop.f32.mrb[0].mxu0
    %3593 = vdwg.mxu0
    %3594 = vrot.lane.b32.xlu0 %v3005, 56
    %v3595 = vpop.permute.xlu0 %3594
    %v3598 = vsel %vm242, %v3517, 0
    %3600 = vmatprep.subr.mxu0 0.0
    %3601 = vmatpush1.msra.mxu0 %v3595
    %3602 = vmatprep.subr.mxu0 0.0
    %3603 = vmatpush1.msra.mxu0 0.0
    %3604 = vmatprep.subr.mxu0 0.0
    %3605 = vmatpush1.msra.mxu0 0.0
    %3606 = vmatprep.subr.mxu0 0.0
    %3607 = vmatpush1.msra.mxu0 0.0
    %3608 = vmatprep.subr.mxu0 0.0
    %3609 = vmatpush1.msra.mxu0 0.0
    %3610 = vmatprep.subr.mxu0 0.0
    %3611 = vmatpush1.msra.mxu0 0.0
    %3612 = vmatprep.subr.mxu0 0.0
    %3613 = vmatpush1.msra.mxu0 0.0
    %3614 = vmatprep.subr.mxu0 0.0
    %3615 = vmatpush1.msra.mxu0 0.0
    %3616 = vmatprep.subr.mxu0 0.0
    %3617 = vmatpush1.msra.mxu0 0.0
    %3618 = vmatprep.subr.mxu0 0.0
    %3619 = vmatpush1.msra.mxu0 0.0
    %3620 = vmatprep.subr.mxu0 0.0
    %3621 = vmatpush1.msra.mxu0 0.0
    %3622 = vmatprep.subr.mxu0 0.0
    %3623 = vmatpush1.msra.mxu0 0.0
    %3624 = vmatprep.subr.mxu0 0.0
    %3625 = vmatpush1.msra.mxu0 0.0
    %3626 = vmatprep.subr.mxu0 0.0
    %3627 = vmatpush1.msra.mxu0 0.0
    %3628 = vmatprep.subr.mxu0 0.0
    %3629 = vmatpush1.msra.mxu0 0.0
    %3630 = vmatprep.subr.mxu0 0.0
    %3631 = vmatpush1.msra.mxu0 0.0
    %3632 = vmatprep.subr.mxu0 0.0
    %3633 = vmatpush1.msra.mxu0 0.0
    %3634 = vmatprep.subr.mxu0 0.0
    %3635 = vmatpush1.msra.mxu0 0.0
    %3636 = vmatprep.subr.mxu0 0.0
    %3637 = vmatpush1.msra.mxu0 0.0
    %3638 = vmatprep.subr.mxu0 0.0
    %3639 = vmatpush1.msra.mxu0 0.0
    %3640 = vmatprep.subr.mxu0 0.0
    %3641 = vmatpush1.msra.mxu0 0.0
    %3642 = vmatprep.subr.mxu0 0.0
    %3643 = vmatpush1.msra.mxu0 0.0
    %3644 = vmatprep.subr.mxu0 0.0
    %3645 = vmatpush1.msra.mxu0 0.0
    %3646 = vmatprep.subr.mxu0 0.0
    %3647 = vmatpush1.msra.mxu0 0.0
    %3648 = vmatprep.subr.mxu0 0.0
    %3649 = vmatpush1.msra.mxu0 0.0
    %3650 = vmatprep.subr.mxu0 0.0
    %3651 = vmatpush1.msra.mxu0 0.0
    %3652 = vmatprep.subr.mxu0 0.0
    %3653 = vmatpush1.msra.mxu0 0.0
    %3654 = vmatprep.subr.mxu0 0.0
    %3655 = vmatpush1.msra.mxu0 0.0
    %3656 = vmatprep.subr.mxu0 0.0
    %3657 = vmatpush1.msra.mxu0 0.0
    %3658 = vmatprep.subr.mxu0 0.0
    %3659 = vmatpush1.msra.mxu0 0.0
    %3660 = vmatprep.subr.mxu0 0.0
    %3661 = vmatpush1.msra.mxu0 0.0
    %3662 = vmatprep.subr.mxu0 0.0
    %3663 = vmatpush1.msra.mxu0 0.0
    %3664 = vmatprep.mubr.f32.mxu0 0.0
    %3665 = vmatmul.mubr.f32.gmra.mrb[0].mxu0 %v3598
    %v3666 = vpop.f32.mrb[0].mxu0
    %v3667 = vadd.f32 0.0, %v3666
    %v3668 = vpop.f32.mrb[0].mxu0
    %3669 = vdwg.mxu0
    %3670 = vrot.lane.b32.xlu0 %v3002, 112
    %v3671 = vpop.permute.xlu0 %3670
    %3672 = vrot.lane.b32.xlu0 %v3002, 80
    %v3673 = vpop.permute.xlu0 %3672
    %v3674 = vsel %vm242, %v3671, 0
    %v3676 = vsel %vm242, %v3673, 0
    %3678 = vmatprep.subr.mxu0 0.0
    %3679 = vmatpush1.xpose.msra.mxu0 %v3676
    %3680 = vmatprep.subr.mxu0 0.0
    %3681 = vmatpush1.xpose.msra.mxu0 0.0
    %3682 = vmatprep.subr.mxu0 0.0
    %3683 = vmatpush1.xpose.msra.mxu0 0.0
    %3684 = vmatprep.subr.mxu0 0.0
    %3685 = vmatpush1.xpose.msra.mxu0 0.0
    %3686 = vmatprep.subr.mxu0 0.0
    %3687 = vmatpush1.xpose.msra.mxu0 0.0
    %3688 = vmatprep.subr.mxu0 0.0
    %3689 = vmatpush1.xpose.msra.mxu0 0.0
    %3690 = vmatprep.subr.mxu0 0.0
    %3691 = vmatpush1.xpose.msra.mxu0 0.0
    %3692 = vmatprep.subr.mxu0 0.0
    %3693 = vmatpush1.xpose.msra.mxu0 0.0
    %3694 = vmatprep.subr.mxu0 0.0
    %3695 = vmatpush1.xpose.msra.mxu0 0.0
    %3696 = vmatprep.subr.mxu0 0.0
    %3697 = vmatpush1.xpose.msra.mxu0 0.0
    %3698 = vmatprep.subr.mxu0 0.0
    %3699 = vmatpush1.xpose.msra.mxu0 0.0
    %3700 = vmatprep.subr.mxu0 0.0
    %3701 = vmatpush1.xpose.msra.mxu0 0.0
    %3702 = vmatprep.subr.mxu0 0.0
    %3703 = vmatpush1.xpose.msra.mxu0 0.0
    %3704 = vmatprep.subr.mxu0 0.0
    %3705 = vmatpush1.xpose.msra.mxu0 0.0
    %3706 = vmatprep.subr.mxu0 0.0
    %3707 = vmatpush1.xpose.msra.mxu0 0.0
    %3708 = vmatprep.subr.mxu0 0.0
    %3709 = vmatpush1.xpose.msra.mxu0 0.0
    %3710 = vmatprep.subr.mxu0 0.0
    %3711 = vmatpush1.xpose.msra.mxu0 0.0
    %3712 = vmatprep.subr.mxu0 0.0
    %3713 = vmatpush1.xpose.msra.mxu0 0.0
    %3714 = vmatprep.subr.mxu0 0.0
    %3715 = vmatpush1.xpose.msra.mxu0 0.0
    %3716 = vmatprep.subr.mxu0 0.0
    %3717 = vmatpush1.xpose.msra.mxu0 0.0
    %3718 = vmatprep.subr.mxu0 0.0
    %3719 = vmatpush1.xpose.msra.mxu0 0.0
    %3720 = vmatprep.subr.mxu0 0.0
    %3721 = vmatpush1.xpose.msra.mxu0 0.0
    %3722 = vmatprep.subr.mxu0 0.0
    %3723 = vmatpush1.xpose.msra.mxu0 0.0
    %3724 = vmatprep.subr.mxu0 0.0
    %3725 = vmatpush1.xpose.msra.mxu0 0.0
    %3726 = vmatprep.subr.mxu0 0.0
    %3727 = vmatpush1.xpose.msra.mxu0 0.0
    %3728 = vmatprep.subr.mxu0 0.0
    %3729 = vmatpush1.xpose.msra.mxu0 0.0
    %3730 = vmatprep.subr.mxu0 0.0
    %3731 = vmatpush1.xpose.msra.mxu0 0.0
    %3732 = vmatprep.subr.mxu0 0.0
    %3733 = vmatpush1.xpose.msra.mxu0 0.0
    %3734 = vmatprep.subr.mxu0 0.0
    %3735 = vmatpush1.xpose.msra.mxu0 0.0
    %3736 = vmatprep.subr.mxu0 0.0
    %3737 = vmatpush1.xpose.msra.mxu0 0.0
    %3738 = vmatprep.subr.mxu0 0.0
    %3739 = vmatpush1.xpose.msra.mxu0 0.0
    %3740 = vmatprep.subr.mxu0 0.0
    %3741 = vmatpush1.xpose.msra.mxu0 0.0
    %3742 = vmatprep.mubr.f32.mxu0 0.0
    %3743 = vmatmul.mubr.f32.gmra.mrb[0].mxu0 %v3674
    %v3744 = vpop.f32.mrb[0].mxu0
    %v3745 = vadd.f32 0.0, %v3744
    %v3746 = vpop.f32.mrb[0].mxu0
    %3747 = vdwg.mxu0
    %3748 = vrot.lane.b32.xlu0 %v3005, 112
    %v3749 = vpop.permute.xlu0 %3748
    %3750 = vrot.lane.b32.xlu0 %v3005, 80
    %v3751 = vpop.permute.xlu0 %3750
    %v3752 = vsel %vm242, %v3749, 0
    %v3754 = vsel %vm242, %v3751, 0
    %3756 = vmatprep.subr.mxu0 0.0
    %3757 = vmatpush1.xpose.msra.mxu0 %v3754
    %3758 = vmatprep.subr.mxu0 0.0
    %3759 = vmatpush1.xpose.msra.mxu0 0.0
    %3760 = vmatprep.subr.mxu0 0.0
    %3761 = vmatpush1.xpose.msra.mxu0 0.0
    %3762 = vmatprep.subr.mxu0 0.0
    %3763 = vmatpush1.xpose.msra.mxu0 0.0
    %3764 = vmatprep.subr.mxu0 0.0
    %3765 = vmatpush1.xpose.msra.mxu0 0.0
    %3766 = vmatprep.subr.mxu0 0.0
    %3767 = vmatpush1.xpose.msra.mxu0 0.0
    %3768 = vmatprep.subr.mxu0 0.0
    %3769 = vmatpush1.xpose.msra.mxu0 0.0
    %3770 = vmatprep.subr.mxu0 0.0
    %3771 = vmatpush1.xpose.msra.mxu0 0.0
    %3772 = vmatprep.subr.mxu0 0.0
    %3773 = vmatpush1.xpose.msra.mxu0 0.0
    %3774 = vmatprep.subr.mxu0 0.0
    %3775 = vmatpush1.xpose.msra.mxu0 0.0
    %3776 = vmatprep.subr.mxu0 0.0
    %3777 = vmatpush1.xpose.msra.mxu0 0.0
    %3778 = vmatprep.subr.mxu0 0.0
    %3779 = vmatpush1.xpose.msra.mxu0 0.0
    %3780 = vmatprep.subr.mxu0 0.0
    %3781 = vmatpush1.xpose.msra.mxu0 0.0
    %3782 = vmatprep.subr.mxu0 0.0
    %3783 = vmatpush1.xpose.msra.mxu0 0.0
    %3784 = vmatprep.subr.mxu0 0.0
    %3785 = vmatpush1.xpose.msra.mxu0 0.0
    %3786 = vmatprep.subr.mxu0 0.0
    %3787 = vmatpush1.xpose.msra.mxu0 0.0
    %3788 = vmatprep.subr.mxu0 0.0
    %3789 = vmatpush1.xpose.msra.mxu0 0.0
    %3790 = vmatprep.subr.mxu0 0.0
    %3791 = vmatpush1.xpose.msra.mxu0 0.0
    %3792 = vmatprep.subr.mxu0 0.0
    %3793 = vmatpush1.xpose.msra.mxu0 0.0
    %3794 = vmatprep.subr.mxu0 0.0
    %3795 = vmatpush1.xpose.msra.mxu0 0.0
    %3796 = vmatprep.subr.mxu0 0.0
    %3797 = vmatpush1.xpose.msra.mxu0 0.0
    %3798 = vmatprep.subr.mxu0 0.0
    %3799 = vmatpush1.xpose.msra.mxu0 0.0
    %3800 = vmatprep.subr.mxu0 0.0
    %3801 = vmatpush1.xpose.msra.mxu0 0.0
    %3802 = vmatprep.subr.mxu0 0.0
    %3803 = vmatpush1.xpose.msra.mxu0 0.0
    %3804 = vmatprep.subr.mxu0 0.0
    %3805 = vmatpush1.xpose.msra.mxu0 0.0
    %3806 = vmatprep.subr.mxu0 0.0
    %3807 = vmatpush1.xpose.msra.mxu0 0.0
    %3808 = vmatprep.subr.mxu0 0.0
    %3809 = vmatpush1.xpose.msra.mxu0 0.0
    %3810 = vmatprep.subr.mxu0 0.0
    %3811 = vmatpush1.xpose.msra.mxu0 0.0
    %3812 = vmatprep.subr.mxu0 0.0
    %3813 = vmatpush1.xpose.msra.mxu0 0.0
    %3814 = vmatprep.subr.mxu0 0.0
    %3815 = vmatpush1.xpose.msra.mxu0 0.0
    %3816 = vmatprep.subr.mxu0 0.0
    %3817 = vmatpush1.xpose.msra.mxu0 0.0
    %3818 = vmatprep.subr.mxu0 0.0
    %3819 = vmatpush1.xpose.msra.mxu0 0.0
    %3820 = vmatprep.mubr.f32.mxu0 0.0
    %3821 = vmatmul.mubr.f32.gmra.mrb[0].mxu0 %v3752
    %v3822 = vpop.f32.mrb[0].mxu0
    %v3823 = vadd.f32 0.0, %v3822
    %v3824 = vpop.f32.mrb[0].mxu0
    %3825 = vdwg.mxu0
    %v3826 = vmul.f32 %v3745, 0.35355338
    %v3827 = vmul.f32 %v3823, 0.35355338
    %v3828 = vsel %vm242, %v3826, -inf
    %3829 = vmax.xlane.f32.xlu0 %v3828
    %v3830 = vpop.xlane.xlu0 %3829
    %v3831 = vsel %vm242, %v3827, -inf
    %3832 = vmax.xlane.f32.xlu0 %v3831
    %v3833 = vpop.xlane.xlu0 %3832
    %v3834 = vsub.f32 %v3826, %v3830
    %v3835 = vsub.f32 %v3827, %v3833
    %v3836 = vmul.f32 %v3834, 1.442695
    %v3837 = vpow.pop %v3836
    %v3838 = vmul.f32 %v3835, 1.442695
    %v3839 = vpow.pop %v3838
    %v3840 = vsel %vm242, %v3837, 0.0
    %3841 = vadd.xlane.f32.xlu0 %v3840
    %v3842 = vpop.xlane.xlu0 %3841
    %v3843 = vsel %vm242, %v3839, 0.0
    %3844 = vadd.xlane.f32.xlu0 %v3843
    %v3845 = vpop.xlane.xlu0 %3844
    %v3846 = vrcp.pop %v3842
    %v3847 = vrcp.pop %v3845
    %v3848 = vmul.f32 %v3837, %v3846
    %v3849 = vmul.f32 %v3839, %v3847
    %3850 = vrot.lane.b32.xlu0 %v3002, 48
    %v3851 = vpop.permute.xlu0 %3850
    %v3854 = vsel %vm242, %v3848, 0
    %3856 = vmatprep.subr.mxu0 0.0
    %3857 = vmatpush1.msra.mxu0 %v3851
    %3858 = vmatprep.subr.mxu0 0.0
    %3859 = vmatpush1.msra.mxu0 0.0
    %3860 = vmatprep.subr.mxu0 0.0
    %3861 = vmatpush1.msra.mxu0 0.0
    %3862 = vmatprep.subr.mxu0 0.0
    %3863 = vmatpush1.msra.mxu0 0.0
    %3864 = vmatprep.subr.mxu0 0.0
    %3865 = vmatpush1.msra.mxu0 0.0
    %3866 = vmatprep.subr.mxu0 0.0
    %3867 = vmatpush1.msra.mxu0 0.0
    %3868 = vmatprep.subr.mxu0 0.0
    %3869 = vmatpush1.msra.mxu0 0.0
    %3870 = vmatprep.subr.mxu0 0.0
    %3871 = vmatpush1.msra.mxu0 0.0
    %3872 = vmatprep.subr.mxu0 0.0
    %3873 = vmatpush1.msra.mxu0 0.0
    %3874 = vmatprep.subr.mxu0 0.0
    %3875 = vmatpush1.msra.mxu0 0.0
    %3876 = vmatprep.subr.mxu0 0.0
    %3877 = vmatpush1.msra.mxu0 0.0
    %3878 = vmatprep.subr.mxu0 0.0
    %3879 = vmatpush1.msra.mxu0 0.0
    %3880 = vmatprep.subr.mxu0 0.0
    %3881 = vmatpush1.msra.mxu0 0.0
    %3882 = vmatprep.subr.mxu0 0.0
    %3883 = vmatpush1.msra.mxu0 0.0
    %3884 = vmatprep.subr.mxu0 0.0
    %3885 = vmatpush1.msra.mxu0 0.0
    %3886 = vmatprep.subr.mxu0 0.0
    %3887 = vmatpush1.msra.mxu0 0.0
    %3888 = vmatprep.subr.mxu0 0.0
    %3889 = vmatpush1.msra.mxu0 0.0
    %3890 = vmatprep.subr.mxu0 0.0
    %3891 = vmatpush1.msra.mxu0 0.0
    %3892 = vmatprep.subr.mxu0 0.0
    %3893 = vmatpush1.msra.mxu0 0.0
    %3894 = vmatprep.subr.mxu0 0.0
    %3895 = vmatpush1.msra.mxu0 0.0
    %3896 = vmatprep.subr.mxu0 0.0
    %3897 = vmatpush1.msra.mxu0 0.0
    %3898 = vmatprep.subr.mxu0 0.0
    %3899 = vmatpush1.msra.mxu0 0.0
    %3900 = vmatprep.subr.mxu0 0.0
    %3901 = vmatpush1.msra.mxu0 0.0
    %3902 = vmatprep.subr.mxu0 0.0
    %3903 = vmatpush1.msra.mxu0 0.0
    %3904 = vmatprep.subr.mxu0 0.0
    %3905 = vmatpush1.msra.mxu0 0.0
    %3906 = vmatprep.subr.mxu0 0.0
    %3907 = vmatpush1.msra.mxu0 0.0
    %3908 = vmatprep.subr.mxu0 0.0
    %3909 = vmatpush1.msra.mxu0 0.0
    %3910 = vmatprep.subr.mxu0 0.0
    %3911 = vmatpush1.msra.mxu0 0.0
    %3912 = vmatprep.subr.mxu0 0.0
    %3913 = vmatpush1.msra.mxu0 0.0
    %3914 = vmatprep.subr.mxu0 0.0
    %3915 = vmatpush1.msra.mxu0 0.0
    %3916 = vmatprep.subr.mxu0 0.0
    %3917 = vmatpush1.msra.mxu0 0.0
    %3918 = vmatprep.subr.mxu0 0.0
    %3919 = vmatpush1.msra.mxu0 0.0
    %3920 = vmatprep.mubr.f32.mxu0 0.0
    %3921 = vmatmul.mubr.f32.gmra.mrb[0].mxu0 %v3854
    %v3922 = vpop.f32.mrb[0].mxu0
    %v3923 = vadd.f32 0.0, %v3922
    %v3924 = vpop.f32.mrb[0].mxu0
    %3925 = vdwg.mxu0
    %3926 = vrot.lane.b32.xlu0 %v3005, 48
    %v3927 = vpop.permute.xlu0 %3926
    %v3930 = vsel %vm242, %v3849, 0
    %3932 = vmatprep.subr.mxu0 0.0
    %3933 = vmatpush1.msra.mxu0 %v3927
    %3934 = vmatprep.subr.mxu0 0.0
    %3935 = vmatpush1.msra.mxu0 0.0
    %3936 = vmatprep.subr.mxu0 0.0
    %3937 = vmatpush1.msra.mxu0 0.0
    %3938 = vmatprep.subr.mxu0 0.0
    %3939 = vmatpush1.msra.mxu0 0.0
    %3940 = vmatprep.subr.mxu0 0.0
    %3941 = vmatpush1.msra.mxu0 0.0
    %3942 = vmatprep.subr.mxu0 0.0
    %3943 = vmatpush1.msra.mxu0 0.0
    %3944 = vmatprep.subr.mxu0 0.0
    %3945 = vmatpush1.msra.mxu0 0.0
    %3946 = vmatprep.subr.mxu0 0.0
    %3947 = vmatpush1.msra.mxu0 0.0
    %3948 = vmatprep.subr.mxu0 0.0
    %3949 = vmatpush1.msra.mxu0 0.0
    %3950 = vmatprep.subr.mxu0 0.0
    %3951 = vmatpush1.msra.mxu0 0.0
    %3952 = vmatprep.subr.mxu0 0.0
    %3953 = vmatpush1.msra.mxu0 0.0
    %3954 = vmatprep.subr.mxu0 0.0
    %3955 = vmatpush1.msra.mxu0 0.0
    %3956 = vmatprep.subr.mxu0 0.0
    %3957 = vmatpush1.msra.mxu0 0.0
    %3958 = vmatprep.subr.mxu0 0.0
    %3959 = vmatpush1.msra.mxu0 0.0
    %3960 = vmatprep.subr.mxu0 0.0
    %3961 = vmatpush1.msra.mxu0 0.0
    %3962 = vmatprep.subr.mxu0 0.0
    %3963 = vmatpush1.msra.mxu0 0.0
    %3964 = vmatprep.subr.mxu0 0.0
    %3965 = vmatpush1.msra.mxu0 0.0
    %3966 = vmatprep.subr.mxu0 0.0
    %3967 = vmatpush1.msra.mxu0 0.0
    %3968 = vmatprep.subr.mxu0 0.0
    %3969 = vmatpush1.msra.mxu0 0.0
    %3970 = vmatprep.subr.mxu0 0.0
    %3971 = vmatpush1.msra.mxu0 0.0
    %3972 = vmatprep.subr.mxu0 0.0
    %3973 = vmatpush1.msra.mxu0 0.0
    %3974 = vmatprep.subr.mxu0 0.0
    %3975 = vmatpush1.msra.mxu0 0.0
    %3976 = vmatprep.subr.mxu0 0.0
    %3977 = vmatpush1.msra.mxu0 0.0
    %3978 = vmatprep.subr.mxu0 0.0
    %3979 = vmatpush1.msra.mxu0 0.0
    %3980 = vmatprep.subr.mxu0 0.0
    %3981 = vmatpush1.msra.mxu0 0.0
    %3982 = vmatprep.subr.mxu0 0.0
    %3983 = vmatpush1.msra.mxu0 0.0
    %3984 = vmatprep.subr.mxu0 0.0
    %3985 = vmatpush1.msra.mxu0 0.0
    %3986 = vmatprep.subr.mxu0 0.0
    %3987 = vmatpush1.msra.mxu0 0.0
    %3988 = vmatprep.subr.mxu0 0.0
    %3989 = vmatpush1.msra.mxu0 0.0
    %3990 = vmatprep.subr.mxu0 0.0
    %3991 = vmatpush1.msra.mxu0 0.0
    %3992 = vmatprep.subr.mxu0 0.0
    %3993 = vmatpush1.msra.mxu0 0.0
    %3994 = vmatprep.subr.mxu0 0.0
    %3995 = vmatpush1.msra.mxu0 0.0
    %3996 = vmatprep.mubr.f32.mxu0 0.0
    %3997 = vmatmul.mubr.f32.gmra.mrb[0].mxu0 %v3930
    %v3998 = vpop.f32.mrb[0].mxu0
    %v3999 = vadd.f32 0.0, %v3998
    %v4000 = vpop.f32.mrb[0].mxu0
    %4001 = vdwg.mxu0
    %4002 = vrot.lane.b32.xlu0 %v3002, 104
    %v4003 = vpop.permute.xlu0 %4002
    %4004 = vrot.lane.b32.xlu0 %v3002, 72
    %v4005 = vpop.permute.xlu0 %4004
    %v4006 = vsel %vm242, %v4003, 0
    %v4008 = vsel %vm242, %v4005, 0
    %4010 = vmatprep.subr.mxu0 0.0
    %4011 = vmatpush1.xpose.msra.mxu0 %v4008
    %4012 = vmatprep.subr.mxu0 0.0
    %4013 = vmatpush1.xpose.msra.mxu0 0.0
    %4014 = vmatprep.subr.mxu0 0.0
    %4015 = vmatpush1.xpose.msra.mxu0 0.0
    %4016 = vmatprep.subr.mxu0 0.0
    %4017 = vmatpush1.xpose.msra.mxu0 0.0
    %4018 = vmatprep.subr.mxu0 0.0
    %4019 = vmatpush1.xpose.msra.mxu0 0.0
    %4020 = vmatprep.subr.mxu0 0.0
    %4021 = vmatpush1.xpose.msra.mxu0 0.0
    %4022 = vmatprep.subr.mxu0 0.0
    %4023 = vmatpush1.xpose.msra.mxu0 0.0
    %4024 = vmatprep.subr.mxu0 0.0
    %4025 = vmatpush1.xpose.msra.mxu0 0.0
    %4026 = vmatprep.subr.mxu0 0.0
    %4027 = vmatpush1.xpose.msra.mxu0 0.0
    %4028 = vmatprep.subr.mxu0 0.0
    %4029 = vmatpush1.xpose.msra.mxu0 0.0
    %4030 = vmatprep.subr.mxu0 0.0
    %4031 = vmatpush1.xpose.msra.mxu0 0.0
    %4032 = vmatprep.subr.mxu0 0.0
    %4033 = vmatpush1.xpose.msra.mxu0 0.0
    %4034 = vmatprep.subr.mxu0 0.0
    %4035 = vmatpush1.xpose.msra.mxu0 0.0
    %4036 = vmatprep.subr.mxu0 0.0
    %4037 = vmatpush1.xpose.msra.mxu0 0.0
    %4038 = vmatprep.subr.mxu0 0.0
    %4039 = vmatpush1.xpose.msra.mxu0 0.0
    %4040 = vmatprep.subr.mxu0 0.0
    %4041 = vmatpush1.xpose.msra.mxu0 0.0
    %4042 = vmatprep.subr.mxu0 0.0
    %4043 = vmatpush1.xpose.msra.mxu0 0.0
    %4044 = vmatprep.subr.mxu0 0.0
    %4045 = vmatpush1.xpose.msra.mxu0 0.0
    %4046 = vmatprep.subr.mxu0 0.0
    %4047 = vmatpush1.xpose.msra.mxu0 0.0
    %4048 = vmatprep.subr.mxu0 0.0
    %4049 = vmatpush1.xpose.msra.mxu0 0.0
    %4050 = vmatprep.subr.mxu0 0.0
    %4051 = vmatpush1.xpose.msra.mxu0 0.0
    %4052 = vmatprep.subr.mxu0 0.0
    %4053 = vmatpush1.xpose.msra.mxu0 0.0
    %4054 = vmatprep.subr.mxu0 0.0
    %4055 = vmatpush1.xpose.msra.mxu0 0.0
    %4056 = vmatprep.subr.mxu0 0.0
    %4057 = vmatpush1.xpose.msra.mxu0 0.0
    %4058 = vmatprep.subr.mxu0 0.0
    %4059 = vmatpush1.xpose.msra.mxu0 0.0
    %4060 = vmatprep.subr.mxu0 0.0
    %4061 = vmatpush1.xpose.msra.mxu0 0.0
    %4062 = vmatprep.subr.mxu0 0.0
    %4063 = vmatpush1.xpose.msra.mxu0 0.0
    %4064 = vmatprep.subr.mxu0 0.0
    %4065 = vmatpush1.xpose.msra.mxu0 0.0
    %4066 = vmatprep.subr.mxu0 0.0
    %4067 = vmatpush1.xpose.msra.mxu0 0.0
    %4068 = vmatprep.subr.mxu0 0.0
    %4069 = vmatpush1.xpose.msra.mxu0 0.0
    %4070 = vmatprep.subr.mxu0 0.0
    %4071 = vmatpush1.xpose.msra.mxu0 0.0
    %4072 = vmatprep.subr.mxu0 0.0
    %4073 = vmatpush1.xpose.msra.mxu0 0.0
    %4074 = vmatprep.mubr.f32.mxu0 0.0
    %4075 = vmatmul.mubr.f32.gmra.mrb[0].mxu0 %v4006
    %v4076 = vpop.f32.mrb[0].mxu0
    %v4077 = vadd.f32 0.0, %v4076
    %v4078 = vpop.f32.mrb[0].mxu0
    %4079 = vdwg.mxu0
    %4080 = vrot.lane.b32.xlu0 %v3005, 104
    %v4081 = vpop.permute.xlu0 %4080
    %4082 = vrot.lane.b32.xlu0 %v3005, 72
    %v4083 = vpop.permute.xlu0 %4082
    %v4084 = vsel %vm242, %v4081, 0
    %v4086 = vsel %vm242, %v4083, 0
    %4088 = vmatprep.subr.mxu0 0.0
    %4089 = vmatpush1.xpose.msra.mxu0 %v4086
    %4090 = vmatprep.subr.mxu0 0.0
    %4091 = vmatpush1.xpose.msra.mxu0 0.0
    %4092 = vmatprep.subr.mxu0 0.0
    %4093 = vmatpush1.xpose.msra.mxu0 0.0
    %4094 = vmatprep.subr.mxu0 0.0
    %4095 = vmatpush1.xpose.msra.mxu0 0.0
    %4096 = vmatprep.subr.mxu0 0.0
    %4097 = vmatpush1.xpose.msra.mxu0 0.0
    %4098 = vmatprep.subr.mxu0 0.0
    %4099 = vmatpush1.xpose.msra.mxu0 0.0
    %4100 = vmatprep.subr.mxu0 0.0
    %4101 = vmatpush1.xpose.msra.mxu0 0.0
    %4102 = vmatprep.subr.mxu0 0.0
    %4103 = vmatpush1.xpose.msra.mxu0 0.0
    %4104 = vmatprep.subr.mxu0 0.0
    %4105 = vmatpush1.xpose.msra.mxu0 0.0
    %4106 = vmatprep.subr.mxu0 0.0
    %4107 = vmatpush1.xpose.msra.mxu0 0.0
    %4108 = vmatprep.subr.mxu0 0.0
    %4109 = vmatpush1.xpose.msra.mxu0 0.0
    %4110 = vmatprep.subr.mxu0 0.0
    %4111 = vmatpush1.xpose.msra.mxu0 0.0
    %4112 = vmatprep.subr.mxu0 0.0
    %4113 = vmatpush1.xpose.msra.mxu0 0.0
    %4114 = vmatprep.subr.mxu0 0.0
    %4115 = vmatpush1.xpose.msra.mxu0 0.0
    %4116 = vmatprep.subr.mxu0 0.0
    %4117 = vmatpush1.xpose.msra.mxu0 0.0
    %4118 = vmatprep.subr.mxu0 0.0
    %4119 = vmatpush1.xpose.msra.mxu0 0.0
    %4120 = vmatprep.subr.mxu0 0.0
    %4121 = vmatpush1.xpose.msra.mxu0 0.0
    %4122 = vmatprep.subr.mxu0 0.0
    %4123 = vmatpush1.xpose.msra.mxu0 0.0
    %4124 = vmatprep.subr.mxu0 0.0
    %4125 = vmatpush1.xpose.msra.mxu0 0.0
    %4126 = vmatprep.subr.mxu0 0.0
    %4127 = vmatpush1.xpose.msra.mxu0 0.0
    %4128 = vmatprep.subr.mxu0 0.0
    %4129 = vmatpush1.xpose.msra.mxu0 0.0
    %4130 = vmatprep.subr.mxu0 0.0
    %4131 = vmatpush1.xpose.msra.mxu0 0.0
    %4132 = vmatprep.subr.mxu0 0.0
    %4133 = vmatpush1.xpose.msra.mxu0 0.0
    %4134 = vmatprep.subr.mxu0 0.0
    %4135 = vmatpush1.xpose.msra.mxu0 0.0
    %4136 = vmatprep.subr.mxu0 0.0
    %4137 = vmatpush1.xpose.msra.mxu0 0.0
    %4138 = vmatprep.subr.mxu0 0.0
    %4139 = vmatpush1.xpose.msra.mxu0 0.0
    %4140 = vmatprep.subr.mxu0 0.0
    %4141 = vmatpush1.xpose.msra.mxu0 0.0
    %4142 = vmatprep.subr.mxu0 0.0
    %4143 = vmatpush1.xpose.msra.mxu0 0.0
    %4144 = vmatprep.subr.mxu0 0.0
    %4145 = vmatpush1.xpose.msra.mxu0 0.0
    %4146 = vmatprep.subr.mxu0 0.0
    %4147 = vmatpush1.xpose.msra.mxu0 0.0
    %4148 = vmatprep.subr.mxu0 0.0
    %4149 = vmatpush1.xpose.msra.mxu0 0.0
    %4150 = vmatprep.subr.mxu0 0.0
    %4151 = vmatpush1.xpose.msra.mxu0 0.0
    %4152 = vmatprep.mubr.f32.mxu0 0.0
    %4153 = vmatmul.mubr.f32.gmra.mrb[0].mxu0 %v4084
    %v4154 = vpop.f32.mrb[0].mxu0
    %v4155 = vadd.f32 0.0, %v4154
    %v4156 = vpop.f32.mrb[0].mxu0
    %4157 = vdwg.mxu0
    %v4158 = vmul.f32 %v4077, 0.35355338
    %v4159 = vmul.f32 %v4155, 0.35355338
    %v4160 = vsel %vm242, %v4158, -inf
    %4161 = vmax.xlane.f32.xlu0 %v4160
    %v4162 = vpop.xlane.xlu0 %4161
    %v4163 = vsel %vm242, %v4159, -inf
    %4164 = vmax.xlane.f32.xlu0 %v4163
    %v4165 = vpop.xlane.xlu0 %4164
    %v4166 = vsub.f32 %v4158, %v4162
    %v4167 = vsub.f32 %v4159, %v4165
    %v4168 = vmul.f32 %v4166, 1.442695
    %v4169 = vpow.pop %v4168
    %v4170 = vmul.f32 %v4167, 1.442695
    %v4171 = vpow.pop %v4170
    %v4172 = vsel %vm242, %v4169, 0.0
    %4173 = vadd.xlane.f32.xlu0 %v4172
    %v4174 = vpop.xlane.xlu0 %4173
    %v4175 = vsel %vm242, %v4171, 0.0
    %4176 = vadd.xlane.f32.xlu0 %v4175
    %v4177 = vpop.xlane.xlu0 %4176
    %v4178 = vrcp.pop %v4174
    %v4179 = vrcp.pop %v4177
    %v4180 = vmul.f32 %v4169, %v4178
    %v4181 = vmul.f32 %v4171, %v4179
    %4182 = vrot.lane.b32.xlu0 %v3002, 40
    %v4183 = vpop.permute.xlu0 %4182
    %v4186 = vsel %vm242, %v4180, 0
    %4188 = vmatprep.subr.mxu0 0.0
    %4189 = vmatpush1.msra.mxu0 %v4183
    %4190 = vmatprep.subr.mxu0 0.0
    %4191 = vmatpush1.msra.mxu0 0.0
    %4192 = vmatprep.subr.mxu0 0.0
    %4193 = vmatpush1.msra.mxu0 0.0
    %4194 = vmatprep.subr.mxu0 0.0
    %4195 = vmatpush1.msra.mxu0 0.0
    %4196 = vmatprep.subr.mxu0 0.0
    %4197 = vmatpush1.msra.mxu0 0.0
    %4198 = vmatprep.subr.mxu0 0.0
    %4199 = vmatpush1.msra.mxu0 0.0
    %4200 = vmatprep.subr.mxu0 0.0
    %4201 = vmatpush1.msra.mxu0 0.0
    %4202 = vmatprep.subr.mxu0 0.0
    %4203 = vmatpush1.msra.mxu0 0.0
    %4204 = vmatprep.subr.mxu0 0.0
    %4205 = vmatpush1.msra.mxu0 0.0
    %4206 = vmatprep.subr.mxu0 0.0
    %4207 = vmatpush1.msra.mxu0 0.0
    %4208 = vmatprep.subr.mxu0 0.0
    %4209 = vmatpush1.msra.mxu0 0.0
    %4210 = vmatprep.subr.mxu0 0.0
    %4211 = vmatpush1.msra.mxu0 0.0
    %4212 = vmatprep.subr.mxu0 0.0
    %4213 = vmatpush1.msra.mxu0 0.0
    %4214 = vmatprep.subr.mxu0 0.0
    %4215 = vmatpush1.msra.mxu0 0.0
    %4216 = vmatprep.subr.mxu0 0.0
    %4217 = vmatpush1.msra.mxu0 0.0
    %4218 = vmatprep.subr.mxu0 0.0
    %4219 = vmatpush1.msra.mxu0 0.0
    %4220 = vmatprep.subr.mxu0 0.0
    %4221 = vmatpush1.msra.mxu0 0.0
    %4222 = vmatprep.subr.mxu0 0.0
    %4223 = vmatpush1.msra.mxu0 0.0
    %4224 = vmatprep.subr.mxu0 0.0
    %4225 = vmatpush1.msra.mxu0 0.0
    %4226 = vmatprep.subr.mxu0 0.0
    %4227 = vmatpush1.msra.mxu0 0.0
    %4228 = vmatprep.subr.mxu0 0.0
    %4229 = vmatpush1.msra.mxu0 0.0
    %4230 = vmatprep.subr.mxu0 0.0
    %4231 = vmatpush1.msra.mxu0 0.0
    %4232 = vmatprep.subr.mxu0 0.0
    %4233 = vmatpush1.msra.mxu0 0.0
    %4234 = vmatprep.subr.mxu0 0.0
    %4235 = vmatpush1.msra.mxu0 0.0
    %4236 = vmatprep.subr.mxu0 0.0
    %4237 = vmatpush1.msra.mxu0 0.0
    %4238 = vmatprep.subr.mxu0 0.0
    %4239 = vmatpush1.msra.mxu0 0.0
    %4240 = vmatprep.subr.mxu0 0.0
    %4241 = vmatpush1.msra.mxu0 0.0
    %4242 = vmatprep.subr.mxu0 0.0
    %4243 = vmatpush1.msra.mxu0 0.0
    %4244 = vmatprep.subr.mxu0 0.0
    %4245 = vmatpush1.msra.mxu0 0.0
    %4246 = vmatprep.subr.mxu0 0.0
    %4247 = vmatpush1.msra.mxu0 0.0
    %4248 = vmatprep.subr.mxu0 0.0
    %4249 = vmatpush1.msra.mxu0 0.0
    %4250 = vmatprep.subr.mxu0 0.0
    %4251 = vmatpush1.msra.mxu0 0.0
    %4252 = vmatprep.mubr.f32.mxu0 0.0
    %4253 = vmatmul.mubr.f32.gmra.mrb[0].mxu0 %v4186
    %v4254 = vpop.f32.mrb[0].mxu0
    %v4255 = vadd.f32 0.0, %v4254
    %v4256 = vpop.f32.mrb[0].mxu0
    %4257 = vdwg.mxu0
    %4258 = vrot.lane.b32.xlu0 %v3005, 40
    %v4259 = vpop.permute.xlu0 %4258
    %v4262 = vsel %vm242, %v4181, 0
    %4264 = vmatprep.subr.mxu0 0.0
    %4265 = vmatpush1.msra.mxu0 %v4259
    %4266 = vmatprep.subr.mxu0 0.0
    %4267 = vmatpush1.msra.mxu0 0.0
    %4268 = vmatprep.subr.mxu0 0.0
    %4269 = vmatpush1.msra.mxu0 0.0
    %4270 = vmatprep.subr.mxu0 0.0
    %4271 = vmatpush1.msra.mxu0 0.0
    %4272 = vmatprep.subr.mxu0 0.0
    %4273 = vmatpush1.msra.mxu0 0.0
    %4274 = vmatprep.subr.mxu0 0.0
    %4275 = vmatpush1.msra.mxu0 0.0
    %4276 = vmatprep.subr.mxu0 0.0
    %4277 = vmatpush1.msra.mxu0 0.0
    %4278 = vmatprep.subr.mxu0 0.0
    %4279 = vmatpush1.msra.mxu0 0.0
    %4280 = vmatprep.subr.mxu0 0.0
    %4281 = vmatpush1.msra.mxu0 0.0
    %4282 = vmatprep.subr.mxu0 0.0
    %4283 = vmatpush1.msra.mxu0 0.0
    %4284 = vmatprep.subr.mxu0 0.0
    %4285 = vmatpush1.msra.mxu0 0.0
    %4286 = vmatprep.subr.mxu0 0.0
    %4287 = vmatpush1.msra.mxu0 0.0
    %4288 = vmatprep.subr.mxu0 0.0
    %4289 = vmatpush1.msra.mxu0 0.0
    %4290 = vmatprep.subr.mxu0 0.0
    %4291 = vmatpush1.msra.mxu0 0.0
    %4292 = vmatprep.subr.mxu0 0.0
    %4293 = vmatpush1.msra.mxu0 0.0
    %4294 = vmatprep.subr.mxu0 0.0
    %4295 = vmatpush1.msra.mxu0 0.0
    %4296 = vmatprep.subr.mxu0 0.0
    %4297 = vmatpush1.msra.mxu0 0.0
    %4298 = vmatprep.subr.mxu0 0.0
    %4299 = vmatpush1.msra.mxu0 0.0
    %4300 = vmatprep.subr.mxu0 0.0
    %4301 = vmatpush1.msra.mxu0 0.0
    %4302 = vmatprep.subr.mxu0 0.0
    %4303 = vmatpush1.msra.mxu0 0.0
    %4304 = vmatprep.subr.mxu0 0.0
    %4305 = vmatpush1.msra.mxu0 0.0
    %4306 = vmatprep.subr.mxu0 0.0
    %4307 = vmatpush1.msra.mxu0 0.0
    %4308 = vmatprep.subr.mxu0 0.0
    %4309 = vmatpush1.msra.mxu0 0.0
    %4310 = vmatprep.subr.mxu0 0.0
    %4311 = vmatpush1.msra.mxu0 0.0
    %4312 = vmatprep.subr.mxu0 0.0
    %4313 = vmatpush1.msra.mxu0 0.0
    %4314 = vmatprep.subr.mxu0 0.0
    %4315 = vmatpush1.msra.mxu0 0.0
    %4316 = vmatprep.subr.mxu0 0.0
    %4317 = vmatpush1.msra.mxu0 0.0
    %4318 = vmatprep.subr.mxu0 0.0
    %4319 = vmatpush1.msra.mxu0 0.0
    %4320 = vmatprep.subr.mxu0 0.0
    %4321 = vmatpush1.msra.mxu0 0.0
    %4322 = vmatprep.subr.mxu0 0.0
    %4323 = vmatpush1.msra.mxu0 0.0
    %4324 = vmatprep.subr.mxu0 0.0
    %4325 = vmatpush1.msra.mxu0 0.0
    %4326 = vmatprep.subr.mxu0 0.0
    %4327 = vmatpush1.msra.mxu0 0.0
    %4328 = vmatprep.mubr.f32.mxu0 0.0
    %4329 = vmatmul.mubr.f32.gmra.mrb[0].mxu0 %v4262
    %v4330 = vpop.f32.mrb[0].mxu0
    %v4331 = vadd.f32 0.0, %v4330
    %v4332 = vpop.f32.mrb[0].mxu0
    %4333 = vdwg.mxu0
    %4336 = vrot.lane.b32.xlu0 %v3591, 8
    %v4337 = vpop.permute.xlu0 %4336
    %4338 = vrot.lane.b32.xlu0 %v3667, 8
    %v4339 = vpop.permute.xlu0 %4338
    %4344 = vrot.lane.b32.xlu0 %v3923, 16
    %v4345 = vpop.permute.xlu0 %4344
    %4346 = vrot.lane.b32.xlu0 %v3999, 16
    %v4347 = vpop.permute.xlu0 %4346
    %4352 = vrot.lane.b32.xlu0 %v4255, 24
    %v4353 = vpop.permute.xlu0 %4352
    %4354 = vrot.lane.b32.xlu0 %v4331, 24
    %v4355 = vpop.permute.xlu0 %4354
    %v4358 = vsel %vm242, %v3259, %v4337
    %v4359 = vsel %vm242, %v3335, %v4339
    %v4360 = vsel %vm1592, %v4358, %v4345
    %v4361 = vsel %vm1592, %v4359, %v4347
    %v4362 = vsel %vm1595, %v4360, %v4353
    %v4363 = vsel %vm1595, %v4361, %v4355
    %v4364 = vpack.c.bf16 %v4363, %v4362
    %s4365 = scalar_lea.vmem %s3, 16
    %v4366 = vld [vmem:[%s4365] sm:$0xf]
    %v4367 = vld [vmem:[%s4365 + $0x4] sm:$0xf]
    %v4368 = vld [vmem:[%s4365 + $0x8] sm:$0xf]
    %v4369 = vld [vmem:[%s4365 + $0xc] sm:$0xf]
    %v4370 = vlaneseq
    %v4371 = vshrl.u32 %v4370, 7
    %v4372 = vsub.s32 1, %v4371
    %v4373 = vrot.slane %v2941, %v4372
    %v4378 = vunpack.c.l.b16 %v4366
    %v4379 = vunpack.c.l.b16 %v4367
    %v4380 = vunpack.c.l.b16 %v4368
    %v4381 = vunpack.c.l.b16 %v4369
    %v4382 = vpack.c.b16 %v4379, %v4378
    %v4383 = vpack.c.b16 %v4381, %v4380
    %v4387 = vsel %vm194, %v4364, 0
    %4389 = vmatprep.subr.bf16.mxu0 0
    %4390 = vmatpush1.bf16.msra.mxu0 %v4382
    %4391 = vmatprep.subr.bf16.mxu0 0
    %4392 = vmatpush1.bf16.msra.mxu0 %v4383
    %4393 = vmatprep.subr.bf16.mxu0 0
    %4394 = vmatpush1.bf16.msra.mxu0 0
    %4395 = vmatprep.subr.bf16.mxu0 0
    %4396 = vmatpush1.bf16.msra.mxu0 0
    %4397 = vmatprep.subr.bf16.mxu0 0
    %4398 = vmatpush1.bf16.msra.mxu0 0
    %4399 = vmatprep.subr.bf16.mxu0 0
    %4400 = vmatpush1.bf16.msra.mxu0 0
    %4401 = vmatprep.subr.bf16.mxu0 0
    %4402 = vmatpush1.bf16.msra.mxu0 0
    %4403 = vmatprep.subr.bf16.mxu0 0
    %4404 = vmatpush1.bf16.msra.mxu0 0
    %4405 = vmatprep.subr.bf16.mxu0 0
    %4406 = vmatpush1.bf16.msra.mxu0 0
    %4407 = vmatprep.subr.bf16.mxu0 0
    %4408 = vmatpush1.bf16.msra.mxu0 0
    %4409 = vmatprep.subr.bf16.mxu0 0
    %4410 = vmatpush1.bf16.msra.mxu0 0
    %4411 = vmatprep.subr.bf16.mxu0 0
    %4412 = vmatpush1.bf16.msra.mxu0 0
    %4413 = vmatprep.subr.bf16.mxu0 0
    %4414 = vmatpush1.bf16.msra.mxu0 0
    %4415 = vmatprep.subr.bf16.mxu0 0
    %4416 = vmatpush1.bf16.msra.mxu0 0
    %4417 = vmatprep.subr.bf16.mxu0 0
    %4418 = vmatpush1.bf16.msra.mxu0 0
    %4419 = vmatprep.subr.bf16.mxu0 0
    %4420 = vmatpush1.bf16.msra.mxu0 0
    %4421 = vmatprep.mubr.bf16.mxu0 0
    %4422 = vmatmul.mubr.bf16.gmra.mrb[0].mxu0 %v4387
    %v4423 = vpop.f32.mrb[0].mxu0
    %v4424 = vadd.f32 %v4373, %v4423
    %v4425 = vpop.f32.mrb[0].mxu0
    %v4426 = vpop.f32.mrb[0].mxu0
    %v4427 = vadd.f32 %v4373, %v4426
    %v4428 = vpop.f32.mrb[0].mxu0
    %4429 = vdwg.mxu0
    %v4430 = vadd.f32 %v2938, %v4424
    %v4431 = vadd.f32 %v2939, %v4427
    %v4432 = vsel %vm194, %v4430, 0.0
    %4433 = vadd.xlane.f32.xlu0 %v4432
    %v4434 = vpop.xlane.xlu0 %4433
    %v4435 = vsel %vm194, %v4431, 0.0
    %4436 = vadd.xlane.f32.xlu0 %v4435
    %v4437 = vpop.xlane.xlu0 %4436
    %v4438 = vmul.f32 %v4434, %v1671
    %v4439 = vmul.f32 %v4437, %v1671
    %v4440 = vsub.f32 %v4430, %v4438
    %v4441 = vsub.f32 %v4431, %v4439
    %v4442 = vmul.f32 %v4440, %v4440
    %v4443 = vmul.f32 %v4441, %v4441
    %v4444 = vsel %vm194, %v4442, 0.0
    %4445 = vadd.xlane.f32.xlu0 %v4444
    %v4446 = vpop.xlane.xlu0 %4445
    %v4447 = vsel %vm194, %v4443, 0.0
    %4448 = vadd.xlane.f32.xlu0 %v4447
    %v4449 = vpop.xlane.xlu0 %4448
    %v4450 = vmul.f32 %v4446, %v1671
    %v4451 = vmul.f32 %v4449, %v1671
    %v4452 = vadd.f32 %v4450, 1e-05
    %v4453 = vadd.f32 %v4451, 1e-05
    %v4454 = vrsqrt.pop %v4452
    %v4455 = vrsqrt.pop %v4453
    %v4456 = vmul.f32 %v4440, %v4454
    %v4457 = vmul.f32 %v4441, %v4455
    %v4458 = vlaneseq
    %v4459 = vshrl.u32 %v4458, 7
    %v4460 = vsub.s32 2, %v4459
    %v4461 = vrot.slane %v2941, %v4460
    %v4462 = vmul.f32 %v4456, %v4461
    %v4463 = vmul.f32 %v4457, %v4461
    %v4464 = vlaneseq
    %v4465 = vshrl.u32 %v4464, 7
    %v4466 = vsub.s32 3, %v4465
    %v4467 = vrot.slane %v2941, %v4466
    %v4468 = vadd.f32 %v4462, %v4467
    %v4469 = vadd.f32 %v4463, %v4467
    %v4470 = vpack.c.bf16 %v4469, %v4468
    %s4471 = scalar_lea.vmem [#allocation2], 256
    %v4472 = vld [vmem:[%s4471] sm:$0xff]
    %v4473 = vld [vmem:[%s4471 + $0x8] sm:$0xff]
    %v4474 = vld [vmem:[%s4471 + $0x10] sm:$0xff]
    %v4475 = vld [vmem:[%s4471 + $0x18] sm:$0xff]
    %v4476 = vld [vmem:[%s4471 + $0x20] sm:$0xff]
    %v4477 = vld [vmem:[%s4471 + $0x28] sm:$0xff]
    %v4478 = vld [vmem:[%s4471 + $0x30] sm:$0xff]
    %v4479 = vld [vmem:[%s4471 + $0x38] sm:$0xff]
    %v4480 = vld [vmem:[%s4471 + $0x40] sm:$0xff]
    %v4481 = vld [vmem:[%s4471 + $0x48] sm:$0xff]
    %v4482 = vld [vmem:[%s4471 + $0x50] sm:$0xff]
    %v4483 = vld [vmem:[%s4471 + $0x58] sm:$0xff]
    %v4484 = vld [vmem:[%s4471 + $0x60] sm:$0xff]
    %v4485 = vld [vmem:[%s4471 + $0x68] sm:$0xff]
    %v4486 = vld [vmem:[%s4471 + $0x70] sm:$0xff]
    %v4487 = vld [vmem:[%s4471 + $0x78] sm:$0xff]
    %v4488 = vld [vmem:[%s4471 + $0x80] sm:$0xff]
    %v4489 = vld [vmem:[%s4471 + $0x88] sm:$0xff]
    %v4490 = vld [vmem:[%s4471 + $0x90] sm:$0xff]
    %v4491 = vld [vmem:[%s4471 + $0x98] sm:$0xff]
    %v4492 = vld [vmem:[%s4471 + $0xa0] sm:$0xff]
    %v4493 = vld [vmem:[%s4471 + $0xa8] sm:$0xff]
    %v4494 = vld [vmem:[%s4471 + $0xb0] sm:$0xff]
    %v4495 = vld [vmem:[%s4471 + $0xb8] sm:$0xff]
    %v4496 = vld [vmem:[%s4471 + $0xc0] sm:$0xff]
    %v4497 = vld [vmem:[%s4471 + $0xc8] sm:$0xff]
    %v4498 = vld [vmem:[%s4471 + $0xd0] sm:$0xff]
    %v4499 = vld [vmem:[%s4471 + $0xd8] sm:$0xff]
    %v4500 = vld [vmem:[%s4471 + $0xe0] sm:$0xff]
    %v4501 = vld [vmem:[%s4471 + $0xe8] sm:$0xff]
    %v4502 = vld [vmem:[%s4471 + $0xf0] sm:$0xff]
    %v4503 = vld [vmem:[%s4471 + $0xf8] sm:$0xff]
    %s4504 = scalar_lea.vmem %s5, 16
    %v4505 = vld [vmem:[%s4504] sm:$0xff]
    %v4506 = vld [vmem:[%s4504 + $0x8] sm:$0xff]
    %v4509 = vlaneseq
    %v4510 = vshrl.u32 %v4509, 7
    %v4511 = vsub.s32 0, %v4510
    %v4512 = vrot.slane %v4505, %v4511
    %v4513 = vlaneseq
    %v4514 = vshrl.u32 %v4513, 7
    %v4515 = vsub.s32 1, %v4514
    %v4516 = vrot.slane %v4505, %v4515
    %v4517 = vlaneseq
    %v4518 = vshrl.u32 %v4517, 7
    %v4519 = vsub.s32 2, %v4518
    %v4520 = vrot.slane %v4505, %v4519
    %v4521 = vlaneseq
    %v4522 = vshrl.u32 %v4521, 7
    %v4523 = vsub.s32 3, %v4522
    %v4524 = vrot.slane %v4505, %v4523
    %v4525 = vlaneseq
    %v4526 = vshrl.u32 %v4525, 7
    %v4527 = vsub.s32 4, %v4526
    %v4528 = vrot.slane %v4505, %v4527
    %v4529 = vlaneseq
    %v4530 = vshrl.u32 %v4529, 7
    %v4531 = vsub.s32 5, %v4530
    %v4532 = vrot.slane %v4505, %v4531
    %v4533 = vlaneseq
    %v4534 = vshrl.u32 %v4533, 7
    %v4535 = vsub.s32 6, %v4534
    %v4536 = vrot.slane %v4505, %v4535
    %v4537 = vlaneseq
    %v4538 = vshrl.u32 %v4537, 7
    %v4539 = vsub.s32 7, %v4538
    %v4540 = vrot.slane %v4505, %v4539
    %v4541 = vlaneseq
    %v4542 = vshrl.u32 %v4541, 7
    %v4543 = vsub.s32 0, %v4542
    %v4544 = vrot.slane %v4506, %v4543
    %v4545 = vlaneseq
    %v4546 = vshrl.u32 %v4545, 7
    %v4547 = vsub.s32 1, %v4546
    %v4548 = vrot.slane %v4506, %v4547
    %v4549 = vlaneseq
    %v4550 = vshrl.u32 %v4549, 7
    %v4551 = vsub.s32 2, %v4550
    %v4552 = vrot.slane %v4506, %v4551
    %v4553 = vlaneseq
    %v4554 = vshrl.u32 %v4553, 7
    %v4555 = vsub.s32 3, %v4554
    %v4556 = vrot.slane %v4506, %v4555
    %v4557 = vlaneseq
    %v4558 = vshrl.u32 %v4557, 7
    %v4559 = vsub.s32 4, %v4558
    %v4560 = vrot.slane %v4506, %v4559
    %v4561 = vlaneseq
    %v4562 = vshrl.u32 %v4561, 7
    %v4563 = vsub.s32 5, %v4562
    %v4564 = vrot.slane %v4506, %v4563
    %v4565 = vlaneseq
    %v4566 = vshrl.u32 %v4565, 7
    %v4567 = vsub.s32 6, %v4566
    %v4568 = vrot.slane %v4506, %v4567
    %v4569 = vlaneseq
    %v4570 = vshrl.u32 %v4569, 7
    %v4571 = vsub.s32 7, %v4570
    %v4572 = vrot.slane %v4506, %v4571
    %v4621 = vunpack.c.l.b16 %v4472
    %v4622 = vunpack.c.h.b16 %v4472
    %v4623 = vunpack.c.l.b16 %v4473
    %v4624 = vunpack.c.h.b16 %v4473
    %v4625 = vunpack.c.l.b16 %v4474
    %v4626 = vunpack.c.h.b16 %v4474
    %v4627 = vunpack.c.l.b16 %v4475
    %v4628 = vunpack.c.h.b16 %v4475
    %v4629 = vunpack.c.l.b16 %v4476
    %v4630 = vunpack.c.h.b16 %v4476
    %v4631 = vunpack.c.l.b16 %v4477
    %v4632 = vunpack.c.h.b16 %v4477
    %v4633 = vunpack.c.l.b16 %v4478
    %v4634 = vunpack.c.h.b16 %v4478
    %v4635 = vunpack.c.l.b16 %v4479
    %v4636 = vunpack.c.h.b16 %v4479
    %v4637 = vunpack.c.l.b16 %v4480
    %v4638 = vunpack.c.h.b16 %v4480
    %v4639 = vunpack.c.l.b16 %v4481
    %v4640 = vunpack.c.h.b16 %v4481
    %v4641 = vunpack.c.l.b16 %v4482
    %v4642 = vunpack.c.h.b16 %v4482
    %v4643 = vunpack.c.l.b16 %v4483
    %v4644 = vunpack.c.h.b16 %v4483
    %v4645 = vunpack.c.l.b16 %v4484
    %v4646 = vunpack.c.h.b16 %v4484
    %v4647 = vunpack.c.l.b16 %v4485
    %v4648 = vunpack.c.h.b16 %v4485
    %v4649 = vunpack.c.l.b16 %v4486
    %v4650 = vunpack.c.h.b16 %v4486
    %v4651 = vunpack.c.l.b16 %v4487
    %v4652 = vunpack.c.h.b16 %v4487
    %v4653 = vunpack.c.l.b16 %v4488
    %v4654 = vunpack.c.h.b16 %v4488
    %v4655 = vunpack.c.l.b16 %v4489
    %v4656 = vunpack.c.h.b16 %v4489
    %v4657 = vunpack.c.l.b16 %v4490
    %v4658 = vunpack.c.h.b16 %v4490
    %v4659 = vunpack.c.l.b16 %v4491
    %v4660 = vunpack.c.h.b16 %v4491
    %v4661 = vunpack.c.l.b16 %v4492
    %v4662 = vunpack.c.h.b16 %v4492
    %v4663 = vunpack.c.l.b16 %v4493
    %v4664 = vunpack.c.h.b16 %v4493
    %v4665 = vunpack.c.l.b16 %v4494
    %v4666 = vunpack.c.h.b16 %v4494
    %v4667 = vunpack.c.l.b16 %v4495
    %v4668 = vunpack.c.h.b16 %v4495
    %v4669 = vunpack.c.l.b16 %v4496
    %v4670 = vunpack.c.h.b16 %v4496
    %v4671 = vunpack.c.l.b16 %v4497
    %v4672 = vunpack.c.h.b16 %v4497
    %v4673 = vunpack.c.l.b16 %v4498
    %v4674 = vunpack.c.h.b16 %v4498
    %v4675 = vunpack.c.l.b16 %v4499
    %v4676 = vunpack.c.h.b16 %v4499
    %v4677 = vunpack.c.l.b16 %v4500
    %v4678 = vunpack.c.h.b16 %v4500
    %v4679 = vunpack.c.l.b16 %v4501
    %v4680 = vunpack.c.h.b16 %v4501
    %v4681 = vunpack.c.l.b16 %v4502
    %v4682 = vunpack.c.h.b16 %v4502
    %v4683 = vunpack.c.l.b16 %v4503
    %v4684 = vunpack.c.h.b16 %v4503
    %v4685 = vpack.c.b16 %v4637, %v4621
    %v4686 = vpack.c.b16 %v4638, %v4622
    %v4687 = vpack.c.b16 %v4639, %v4623
    %v4688 = vpack.c.b16 %v4640, %v4624
    %v4689 = vpack.c.b16 %v4641, %v4625
    %v4690 = vpack.c.b16 %v4642, %v4626
    %v4691 = vpack.c.b16 %v4643, %v4627
    %v4692 = vpack.c.b16 %v4644, %v4628
    %v4693 = vpack.c.b16 %v4645, %v4629
    %v4694 = vpack.c.b16 %v4646, %v4630
    %v4695 = vpack.c.b16 %v4647, %v4631
    %v4696 = vpack.c.b16 %v4648, %v4632
    %v4697 = vpack.c.b16 %v4649, %v4633
    %v4698 = vpack.c.b16 %v4650, %v4634
    %v4699 = vpack.c.b16 %v4651, %v4635
    %v4700 = vpack.c.b16 %v4652, %v4636
    %v4701 = vpack.c.b16 %v4669, %v4653
    %v4702 = vpack.c.b16 %v4670, %v4654
    %v4703 = vpack.c.b16 %v4671, %v4655
    %v4704 = vpack.c.b16 %v4672, %v4656
    %v4705 = vpack.c.b16 %v4673, %v4657
    %v4706 = vpack.c.b16 %v4674, %v4658
    %v4707 = vpack.c.b16 %v4675, %v4659
    %v4708 = vpack.c.b16 %v4676, %v4660
    %v4709 = vpack.c.b16 %v4677, %v4661
    %v4710 = vpack.c.b16 %v4678, %v4662
    %v4711 = vpack.c.b16 %v4679, %v4663
    %v4712 = vpack.c.b16 %v4680, %v4664
    %v4713 = vpack.c.b16 %v4681, %v4665
    %v4714 = vpack.c.b16 %v4682, %v4666
    %v4715 = vpack.c.b16 %v4683, %v4667
    %v4716 = vpack.c.b16 %v4684, %v4668
    %v4750 = vsel %vm194, %v4470, 0
    %4752 = vmatprep.subr.bf16.mxu0 %v4686
    %4753 = vmatpush1.bf16.msra.mxu0 %v4685
    %4754 = vmatprep.subr.bf16.mxu0 %v4702
    %4755 = vmatpush1.bf16.msra.mxu0 %v4701
    %4756 = vmatprep.subr.bf16.mxu0 0
    %4757 = vmatpush1.bf16.msra.mxu0 0
    %4758 = vmatprep.subr.bf16.mxu0 0
    %4759 = vmatpush1.bf16.msra.mxu0 0
    %4760 = vmatprep.subr.bf16.mxu0 0
    %4761 = vmatpush1.bf16.msra.mxu0 0
    %4762 = vmatprep.subr.bf16.mxu0 0
    %4763 = vmatpush1.bf16.msra.mxu0 0
    %4764 = vmatprep.subr.bf16.mxu0 0
    %4765 = vmatpush1.bf16.msra.mxu0 0
    %4766 = vmatprep.subr.bf16.mxu0 0
    %4767 = vmatpush1.bf16.msra.mxu0 0
    %4768 = vmatprep.subr.bf16.mxu0 0
    %4769 = vmatpush1.bf16.msra.mxu0 0
    %4770 = vmatprep.subr.bf16.mxu0 0
    %4771 = vmatpush1.bf16.msra.mxu0 0
    %4772 = vmatprep.subr.bf16.mxu0 0
    %4773 = vmatpush1.bf16.msra.mxu0 0
    %4774 = vmatprep.subr.bf16.mxu0 0
    %4775 = vmatpush1.bf16.msra.mxu0 0
    %4776 = vmatprep.subr.bf16.mxu0 0
    %4777 = vmatpush1.bf16.msra.mxu0 0
    %4778 = vmatprep.subr.bf16.mxu0 0
    %4779 = vmatpush1.bf16.msra.mxu0 0
    %4780 = vmatprep.subr.bf16.mxu0 0
    %4781 = vmatpush1.bf16.msra.mxu0 0
    %4782 = vmatprep.subr.bf16.mxu0 0
    %4783 = vmatpush1.bf16.msra.mxu0 0
    %4784 = vmatprep.mubr.bf16.mxu0 0
    %4785 = vmatmul.mubr.bf16.gmra.mrb[0].mxu0 %v4750
    %v4786 = vpop.f32.mrb[0].mxu0
    %v4787 = vadd.f32 %v4512, %v4786
    %v4788 = vpop.f32.mrb[0].mxu0
    %v4789 = vadd.f32 %v4516, %v4788
    %v4790 = vpop.f32.mrb[0].mxu0
    %v4791 = vadd.f32 %v4512, %v4790
    %v4792 = vpop.f32.mrb[0].mxu0
    %v4793 = vadd.f32 %v4516, %v4792
    %4794 = vdwg.mxu0
    %4795 = vmatprep.subr.bf16.mxu0 %v4688
    %4796 = vmatpush1.bf16.msra.mxu0 %v4687
    %4797 = vmatprep.subr.bf16.mxu0 %v4704
    %4798 = vmatpush1.bf16.msra.mxu0 %v4703
    %4799 = vmatprep.subr.bf16.mxu0 0
    %4800 = vmatpush1.bf16.msra.mxu0 0
    %4801 = vmatprep.subr.bf16.mxu0 0
    %4802 = vmatpush1.bf16.msra.mxu0 0
    %4803 = vmatprep.subr.bf16.mxu0 0
    %4804 = vmatpush1.bf16.msra.mxu0 0
    %4805 = vmatprep.subr.bf16.mxu0 0
    %4806 = vmatpush1.bf16.msra.mxu0 0
    %4807 = vmatprep.subr.bf16.mxu0 0
    %4808 = vmatpush1.bf16.msra.mxu0 0
    %4809 = vmatprep.subr.bf16.mxu0 0
    %4810 = vmatpush1.bf16.msra.mxu0 0
    %4811 = vmatprep.subr.bf16.mxu0 0
    %4812 = vmatpush1.bf16.msra.mxu0 0
    %4813 = vmatprep.subr.bf16.mxu0 0
    %4814 = vmatpush1.bf16.msra.mxu0 0
    %4815 = vmatprep.subr.bf16.mxu0 0
    %4816 = vmatpush1.bf16.msra.mxu0 0
    %4817 = vmatprep.subr.bf16.mxu0 0
    %4818 = vmatpush1.bf16.msra.mxu0 0
    %4819 = vmatprep.subr.bf16.mxu0 0
    %4820 = vmatpush1.bf16.msra.mxu0 0
    %4821 = vmatprep.subr.bf16.mxu0 0
    %4822 = vmatpush1.bf16.msra.mxu0 0
    %4823 = vmatprep.subr.bf16.mxu0 0
    %4824 = vmatpush1.bf16.msra.mxu0 0
    %4825 = vmatprep.subr.bf16.mxu0 0
    %4826 = vmatpush1.bf16.msra.mxu0 0
    %4827 = vmatprep.mubr.bf16.mxu0 0
    %4828 = vmatmul.mubr.bf16.gmra.mrb[0].mxu0 %v4750
    %v4829 = vpop.f32.mrb[0].mxu0
    %v4830 = vadd.f32 %v4520, %v4829
    %v4831 = vpop.f32.mrb[0].mxu0
    %v4832 = vadd.f32 %v4524, %v4831
    %v4833 = vpop.f32.mrb[0].mxu0
    %v4834 = vadd.f32 %v4520, %v4833
    %v4835 = vpop.f32.mrb[0].mxu0
    %v4836 = vadd.f32 %v4524, %v4835
    %4837 = vdwg.mxu0
    %4838 = vmatprep.subr.bf16.mxu0 %v4690
    %4839 = vmatpush1.bf16.msra.mxu0 %v4689
    %4840 = vmatprep.subr.bf16.mxu0 %v4706
    %4841 = vmatpush1.bf16.msra.mxu0 %v4705
    %4842 = vmatprep.subr.bf16.mxu0 0
    %4843 = vmatpush1.bf16.msra.mxu0 0
    %4844 = vmatprep.subr.bf16.mxu0 0
    %4845 = vmatpush1.bf16.msra.mxu0 0
    %4846 = vmatprep.subr.bf16.mxu0 0
    %4847 = vmatpush1.bf16.msra.mxu0 0
    %4848 = vmatprep.subr.bf16.mxu0 0
    %4849 = vmatpush1.bf16.msra.mxu0 0
    %4850 = vmatprep.subr.bf16.mxu0 0
    %4851 = vmatpush1.bf16.msra.mxu0 0
    %4852 = vmatprep.subr.bf16.mxu0 0
    %4853 = vmatpush1.bf16.msra.mxu0 0
    %4854 = vmatprep.subr.bf16.mxu0 0
    %4855 = vmatpush1.bf16.msra.mxu0 0
    %4856 = vmatprep.subr.bf16.mxu0 0
    %4857 = vmatpush1.bf16.msra.mxu0 0
    %4858 = vmatprep.subr.bf16.mxu0 0
    %4859 = vmatpush1.bf16.msra.mxu0 0
    %4860 = vmatprep.subr.bf16.mxu0 0
    %4861 = vmatpush1.bf16.msra.mxu0 0
    %4862 = vmatprep.subr.bf16.mxu0 0
    %4863 = vmatpush1.bf16.msra.mxu0 0
    %4864 = vmatprep.subr.bf16.mxu0 0
    %4865 = vmatpush1.bf16.msra.mxu0 0
    %4866 = vmatprep.subr.bf16.mxu0 0
    %4867 = vmatpush1.bf16.msra.mxu0 0
    %4868 = vmatprep.subr.bf16.mxu0 0
    %4869 = vmatpush1.bf16.msra.mxu0 0
    %4870 = vmatprep.mubr.bf16.mxu0 0
    %4871 = vmatmul.mubr.bf16.gmra.mrb[0].mxu0 %v4750
    %v4872 = vpop.f32.mrb[0].mxu0
    %v4873 = vadd.f32 %v4528, %v4872
    %v4874 = vpop.f32.mrb[0].mxu0
    %v4875 = vadd.f32 %v4532, %v4874
    %v4876 = vpop.f32.mrb[0].mxu0
    %v4877 = vadd.f32 %v4528, %v4876
    %v4878 = vpop.f32.mrb[0].mxu0
    %v4879 = vadd.f32 %v4532, %v4878
    %4880 = vdwg.mxu0
    %4881 = vmatprep.subr.bf16.mxu0 %v4692
    %4882 = vmatpush1.bf16.msra.mxu0 %v4691
    %4883 = vmatprep.subr.bf16.mxu0 %v4708
    %4884 = vmatpush1.bf16.msra.mxu0 %v4707
    %4885 = vmatprep.subr.bf16.mxu0 0
    %4886 = vmatpush1.bf16.msra.mxu0 0
    %4887 = vmatprep.subr.bf16.mxu0 0
    %4888 = vmatpush1.bf16.msra.mxu0 0
    %4889 = vmatprep.subr.bf16.mxu0 0
    %4890 = vmatpush1.bf16.msra.mxu0 0
    %4891 = vmatprep.subr.bf16.mxu0 0
    %4892 = vmatpush1.bf16.msra.mxu0 0
    %4893 = vmatprep.subr.bf16.mxu0 0
    %4894 = vmatpush1.bf16.msra.mxu0 0
    %4895 = vmatprep.subr.bf16.mxu0 0
    %4896 = vmatpush1.bf16.msra.mxu0 0
    %4897 = vmatprep.subr.bf16.mxu0 0
    %4898 = vmatpush1.bf16.msra.mxu0 0
    %4899 = vmatprep.subr.bf16.mxu0 0
    %4900 = vmatpush1.bf16.msra.mxu0 0
    %4901 = vmatprep.subr.bf16.mxu0 0
    %4902 = vmatpush1.bf16.msra.mxu0 0
    %4903 = vmatprep.subr.bf16.mxu0 0
    %4904 = vmatpush1.bf16.msra.mxu0 0
    %4905 = vmatprep.subr.bf16.mxu0 0
    %4906 = vmatpush1.bf16.msra.mxu0 0
    %4907 = vmatprep.subr.bf16.mxu0 0
    %4908 = vmatpush1.bf16.msra.mxu0 0
    %4909 = vmatprep.subr.bf16.mxu0 0
    %4910 = vmatpush1.bf16.msra.mxu0 0
    %4911 = vmatprep.subr.bf16.mxu0 0
    %4912 = vmatpush1.bf16.msra.mxu0 0
    %4913 = vmatprep.mubr.bf16.mxu0 0
    %4914 = vmatmul.mubr.bf16.gmra.mrb[0].mxu0 %v4750
    %v4915 = vpop.f32.mrb[0].mxu0
    %v4916 = vadd.f32 %v4536, %v4915
    %v4917 = vpop.f32.mrb[0].mxu0
    %v4918 = vadd.f32 %v4540, %v4917
    %v4919 = vpop.f32.mrb[0].mxu0
    %v4920 = vadd.f32 %v4536, %v4919
    %v4921 = vpop.f32.mrb[0].mxu0
    %v4922 = vadd.f32 %v4540, %v4921
    %4923 = vdwg.mxu0
    %4924 = vmatprep.subr.bf16.mxu0 %v4694
    %4925 = vmatpush1.bf16.msra.mxu0 %v4693
    %4926 = vmatprep.subr.bf16.mxu0 %v4710
    %4927 = vmatpush1.bf16.msra.mxu0 %v4709
    %4928 = vmatprep.subr.bf16.mxu0 0
    %4929 = vmatpush1.bf16.msra.mxu0 0
    %4930 = vmatprep.subr.bf16.mxu0 0
    %4931 = vmatpush1.bf16.msra.mxu0 0
    %4932 = vmatprep.subr.bf16.mxu0 0
    %4933 = vmatpush1.bf16.msra.mxu0 0
    %4934 = vmatprep.subr.bf16.mxu0 0
    %4935 = vmatpush1.bf16.msra.mxu0 0
    %4936 = vmatprep.subr.bf16.mxu0 0
    %4937 = vmatpush1.bf16.msra.mxu0 0
    %4938 = vmatprep.subr.bf16.mxu0 0
    %4939 = vmatpush1.bf16.msra.mxu0 0
    %4940 = vmatprep.subr.bf16.mxu0 0
    %4941 = vmatpush1.bf16.msra.mxu0 0
    %4942 = vmatprep.subr.bf16.mxu0 0
    %4943 = vmatpush1.bf16.msra.mxu0 0
    %4944 = vmatprep.subr.bf16.mxu0 0
    %4945 = vmatpush1.bf16.msra.mxu0 0
    %4946 = vmatprep.subr.bf16.mxu0 0
    %4947 = vmatpush1.bf16.msra.mxu0 0
    %4948 = vmatprep.subr.bf16.mxu0 0
    %4949 = vmatpush1.bf16.msra.mxu0 0
    %4950 = vmatprep.subr.bf16.mxu0 0
    %4951 = vmatpush1.bf16.msra.mxu0 0
    %4952 = vmatprep.subr.bf16.mxu0 0
    %4953 = vmatpush1.bf16.msra.mxu0 0
    %4954 = vmatprep.subr.bf16.mxu0 0
    %4955 = vmatpush1.bf16.msra.mxu0 0
    %4956 = vmatprep.mubr.bf16.mxu0 0
    %4957 = vmatmul.mubr.bf16.gmra.mrb[0].mxu0 %v4750
    %v4958 = vpop.f32.mrb[0].mxu0
    %v4959 = vadd.f32 %v4544, %v4958
    %v4960 = vpop.f32.mrb[0].mxu0
    %v4961 = vadd.f32 %v4548, %v4960
    %v4962 = vpop.f32.mrb[0].mxu0
    %v4963 = vadd.f32 %v4544, %v4962
    %v4964 = vpop.f32.mrb[0].mxu0
    %v4965 = vadd.f32 %v4548, %v4964
    %4966 = vdwg.mxu0
    %4967 = vmatprep.subr.bf16.mxu0 %v4696
    %4968 = vmatpush1.bf16.msra.mxu0 %v4695
    %4969 = vmatprep.subr.bf16.mxu0 %v4712
    %4970 = vmatpush1.bf16.msra.mxu0 %v4711
    %4971 = vmatprep.subr.bf16.mxu0 0
    %4972 = vmatpush1.bf16.msra.mxu0 0
    %4973 = vmatprep.subr.bf16.mxu0 0
    %4974 = vmatpush1.bf16.msra.mxu0 0
    %4975 = vmatprep.subr.bf16.mxu0 0
    %4976 = vmatpush1.bf16.msra.mxu0 0
    %4977 = vmatprep.subr.bf16.mxu0 0
    %4978 = vmatpush1.bf16.msra.mxu0 0
    %4979 = vmatprep.subr.bf16.mxu0 0
    %4980 = vmatpush1.bf16.msra.mxu0 0
    %4981 = vmatprep.subr.bf16.mxu0 0
    %4982 = vmatpush1.bf16.msra.mxu0 0
    %4983 = vmatprep.subr.bf16.mxu0 0
    %4984 = vmatpush1.bf16.msra.mxu0 0
    %4985 = vmatprep.subr.bf16.mxu0 0
    %4986 = vmatpush1.bf16.msra.mxu0 0
    %4987 = vmatprep.subr.bf16.mxu0 0
    %4988 = vmatpush1.bf16.msra.mxu0 0
    %4989 = vmatprep.subr.bf16.mxu0 0
    %4990 = vmatpush1.bf16.msra.mxu0 0
    %4991 = vmatprep.subr.bf16.mxu0 0
    %4992 = vmatpush1.bf16.msra.mxu0 0
    %4993 = vmatprep.subr.bf16.mxu0 0
    %4994 = vmatpush1.bf16.msra.mxu0 0
    %4995 = vmatprep.subr.bf16.mxu0 0
    %4996 = vmatpush1.bf16.msra.mxu0 0
    %4997 = vmatprep.subr.bf16.mxu0 0
    %4998 = vmatpush1.bf16.msra.mxu0 0
    %4999 = vmatprep.mubr.bf16.mxu0 0
    %5000 = vmatmul.mubr.bf16.gmra.mrb[0].mxu0 %v4750
    %v5001 = vpop.f32.mrb[0].mxu0
    %v5002 = vadd.f32 %v4552, %v5001
    %v5003 = vpop.f32.mrb[0].mxu0
    %v5004 = vadd.f32 %v4556, %v5003
    %v5005 = vpop.f32.mrb[0].mxu0
    %v5006 = vadd.f32 %v4552, %v5005
    %v5007 = vpop.f32.mrb[0].mxu0
    %v5008 = vadd.f32 %v4556, %v5007
    %5009 = vdwg.mxu0
    %5010 = vmatprep.subr.bf16.mxu0 %v4698
    %5011 = vmatpush1.bf16.msra.mxu0 %v4697
    %5012 = vmatprep.subr.bf16.mxu0 %v4714
    %5013 = vmatpush1.bf16.msra.mxu0 %v4713
    %5014 = vmatprep.subr.bf16.mxu0 0
    %5015 = vmatpush1.bf16.msra.mxu0 0
    %5016 = vmatprep.subr.bf16.mxu0 0
    %5017 = vmatpush1.bf16.msra.mxu0 0
    %5018 = vmatprep.subr.bf16.mxu0 0
    %5019 = vmatpush1.bf16.msra.mxu0 0
    %5020 = vmatprep.subr.bf16.mxu0 0
    %5021 = vmatpush1.bf16.msra.mxu0 0
    %5022 = vmatprep.subr.bf16.mxu0 0
    %5023 = vmatpush1.bf16.msra.mxu0 0
    %5024 = vmatprep.subr.bf16.mxu0 0
    %5025 = vmatpush1.bf16.msra.mxu0 0
    %5026 = vmatprep.subr.bf16.mxu0 0
    %5027 = vmatpush1.bf16.msra.mxu0 0
    %5028 = vmatprep.subr.bf16.mxu0 0
    %5029 = vmatpush1.bf16.msra.mxu0 0
    %5030 = vmatprep.subr.bf16.mxu0 0
    %5031 = vmatpush1.bf16.msra.mxu0 0
    %5032 = vmatprep.subr.bf16.mxu0 0
    %5033 = vmatpush1.bf16.msra.mxu0 0
    %5034 = vmatprep.subr.bf16.mxu0 0
    %5035 = vmatpush1.bf16.msra.mxu0 0
    %5036 = vmatprep.subr.bf16.mxu0 0
    %5037 = vmatpush1.bf16.msra.mxu0 0
    %5038 = vmatprep.subr.bf16.mxu0 0
    %5039 = vmatpush1.bf16.msra.mxu0 0
    %5040 = vmatprep.subr.bf16.mxu0 0
    %5041 = vmatpush1.bf16.msra.mxu0 0
    %5042 = vmatprep.mubr.bf16.mxu0 0
    %5043 = vmatmul.mubr.bf16.gmra.mrb[0].mxu0 %v4750
    %v5044 = vpop.f32.mrb[0].mxu0
    %v5045 = vadd.f32 %v4560, %v5044
    %v5046 = vpop.f32.mrb[0].mxu0
    %v5047 = vadd.f32 %v4564, %v5046
    %v5048 = vpop.f32.mrb[0].mxu0
    %v5049 = vadd.f32 %v4560, %v5048
    %v5050 = vpop.f32.mrb[0].mxu0
    %v5051 = vadd.f32 %v4564, %v5050
    %5052 = vdwg.mxu0
    %5053 = vmatprep.subr.bf16.mxu0 %v4700
    %5054 = vmatpush1.bf16.msra.mxu0 %v4699
    %5055 = vmatprep.subr.bf16.mxu0 %v4716
    %5056 = vmatpush1.bf16.msra.mxu0 %v4715
    %5057 = vmatprep.subr.bf16.mxu0 0
    %5058 = vmatpush1.bf16.msra.mxu0 0
    %5059 = vmatprep.subr.bf16.mxu0 0
    %5060 = vmatpush1.bf16.msra.mxu0 0
    %5061 = vmatprep.subr.bf16.mxu0 0
    %5062 = vmatpush1.bf16.msra.mxu0 0
    %5063 = vmatprep.subr.bf16.mxu0 0
    %5064 = vmatpush1.bf16.msra.mxu0 0
    %5065 = vmatprep.subr.bf16.mxu0 0
    %5066 = vmatpush1.bf16.msra.mxu0 0
    %5067 = vmatprep.subr.bf16.mxu0 0
    %5068 = vmatpush1.bf16.msra.mxu0 0
    %5069 = vmatprep.subr.bf16.mxu0 0
    %5070 = vmatpush1.bf16.msra.mxu0 0
    %5071 = vmatprep.subr.bf16.mxu0 0
    %5072 = vmatpush1.bf16.msra.mxu0 0
    %5073 = vmatprep.subr.bf16.mxu0 0
    %5074 = vmatpush1.bf16.msra.mxu0 0
    %5075 = vmatprep.subr.bf16.mxu0 0
    %5076 = vmatpush1.bf16.msra.mxu0 0
    %5077 = vmatprep.subr.bf16.mxu0 0
    %5078 = vmatpush1.bf16.msra.mxu0 0
    %5079 = vmatprep.subr.bf16.mxu0 0
    %5080 = vmatpush1.bf16.msra.mxu0 0
    %5081 = vmatprep.subr.bf16.mxu0 0
    %5082 = vmatpush1.bf16.msra.mxu0 0
    %5083 = vmatprep.subr.bf16.mxu0 0
    %5084 = vmatpush1.bf16.msra.mxu0 0
    %5085 = vmatprep.mubr.bf16.mxu0 0
    %5086 = vmatmul.mubr.bf16.gmra.mrb[0].mxu0 %v4750
    %v5087 = vpop.f32.mrb[0].mxu0
    %v5088 = vadd.f32 %v4568, %v5087
    %v5089 = vpop.f32.mrb[0].mxu0
    %v5090 = vadd.f32 %v4572, %v5089
    %v5091 = vpop.f32.mrb[0].mxu0
    %v5092 = vadd.f32 %v4568, %v5091
    %v5093 = vpop.f32.mrb[0].mxu0
    %v5094 = vadd.f32 %v4572, %v5093
    %5095 = vdwg.mxu0
    %v5096 = vmax.f32 %v4787, 0.0
    %v5097 = vmax.f32 %v4789, 0.0
    %v5098 = vmax.f32 %v4830, 0.0
    %v5099 = vmax.f32 %v4832, 0.0
    %v5100 = vmax.f32 %v4873, 0.0
    %v5101 = vmax.f32 %v4875, 0.0
    %v5102 = vmax.f32 %v4916, 0.0
    %v5103 = vmax.f32 %v4918, 0.0
    %v5104 = vmax.f32 %v4959, 0.0
    %v5105 = vmax.f32 %v4961, 0.0
    %v5106 = vmax.f32 %v5002, 0.0
    %v5107 = vmax.f32 %v5004, 0.0
    %v5108 = vmax.f32 %v5045, 0.0
    %v5109 = vmax.f32 %v5047, 0.0
    %v5110 = vmax.f32 %v5088, 0.0
    %v5111 = vmax.f32 %v5090, 0.0
    %v5112 = vmax.f32 %v4791, 0.0
    %v5113 = vmax.f32 %v4793, 0.0
    %v5114 = vmax.f32 %v4834, 0.0
    %v5115 = vmax.f32 %v4836, 0.0
    %v5116 = vmax.f32 %v4877, 0.0
    %v5117 = vmax.f32 %v4879, 0.0
    %v5118 = vmax.f32 %v4920, 0.0
    %v5119 = vmax.f32 %v4922, 0.0
    %v5120 = vmax.f32 %v4963, 0.0
    %v5121 = vmax.f32 %v4965, 0.0
    %v5122 = vmax.f32 %v5006, 0.0
    %v5123 = vmax.f32 %v5008, 0.0
    %v5124 = vmax.f32 %v5049, 0.0
    %v5125 = vmax.f32 %v5051, 0.0
    %v5126 = vmax.f32 %v5092, 0.0
    %v5127 = vmax.f32 %v5094, 0.0
    %v5128 = vpack.c.bf16 %v5112, %v5096
    %v5129 = vpack.c.bf16 %v5113, %v5097
    %v5130 = vpack.c.bf16 %v5114, %v5098
    %v5131 = vpack.c.bf16 %v5115, %v5099
    %v5132 = vpack.c.bf16 %v5116, %v5100
    %v5133 = vpack.c.bf16 %v5117, %v5101
    %v5134 = vpack.c.bf16 %v5118, %v5102
    %v5135 = vpack.c.bf16 %v5119, %v5103
    %v5136 = vpack.c.bf16 %v5120, %v5104
    %v5137 = vpack.c.bf16 %v5121, %v5105
    %v5138 = vpack.c.bf16 %v5122, %v5106
    %v5139 = vpack.c.bf16 %v5123, %v5107
    %v5140 = vpack.c.bf16 %v5124, %v5108
    %v5141 = vpack.c.bf16 %v5125, %v5109
    %v5142 = vpack.c.bf16 %v5126, %v5110
    %v5143 = vpack.c.bf16 %v5127, %v5111
    %s5144 = scalar_lea.vmem [#allocation5], 256
    %v5145 = vld [vmem:[%s5144] sm:$0xff]
    %v5146 = vld [vmem:[%s5144 + $0x8] sm:$0xff]
    %v5147 = vld [vmem:[%s5144 + $0x10] sm:$0xff]
    %v5148 = vld [vmem:[%s5144 + $0x18] sm:$0xff]
    %v5149 = vld [vmem:[%s5144 + $0x20] sm:$0xff]
    %v5150 = vld [vmem:[%s5144 + $0x28] sm:$0xff]
    %v5151 = vld [vmem:[%s5144 + $0x30] sm:$0xff]
    %v5152 = vld [vmem:[%s5144 + $0x38] sm:$0xff]
    %v5153 = vld [vmem:[%s5144 + $0x40] sm:$0xff]
    %v5154 = vld [vmem:[%s5144 + $0x48] sm:$0xff]
    %v5155 = vld [vmem:[%s5144 + $0x50] sm:$0xff]
    %v5156 = vld [vmem:[%s5144 + $0x58] sm:$0xff]
    %v5157 = vld [vmem:[%s5144 + $0x60] sm:$0xff]
    %v5158 = vld [vmem:[%s5144 + $0x68] sm:$0xff]
    %v5159 = vld [vmem:[%s5144 + $0x70] sm:$0xff]
    %v5160 = vld [vmem:[%s5144 + $0x78] sm:$0xff]
    %v5161 = vld [vmem:[%s5144 + $0x80] sm:$0xff]
    %v5162 = vld [vmem:[%s5144 + $0x88] sm:$0xff]
    %v5163 = vld [vmem:[%s5144 + $0x90] sm:$0xff]
    %v5164 = vld [vmem:[%s5144 + $0x98] sm:$0xff]
    %v5165 = vld [vmem:[%s5144 + $0xa0] sm:$0xff]
    %v5166 = vld [vmem:[%s5144 + $0xa8] sm:$0xff]
    %v5167 = vld [vmem:[%s5144 + $0xb0] sm:$0xff]
    %v5168 = vld [vmem:[%s5144 + $0xb8] sm:$0xff]
    %v5169 = vld [vmem:[%s5144 + $0xc0] sm:$0xff]
    %v5170 = vld [vmem:[%s5144 + $0xc8] sm:$0xff]
    %v5171 = vld [vmem:[%s5144 + $0xd0] sm:$0xff]
    %v5172 = vld [vmem:[%s5144 + $0xd8] sm:$0xff]
    %v5173 = vld [vmem:[%s5144 + $0xe0] sm:$0xff]
    %v5174 = vld [vmem:[%s5144 + $0xe8] sm:$0xff]
    %v5175 = vld [vmem:[%s5144 + $0xf0] sm:$0xff]
    %v5176 = vld [vmem:[%s5144 + $0xf8] sm:$0xff]
    %v5177 = vlaneseq
    %v5178 = vshrl.u32 %v5177, 7
    %v5179 = vsub.s32 4, %v5178
    %v5180 = vrot.slane %v2941, %v5179
    %v5213 = vunpack.c.l.b16 %v5145
    %v5214 = vunpack.c.h.b16 %v5145
    %v5215 = vunpack.c.l.b16 %v5146
    %v5216 = vunpack.c.h.b16 %v5146
    %v5217 = vunpack.c.l.b16 %v5147
    %v5218 = vunpack.c.h.b16 %v5147
    %v5219 = vunpack.c.l.b16 %v5148
    %v5220 = vunpack.c.h.b16 %v5148
    %v5221 = vunpack.c.l.b16 %v5149
    %v5222 = vunpack.c.h.b16 %v5149
    %v5223 = vunpack.c.l.b16 %v5150
    %v5224 = vunpack.c.h.b16 %v5150
    %v5225 = vunpack.c.l.b16 %v5151
    %v5226 = vunpack.c.h.b16 %v5151
    %v5227 = vunpack.c.l.b16 %v5152
    %v5228 = vunpack.c.h.b16 %v5152
    %v5229 = vunpack.c.l.b16 %v5153
    %v5230 = vunpack.c.h.b16 %v5153
    %v5231 = vunpack.c.l.b16 %v5154
    %v5232 = vunpack.c.h.b16 %v5154
    %v5233 = vunpack.c.l.b16 %v5155
    %v5234 = vunpack.c.h.b16 %v5155
    %v5235 = vunpack.c.l.b16 %v5156
    %v5236 = vunpack.c.h.b16 %v5156
    %v5237 = vunpack.c.l.b16 %v5157
    %v5238 = vunpack.c.h.b16 %v5157
    %v5239 = vunpack.c.l.b16 %v5158
    %v5240 = vunpack.c.h.b16 %v5158
    %v5241 = vunpack.c.l.b16 %v5159
    %v5242 = vunpack.c.h.b16 %v5159
    %v5243 = vunpack.c.l.b16 %v5160
    %v5244 = vunpack.c.h.b16 %v5160
    %v5245 = vunpack.c.l.b16 %v5161
    %v5246 = vunpack.c.h.b16 %v5161
    %v5247 = vunpack.c.l.b16 %v5162
    %v5248 = vunpack.c.h.b16 %v5162
    %v5249 = vunpack.c.l.b16 %v5163
    %v5250 = vunpack.c.h.b16 %v5163
    %v5251 = vunpack.c.l.b16 %v5164
    %v5252 = vunpack.c.h.b16 %v5164
    %v5253 = vunpack.c.l.b16 %v5165
    %v5254 = vunpack.c.h.b16 %v5165
    %v5255 = vunpack.c.l.b16 %v5166
    %v5256 = vunpack.c.h.b16 %v5166
    %v5257 = vunpack.c.l.b16 %v5167
    %v5258 = vunpack.c.h.b16 %v5167
    %v5259 = vunpack.c.l.b16 %v5168
    %v5260 = vunpack.c.h.b16 %v5168
    %v5261 = vunpack.c.l.b16 %v5169
    %v5262 = vunpack.c.h.b16 %v5169
    %v5263 = vunpack.c.l.b16 %v5170
    %v5264 = vunpack.c.h.b16 %v5170
    %v5265 = vunpack.c.l.b16 %v5171
    %v5266 = vunpack.c.h.b16 %v5171
    %v5267 = vunpack.c.l.b16 %v5172
    %v5268 = vunpack.c.h.b16 %v5172
    %v5269 = vunpack.c.l.b16 %v5173
    %v5270 = vunpack.c.h.b16 %v5173
    %v5271 = vunpack.c.l.b16 %v5174
    %v5272 = vunpack.c.h.b16 %v5174
    %v5273 = vunpack.c.l.b16 %v5175
    %v5274 = vunpack.c.h.b16 %v5175
    %v5275 = vunpack.c.l.b16 %v5176
    %v5276 = vunpack.c.h.b16 %v5176
    %v5277 = vpack.c.b16 %v5229, %v5213
    %v5278 = vpack.c.b16 %v5230, %v5214
    %v5279 = vpack.c.b16 %v5231, %v5215
    %v5280 = vpack.c.b16 %v5232, %v5216
    %v5281 = vpack.c.b16 %v5233, %v5217
    %v5282 = vpack.c.b16 %v5234, %v5218
    %v5283 = vpack.c.b16 %v5235, %v5219
    %v5284 = vpack.c.b16 %v5236, %v5220
    %v5285 = vpack.c.b16 %v5237, %v5221
    %v5286 = vpack.c.b16 %v5238, %v5222
    %v5287 = vpack.c.b16 %v5239, %v5223
    %v5288 = vpack.c.b16 %v5240, %v5224
    %v5289 = vpack.c.b16 %v5241, %v5225
    %v5290 = vpack.c.b16 %v5242, %v5226
    %v5291 = vpack.c.b16 %v5243, %v5227
    %v5292 = vpack.c.b16 %v5244, %v5228
    %v5293 = vpack.c.b16 %v5261, %v5245
    %v5294 = vpack.c.b16 %v5262, %v5246
    %v5295 = vpack.c.b16 %v5263, %v5247
    %v5296 = vpack.c.b16 %v5264, %v5248
    %v5297 = vpack.c.b16 %v5265, %v5249
    %v5298 = vpack.c.b16 %v5266, %v5250
    %v5299 = vpack.c.b16 %v5267, %v5251
    %v5300 = vpack.c.b16 %v5268, %v5252
    %v5301 = vpack.c.b16 %v5269, %v5253
    %v5302 = vpack.c.b16 %v5270, %v5254
    %v5303 = vpack.c.b16 %v5271, %v5255
    %v5304 = vpack.c.b16 %v5272, %v5256
    %v5305 = vpack.c.b16 %v5273, %v5257
    %v5306 = vpack.c.b16 %v5274, %v5258
    %v5307 = vpack.c.b16 %v5275, %v5259
    %v5308 = vpack.c.b16 %v5276, %v5260
    %5341 = vmatprep.subr.bf16.mxu0 %v5278
    %5342 = vmatpush1.bf16.xpose.msra.mxu0 %v5277
    %5343 = vmatprep.subr.bf16.mxu0 %v5294
    %5344 = vmatpush1.bf16.xpose.msra.mxu0 %v5293
    %5345 = vmatprep.subr.bf16.mxu0 0
    %5346 = vmatpush1.bf16.xpose.msra.mxu0 0
    %5347 = vmatprep.subr.bf16.mxu0 0
    %5348 = vmatpush1.bf16.xpose.msra.mxu0 0
    %5349 = vmatprep.subr.bf16.mxu0 0
    %5350 = vmatpush1.bf16.xpose.msra.mxu0 0
    %5351 = vmatprep.subr.bf16.mxu0 0
    %5352 = vmatpush1.bf16.xpose.msra.mxu0 0
    %5353 = vmatprep.subr.bf16.mxu0 0
    %5354 = vmatpush1.bf16.xpose.msra.mxu0 0
    %5355 = vmatprep.subr.bf16.mxu0 0
    %5356 = vmatpush1.bf16.xpose.msra.mxu0 0
    %5357 = vmatprep.subr.bf16.mxu0 0
    %5358 = vmatpush1.bf16.xpose.msra.mxu0 0
    %5359 = vmatprep.subr.bf16.mxu0 0
    %5360 = vmatpush1.bf16.xpose.msra.mxu0 0
    %5361 = vmatprep.subr.bf16.mxu0 0
    %5362 = vmatpush1.bf16.xpose.msra.mxu0 0
    %5363 = vmatprep.subr.bf16.mxu0 0
    %5364 = vmatpush1.bf16.xpose.msra.mxu0 0
    %5365 = vmatprep.subr.bf16.mxu0 0
    %5366 = vmatpush1.bf16.xpose.msra.mxu0 0
    %5367 = vmatprep.subr.bf16.mxu0 0
    %5368 = vmatpush1.bf16.xpose.msra.mxu0 0
    %5369 = vmatprep.subr.bf16.mxu0 0
    %5370 = vmatpush1.bf16.xpose.msra.mxu0 0
    %5371 = vmatprep.subr.bf16.mxu0 0
    %5372 = vmatpush1.bf16.xpose.msra.mxu0 0
    %5373 = vmatprep.mubr.bf16.mxu0 %v5129
    %5374 = vmatmul.mubr.bf16.gmra.mrb[0].mxu0 %v5128
    %v5375 = vpop.f32.mrb[0].mxu0
    %v5376 = vadd.f32 %v5180, %v5375
    %v5377 = vpop.f32.mrb[0].mxu0
    %v5378 = vpop.f32.mrb[0].mxu0
    %v5379 = vadd.f32 %v5180, %v5378
    %v5380 = vpop.f32.mrb[0].mxu0
    %5381 = vdwg.mxu0
    %5382 = vmatprep.subr.bf16.mxu0 %v5280
    %5383 = vmatpush1.bf16.xpose.msra.mxu0 %v5279
    %5384 = vmatprep.subr.bf16.mxu0 %v5296
    %5385 = vmatpush1.bf16.xpose.msra.mxu0 %v5295
    %5386 = vmatprep.subr.bf16.mxu0 0
    %5387 = vmatpush1.bf16.xpose.msra.mxu0 0
    %5388 = vmatprep.subr.bf16.mxu0 0
    %5389 = vmatpush1.bf16.xpose.msra.mxu0 0
    %5390 = vmatprep.subr.bf16.mxu0 0
    %5391 = vmatpush1.bf16.xpose.msra.mxu0 0
    %5392 = vmatprep.subr.bf16.mxu0 0
    %5393 = vmatpush1.bf16.xpose.msra.mxu0 0
    %5394 = vmatprep.subr.bf16.mxu0 0
    %5395 = vmatpush1.bf16.xpose.msra.mxu0 0
    %5396 = vmatprep.subr.bf16.mxu0 0
    %5397 = vmatpush1.bf16.xpose.msra.mxu0 0
    %5398 = vmatprep.subr.bf16.mxu0 0
    %5399 = vmatpush1.bf16.xpose.msra.mxu0 0
    %5400 = vmatprep.subr.bf16.mxu0 0
    %5401 = vmatpush1.bf16.xpose.msra.mxu0 0
    %5402 = vmatprep.subr.bf16.mxu0 0
    %5403 = vmatpush1.bf16.xpose.msra.mxu0 0
    %5404 = vmatprep.subr.bf16.mxu0 0
    %5405 = vmatpush1.bf16.xpose.msra.mxu0 0
    %5406 = vmatprep.subr.bf16.mxu0 0
    %5407 = vmatpush1.bf16.xpose.msra.mxu0 0
    %5408 = vmatprep.subr.bf16.mxu0 0
    %5409 = vmatpush1.bf16.xpose.msra.mxu0 0
    %5410 = vmatprep.subr.bf16.mxu0 0
    %5411 = vmatpush1.bf16.xpose.msra.mxu0 0
    %5412 = vmatprep.subr.bf16.mxu0 0
    %5413 = vmatpush1.bf16.xpose.msra.mxu0 0
    %5414 = vmatprep.mubr.bf16.mxu0 %v5131
    %5415 = vmatmul.mubr.bf16.gmra.mrb[0].mxu0 %v5130
    %v5416 = vpop.f32.mrb[0].mxu0
    %v5417 = vadd.f32 %v5376, %v5416
    %v5418 = vpop.f32.mrb[0].mxu0
    %v5419 = vpop.f32.mrb[0].mxu0
    %v5420 = vadd.f32 %v5379, %v5419
    %v5421 = vpop.f32.mrb[0].mxu0
    %5422 = vdwg.mxu0
    %5423 = vmatprep.subr.bf16.mxu0 %v5282
    %5424 = vmatpush1.bf16.xpose.msra.mxu0 %v5281
    %5425 = vmatprep.subr.bf16.mxu0 %v5298
    %5426 = vmatpush1.bf16.xpose.msra.mxu0 %v5297
    %5427 = vmatprep.subr.bf16.mxu0 0
    %5428 = vmatpush1.bf16.xpose.msra.mxu0 0
    %5429 = vmatprep.subr.bf16.mxu0 0
    %5430 = vmatpush1.bf16.xpose.msra.mxu0 0
    %5431 = vmatprep.subr.bf16.mxu0 0
    %5432 = vmatpush1.bf16.xpose.msra.mxu0 0
    %5433 = vmatprep.subr.bf16.mxu0 0
    %5434 = vmatpush1.bf16.xpose.msra.mxu0 0
    %5435 = vmatprep.subr.bf16.mxu0 0
    %5436 = vmatpush1.bf16.xpose.msra.mxu0 0
    %5437 = vmatprep.subr.bf16.mxu0 0
    %5438 = vmatpush1.bf16.xpose.msra.mxu0 0
    %5439 = vmatprep.subr.bf16.mxu0 0
    %5440 = vmatpush1.bf16.xpose.msra.mxu0 0
    %5441 = vmatprep.subr.bf16.mxu0 0
    %5442 = vmatpush1.bf16.xpose.msra.mxu0 0
    %5443 = vmatprep.subr.bf16.mxu0 0
    %5444 = vmatpush1.bf16.xpose.msra.mxu0 0
    %5445 = vmatprep.subr.bf16.mxu0 0
    %5446 = vmatpush1.bf16.xpose.msra.mxu0 0
    %5447 = vmatprep.subr.bf16.mxu0 0
    %5448 = vmatpush1.bf16.xpose.msra.mxu0 0
    %5449 = vmatprep.subr.bf16.mxu0 0
    %5450 = vmatpush1.bf16.xpose.msra.mxu0 0
    %5451 = vmatprep.subr.bf16.mxu0 0
    %5452 = vmatpush1.bf16.xpose.msra.mxu0 0
    %5453 = vmatprep.subr.bf16.mxu0 0
    %5454 = vmatpush1.bf16.xpose.msra.mxu0 0
    %5455 = vmatprep.mubr.bf16.mxu0 %v5133
    %5456 = vmatmul.mubr.bf16.gmra.mrb[0].mxu0 %v5132
    %v5457 = vpop.f32.mrb[0].mxu0
    %v5458 = vadd.f32 %v5417, %v5457
    %v5459 = vpop.f32.mrb[0].mxu0
    %v5460 = vpop.f32.mrb[0].mxu0
    %v5461 = vadd.f32 %v5420, %v5460
    %v5462 = vpop.f32.mrb[0].mxu0
    %5463 = vdwg.mxu0
    %5464 = vmatprep.subr.bf16.mxu0 %v5284
    %5465 = vmatpush1.bf16.xpose.msra.mxu0 %v5283
    %5466 = vmatprep.subr.bf16.mxu0 %v5300
    %5467 = vmatpush1.bf16.xpose.msra.mxu0 %v5299
    %5468 = vmatprep.subr.bf16.mxu0 0
    %5469 = vmatpush1.bf16.xpose.msra.mxu0 0
    %5470 = vmatprep.subr.bf16.mxu0 0
    %5471 = vmatpush1.bf16.xpose.msra.mxu0 0
    %5472 = vmatprep.subr.bf16.mxu0 0
    %5473 = vmatpush1.bf16.xpose.msra.mxu0 0
    %5474 = vmatprep.subr.bf16.mxu0 0
    %5475 = vmatpush1.bf16.xpose.msra.mxu0 0
    %5476 = vmatprep.subr.bf16.mxu0 0
    %5477 = vmatpush1.bf16.xpose.msra.mxu0 0
    %5478 = vmatprep.subr.bf16.mxu0 0
    %5479 = vmatpush1.bf16.xpose.msra.mxu0 0
    %5480 = vmatprep.subr.bf16.mxu0 0
    %5481 = vmatpush1.bf16.xpose.msra.mxu0 0
    %5482 = vmatprep.subr.bf16.mxu0 0
    %5483 = vmatpush1.bf16.xpose.msra.mxu0 0
    %5484 = vmatprep.subr.bf16.mxu0 0
    %5485 = vmatpush1.bf16.xpose.msra.mxu0 0
    %5486 = vmatprep.subr.bf16.mxu0 0
    %5487 = vmatpush1.bf16.xpose.msra.mxu0 0
    %5488 = vmatprep.subr.bf16.mxu0 0
    %5489 = vmatpush1.bf16.xpose.msra.mxu0 0
    %5490 = vmatprep.subr.bf16.mxu0 0
    %5491 = vmatpush1.bf16.xpose.msra.mxu0 0
    %5492 = vmatprep.subr.bf16.mxu0 0
    %5493 = vmatpush1.bf16.xpose.msra.mxu0 0
    %5494 = vmatprep.subr.bf16.mxu0 0
    %5495 = vmatpush1.bf16.xpose.msra.mxu0 0
    %5496 = vmatprep.mubr.bf16.mxu0 %v5135
    %5497 = vmatmul.mubr.bf16.gmra.mrb[0].mxu0 %v5134
    %v5498 = vpop.f32.mrb[0].mxu0
    %v5499 = vadd.f32 %v5458, %v5498
    %v5500 = vpop.f32.mrb[0].mxu0
    %v5501 = vpop.f32.mrb[0].mxu0
    %v5502 = vadd.f32 %v5461, %v5501
    %v5503 = vpop.f32.mrb[0].mxu0
    %5504 = vdwg.mxu0
    %5505 = vmatprep.subr.bf16.mxu0 %v5286
    %5506 = vmatpush1.bf16.xpose.msra.mxu0 %v5285
    %5507 = vmatprep.subr.bf16.mxu0 %v5302
    %5508 = vmatpush1.bf16.xpose.msra.mxu0 %v5301
    %5509 = vmatprep.subr.bf16.mxu0 0
    %5510 = vmatpush1.bf16.xpose.msra.mxu0 0
    %5511 = vmatprep.subr.bf16.mxu0 0
    %5512 = vmatpush1.bf16.xpose.msra.mxu0 0
    %5513 = vmatprep.subr.bf16.mxu0 0
    %5514 = vmatpush1.bf16.xpose.msra.mxu0 0
    %5515 = vmatprep.subr.bf16.mxu0 0
    %5516 = vmatpush1.bf16.xpose.msra.mxu0 0
    %5517 = vmatprep.subr.bf16.mxu0 0
    %5518 = vmatpush1.bf16.xpose.msra.mxu0 0
    %5519 = vmatprep.subr.bf16.mxu0 0
    %5520 = vmatpush1.bf16.xpose.msra.mxu0 0
    %5521 = vmatprep.subr.bf16.mxu0 0
    %5522 = vmatpush1.bf16.xpose.msra.mxu0 0
    %5523 = vmatprep.subr.bf16.mxu0 0
    %5524 = vmatpush1.bf16.xpose.msra.mxu0 0
    %5525 = vmatprep.subr.bf16.mxu0 0
    %5526 = vmatpush1.bf16.xpose.msra.mxu0 0
    %5527 = vmatprep.subr.bf16.mxu0 0
    %5528 = vmatpush1.bf16.xpose.msra.mxu0 0
    %5529 = vmatprep.subr.bf16.mxu0 0
    %5530 = vmatpush1.bf16.xpose.msra.mxu0 0
    %5531 = vmatprep.subr.bf16.mxu0 0
    %5532 = vmatpush1.bf16.xpose.msra.mxu0 0
    %5533 = vmatprep.subr.bf16.mxu0 0
    %5534 = vmatpush1.bf16.xpose.msra.mxu0 0
    %5535 = vmatprep.subr.bf16.mxu0 0
    %5536 = vmatpush1.bf16.xpose.msra.mxu0 0
    %5537 = vmatprep.mubr.bf16.mxu0 %v5137
    %5538 = vmatmul.mubr.bf16.gmra.mrb[0].mxu0 %v5136
    %v5539 = vpop.f32.mrb[0].mxu0
    %v5540 = vadd.f32 %v5499, %v5539
    %v5541 = vpop.f32.mrb[0].mxu0
    %v5542 = vpop.f32.mrb[0].mxu0
    %v5543 = vadd.f32 %v5502, %v5542
    %v5544 = vpop.f32.mrb[0].mxu0
    %5545 = vdwg.mxu0
    %5546 = vmatprep.subr.bf16.mxu0 %v5288
    %5547 = vmatpush1.bf16.xpose.msra.mxu0 %v5287
    %5548 = vmatprep.subr.bf16.mxu0 %v5304
    %5549 = vmatpush1.bf16.xpose.msra.mxu0 %v5303
    %5550 = vmatprep.subr.bf16.mxu0 0
    %5551 = vmatpush1.bf16.xpose.msra.mxu0 0
    %5552 = vmatprep.subr.bf16.mxu0 0
    %5553 = vmatpush1.bf16.xpose.msra.mxu0 0
    %5554 = vmatprep.subr.bf16.mxu0 0
    %5555 = vmatpush1.bf16.xpose.msra.mxu0 0
    %5556 = vmatprep.subr.bf16.mxu0 0
    %5557 = vmatpush1.bf16.xpose.msra.mxu0 0
    %5558 = vmatprep.subr.bf16.mxu0 0
    %5559 = vmatpush1.bf16.xpose.msra.mxu0 0
    %5560 = vmatprep.subr.bf16.mxu0 0
    %5561 = vmatpush1.bf16.xpose.msra.mxu0 0
    %5562 = vmatprep.subr.bf16.mxu0 0
    %5563 = vmatpush1.bf16.xpose.msra.mxu0 0
    %5564 = vmatprep.subr.bf16.mxu0 0
    %5565 = vmatpush1.bf16.xpose.msra.mxu0 0
    %5566 = vmatprep.subr.bf16.mxu0 0
    %5567 = vmatpush1.bf16.xpose.msra.mxu0 0
    %5568 = vmatprep.subr.bf16.mxu0 0
    %5569 = vmatpush1.bf16.xpose.msra.mxu0 0
    %5570 = vmatprep.subr.bf16.mxu0 0
    %5571 = vmatpush1.bf16.xpose.msra.mxu0 0
    %5572 = vmatprep.subr.bf16.mxu0 0
    %5573 = vmatpush1.bf16.xpose.msra.mxu0 0
    %5574 = vmatprep.subr.bf16.mxu0 0
    %5575 = vmatpush1.bf16.xpose.msra.mxu0 0
    %5576 = vmatprep.subr.bf16.mxu0 0
    %5577 = vmatpush1.bf16.xpose.msra.mxu0 0
    %5578 = vmatprep.mubr.bf16.mxu0 %v5139
    %5579 = vmatmul.mubr.bf16.gmra.mrb[0].mxu0 %v5138
    %v5580 = vpop.f32.mrb[0].mxu0
    %v5581 = vadd.f32 %v5540, %v5580
    %v5582 = vpop.f32.mrb[0].mxu0
    %v5583 = vpop.f32.mrb[0].mxu0
    %v5584 = vadd.f32 %v5543, %v5583
    %v5585 = vpop.f32.mrb[0].mxu0
    %5586 = vdwg.mxu0
    %5587 = vmatprep.subr.bf16.mxu0 %v5290
    %5588 = vmatpush1.bf16.xpose.msra.mxu0 %v5289
    %5589 = vmatprep.subr.bf16.mxu0 %v5306
    %5590 = vmatpush1.bf16.xpose.msra.mxu0 %v5305
    %5591 = vmatprep.subr.bf16.mxu0 0
    %5592 = vmatpush1.bf16.xpose.msra.mxu0 0
    %5593 = vmatprep.subr.bf16.mxu0 0
    %5594 = vmatpush1.bf16.xpose.msra.mxu0 0
    %5595 = vmatprep.subr.bf16.mxu0 0
    %5596 = vmatpush1.bf16.xpose.msra.mxu0 0
    %5597 = vmatprep.subr.bf16.mxu0 0
    %5598 = vmatpush1.bf16.xpose.msra.mxu0 0
    %5599 = vmatprep.subr.bf16.mxu0 0
    %5600 = vmatpush1.bf16.xpose.msra.mxu0 0
    %5601 = vmatprep.subr.bf16.mxu0 0
    %5602 = vmatpush1.bf16.xpose.msra.mxu0 0
    %5603 = vmatprep.subr.bf16.mxu0 0
    %5604 = vmatpush1.bf16.xpose.msra.mxu0 0
    %5605 = vmatprep.subr.bf16.mxu0 0
    %5606 = vmatpush1.bf16.xpose.msra.mxu0 0
    %5607 = vmatprep.subr.bf16.mxu0 0
    %5608 = vmatpush1.bf16.xpose.msra.mxu0 0
    %5609 = vmatprep.subr.bf16.mxu0 0
    %5610 = vmatpush1.bf16.xpose.msra.mxu0 0
    %5611 = vmatprep.subr.bf16.mxu0 0
    %5612 = vmatpush1.bf16.xpose.msra.mxu0 0
    %5613 = vmatprep.subr.bf16.mxu0 0
    %5614 = vmatpush1.bf16.xpose.msra.mxu0 0
    %5615 = vmatprep.subr.bf16.mxu0 0
    %5616 = vmatpush1.bf16.xpose.msra.mxu0 0
    %5617 = vmatprep.subr.bf16.mxu0 0
    %5618 = vmatpush1.bf16.xpose.msra.mxu0 0
    %5619 = vmatprep.mubr.bf16.mxu0 %v5141
    %5620 = vmatmul.mubr.bf16.gmra.mrb[0].mxu0 %v5140
    %v5621 = vpop.f32.mrb[0].mxu0
    %v5622 = vadd.f32 %v5581, %v5621
    %v5623 = vpop.f32.mrb[0].mxu0
    %v5624 = vpop.f32.mrb[0].mxu0
    %v5625 = vadd.f32 %v5584, %v5624
    %v5626 = vpop.f32.mrb[0].mxu0
    %5627 = vdwg.mxu0
    %5628 = vmatprep.subr.bf16.mxu0 %v5292
    %5629 = vmatpush1.bf16.xpose.msra.mxu0 %v5291
    %5630 = vmatprep.subr.bf16.mxu0 %v5308
    %5631 = vmatpush1.bf16.xpose.msra.mxu0 %v5307
    %5632 = vmatprep.subr.bf16.mxu0 0
    %5633 = vmatpush1.bf16.xpose.msra.mxu0 0
    %5634 = vmatprep.subr.bf16.mxu0 0
    %5635 = vmatpush1.bf16.xpose.msra.mxu0 0
    %5636 = vmatprep.subr.bf16.mxu0 0
    %5637 = vmatpush1.bf16.xpose.msra.mxu0 0
    %5638 = vmatprep.subr.bf16.mxu0 0
    %5639 = vmatpush1.bf16.xpose.msra.mxu0 0
    %5640 = vmatprep.subr.bf16.mxu0 0
    %5641 = vmatpush1.bf16.xpose.msra.mxu0 0
    %5642 = vmatprep.subr.bf16.mxu0 0
    %5643 = vmatpush1.bf16.xpose.msra.mxu0 0
    %5644 = vmatprep.subr.bf16.mxu0 0
    %5645 = vmatpush1.bf16.xpose.msra.mxu0 0
    %5646 = vmatprep.subr.bf16.mxu0 0
    %5647 = vmatpush1.bf16.xpose.msra.mxu0 0
    %5648 = vmatprep.subr.bf16.mxu0 0
    %5649 = vmatpush1.bf16.xpose.msra.mxu0 0
    %5650 = vmatprep.subr.bf16.mxu0 0
    %5651 = vmatpush1.bf16.xpose.msra.mxu0 0
    %5652 = vmatprep.subr.bf16.mxu0 0
    %5653 = vmatpush1.bf16.xpose.msra.mxu0 0
    %5654 = vmatprep.subr.bf16.mxu0 0
    %5655 = vmatpush1.bf16.xpose.msra.mxu0 0
    %5656 = vmatprep.subr.bf16.mxu0 0
    %5657 = vmatpush1.bf16.xpose.msra.mxu0 0
    %5658 = vmatprep.subr.bf16.mxu0 0
    %5659 = vmatpush1.bf16.xpose.msra.mxu0 0
    %5660 = vmatprep.mubr.bf16.mxu0 %v5143
    %5661 = vmatmul.mubr.bf16.gmra.mrb[0].mxu0 %v5142
    %v5662 = vpop.f32.mrb[0].mxu0
    %v5663 = vadd.f32 %v5622, %v5662
    %v5664 = vpop.f32.mrb[0].mxu0
    %v5665 = vpop.f32.mrb[0].mxu0
    %v5666 = vadd.f32 %v5625, %v5665
    %v5667 = vpop.f32.mrb[0].mxu0
    %5668 = vdwg.mxu0
    %v5669 = vadd.f32 %v4468, %v5663
    %v5670 = vadd.f32 %v4469, %v5666
    %v5671 = vsel %vm194, %v5669, 0.0
    %5672 = vadd.xlane.f32.xlu0 %v5671
    %v5673 = vpop.xlane.xlu0 %5672
    %v5674 = vsel %vm194, %v5670, 0.0
    %5675 = vadd.xlane.f32.xlu0 %v5674
    %v5676 = vpop.xlane.xlu0 %5675
    %v5677 = vmul.f32 %v5673, %v1671
    %v5678 = vmul.f32 %v5676, %v1671
    %v5679 = vsub.f32 %v5669, %v5677
    %v5680 = vsub.f32 %v5670, %v5678
    %v5681 = vmul.f32 %v5679, %v5679
    %v5682 = vmul.f32 %v5680, %v5680
    %v5683 = vsel %vm194, %v5681, 0.0
    %5684 = vadd.xlane.f32.xlu0 %v5683
    %v5685 = vpop.xlane.xlu0 %5684
    %v5686 = vsel %vm194, %v5682, 0.0
    %5687 = vadd.xlane.f32.xlu0 %v5686
    %v5688 = vpop.xlane.xlu0 %5687
    %v5689 = vmul.f32 %v5685, %v1671
    %v5690 = vmul.f32 %v5688, %v1671
    %v5691 = vadd.f32 %v5689, 1e-05
    %v5692 = vadd.f32 %v5690, 1e-05
    %v5693 = vrsqrt.pop %v5691
    %v5694 = vrsqrt.pop %v5692
    %v5695 = vmul.f32 %v5679, %v5693
    %v5696 = vmul.f32 %v5680, %v5694
    %v5697 = vlaneseq
    %v5698 = vshrl.u32 %v5697, 7
    %v5699 = vsub.s32 5, %v5698
    %v5700 = vrot.slane %v2941, %v5699
    %v5701 = vmul.f32 %v5695, %v5700
    %v5702 = vmul.f32 %v5696, %v5700
    %v5703 = vlaneseq
    %v5704 = vshrl.u32 %v5703, 7
    %v5705 = vsub.s32 6, %v5704
    %v5706 = vrot.slane %v2941, %v5705
    %v5707 = vadd.f32 %v5701, %v5706
    %v5708 = vadd.f32 %v5702, %v5706
    %v5709 = vpack.c.bf16 %v5708, %v5707
    %v5710 = vld [vmem:[%s8] sm:$0xf]
    %v5711 = vld [vmem:[%s8 + $0x4] sm:$0xf]
    %v5712 = vld [vmem:[%s8 + $0x8] sm:$0xf]
    %v5713 = vld [vmem:[%s8 + $0xc] sm:$0xf]
    %v5714 = vld [vmem:[%s9] sm:$0x1]
    %v5716 = vlaneseq
    %v5717 = vshrl.u32 %v5716, 7
    %v5718 = vsub.s32 0, %v5717
    %v5719 = vrot.slane %v5714, %v5718
    %v5725 = vunpack.c.l.b16 %v5710
    %v5726 = vunpack.c.l.b16 %v5711
    %v5727 = vunpack.c.l.b16 %v5712
    %v5728 = vunpack.c.l.b16 %v5713
    %v5729 = vpack.c.b16 %v5726, %v5725
    %v5730 = vpack.c.b16 %v5728, %v5727
    %v5734 = vsel %vm194, %v5709, 0
    %5736 = vmatprep.subr.bf16.mxu0 0
    %5737 = vmatpush1.bf16.msra.mxu0 %v5729
    %5738 = vmatprep.subr.bf16.mxu0 0
    %5739 = vmatpush1.bf16.msra.mxu0 %v5730
    %5740 = vmatprep.subr.bf16.mxu0 0
    %5741 = vmatpush1.bf16.msra.mxu0 0
    %5742 = vmatprep.subr.bf16.mxu0 0
    %5743 = vmatpush1.bf16.msra.mxu0 0
    %5744 = vmatprep.subr.bf16.mxu0 0
    %5745 = vmatpush1.bf16.msra.mxu0 0
    %5746 = vmatprep.subr.bf16.mxu0 0
    %5747 = vmatpush1.bf16.msra.mxu0 0
    %5748 = vmatprep.subr.bf16.mxu0 0
    %5749 = vmatpush1.bf16.msra.mxu0 0
    %5750 = vmatprep.subr.bf16.mxu0 0
    %5751 = vmatpush1.bf16.msra.mxu0 0
    %5752 = vmatprep.subr.bf16.mxu0 0
    %5753 = vmatpush1.bf16.msra.mxu0 0
    %5754 = vmatprep.subr.bf16.mxu0 0
    %5755 = vmatpush1.bf16.msra.mxu0 0
    %5756 = vmatprep.subr.bf16.mxu0 0
    %5757 = vmatpush1.bf16.msra.mxu0 0
    %5758 = vmatprep.subr.bf16.mxu0 0
    %5759 = vmatpush1.bf16.msra.mxu0 0
    %5760 = vmatprep.subr.bf16.mxu0 0
    %5761 = vmatpush1.bf16.msra.mxu0 0
    %5762 = vmatprep.subr.bf16.mxu0 0
    %5763 = vmatpush1.bf16.msra.mxu0 0
    %5764 = vmatprep.subr.bf16.mxu0 0
    %5765 = vmatpush1.bf16.msra.mxu0 0
    %5766 = vmatprep.subr.bf16.mxu0 0
    %5767 = vmatpush1.bf16.msra.mxu0 0
    %5768 = vmatprep.mubr.bf16.mxu0 0
    %5769 = vmatmul.mubr.bf16.gmra.mrb[0].mxu0 %v5734
    %v5770 = vpop.f32.mrb[0].mxu0
    %v5771 = vadd.f32 %v5719, %v5770
    %v5772 = vpop.f32.mrb[0].mxu0
    %v5773 = vpop.f32.mrb[0].mxu0
    %v5774 = vadd.f32 %v5719, %v5773
    %v5775 = vpop.f32.mrb[0].mxu0
    %5776 = vdwg.mxu0
    %5777 = vst [vmem:[#allocation7] sm:$0xff] %v5771
    %5778 = vst [vmem:[#allocation7 + $0x8] sm:$0xff] %v5774
    // Predicated region
    $region50: #{mf_bert_hybrid_forward.1} parent=1 // pred_check
      _
    $region51: #{mf_bert_hybrid_forward.1} parent=1 // pred_check_branch
      %5780 = sbr.rel (0) target = $region53
    $region52: #{mf_bert_hybrid_forward.1} parent=1 // pred_region
      %s5782 = ssub.s32 256, 256
      %5783 = vsyncadd [#allocation4], %s5782
      %s5784 = sshll.u32 [#allocation7], 4
      %s5785 = int_to_ptr.vmem [resolvable:$true] %s5784
      %5790 = dma.vmem_to_hbm [thread:$0]  %s5785, 256, %s10, [#allocation4], 128, 128, 8
    $region53: #{mf_bert_hybrid_forward.1} parent=1 // pred_fallthru
      _
    // Predicated region
    $region54: #{mf_bert_hybrid_forward.1} parent=1 // pred_check
      _
    $region55: #{mf_bert_hybrid_forward.1} parent=1 // pred_check_branch
      %5792 = sbr.rel (0) target = $region57
    $region56: #{mf_bert_hybrid_forward.1} parent=1 // pred_region
      %5793 = dma.done [#allocation4], 256
    $region57: #{mf_bert_hybrid_forward.1} parent=1 // pred_fallthru
      _
    %5794 = vsyncpa [#allocation3], 1
    %5795 = vsyncpa [#allocation6], 1
    %5796 = vsyncpa [#allocation4], 1

</llo_original>
